<compile_context>
chip_gen: v7x
topology: tpu7x:2x2x1
jax: 0.10.0
libtpu: 0.0.40
codegen_flags: <defaults>
</compile_context>

<pallas_src>
import functools
import jax
import jax.numpy as jnp
from jax.experimental import pallas as pl
from jax.experimental.pallas import tpu as pltpu


# ----------------------------- model config --------------------------------
class Config:
    PAD = 0
    max_seq_len = 32
    encoder_dim = 32                  # d_model
    encoder_head = 2                  # n_head
    encoder_conv1d_filter_size = 64   # d_inner
    decoder_n_layer = 2
    dropout = 0.1                     # identity at inference
    fft_conv1d_kernel = (9, 1)
    fft_conv1d_padding = (4, 0)


# ------------------------------ Pallas kernel -------------------------------
def decoder_stack_kernel(x_ref, bias_ref, keynp_ref, nonpad_ref, tapmask_ref,
                         wqkv_ref, fcw_ref, conv1_ref, conv2_ref, vec_ref,
                         out_ref, *, n_head, d_k, d_v, k1, pad1, eps=1e-5):
    BS, D = x_ref.shape                     # (B*S, d_model), pre-flattened by wrapper
    n_layer = wqkv_ref.shape[0]
    d_hid = conv2_ref.shape[1]
    inv_temp = 1.0 / (d_k ** 0.5)

    # constant masks, loaded once (hoisted out of the layer unroll)
    attn_bias = bias_ref[...]               # (BS, BS): 0 same-batch / -1e30 cross-batch
    keynp = keynp_ref[...]                  # (1, BS):  1.0 where the key token is NOT pad
    nonpad = nonpad_ref[...]                # (BS, 1):  1.0 where the token is NOT pad
    tapmask = tapmask_ref[...]              # (k1, BS, 1): conv tap validity (seq bounds)

    h = x_ref[...].astype(jnp.float32)      # activations stay resident (BS, D)

    for l in range(n_layer):                # static layer unroll (small)
        wqkv = wqkv_ref[l]                  # (D, 3D)  fused Q|K|V projection
        fcw = fcw_ref[l]                    # (n_head*d_v, D)
        w2 = conv2_ref[l]                   # (d_hid, D)
        vec = vec_ref[l]                    # (8, 128) packed bias / LN rows (1 vreg each)
        qkv_b = vec[0:1, :3 * D]
        fc_b = vec[1:2, :D]
        ln1_g, ln1_b = vec[2:3, :D], vec[3:4, :D]
        conv1_b = vec[4:5, :d_hid]
        conv2_b = vec[5:6, :D]
        ln2_g, ln2_b = vec[6:7, :D], vec[7:8, :D]

        # ---------------- multi-head self-attention (flat 2-D matmuls) -------
        qkv = jnp.dot(h, wqkv, preferred_element_type=jnp.float32) + qkv_b  # (BS, 3D)
        mha = None
        for hh in range(n_head):            # static head loop
            qh = qkv[:, hh * d_k:(hh + 1) * d_k]                  # (BS, d_k)
            kh = qkv[:, D + hh * d_k:D + (hh + 1) * d_k]          # (BS, d_k)
            vh = qkv[:, 2 * D + hh * d_v:2 * D + (hh + 1) * d_v]  # (BS, d_v)
            # q @ k^T in one flat matmul; block-diag batch bias folded in.
            s = jax.lax.dot_general(qh, kh, (((1,), (1,)), ((), ())),
                                    preferred_element_type=jnp.float32)
            s = s * inv_temp + attn_bias                          # (BS, BS)
            # reference: softmax(all keys) -> masked_fill(0) -> /(sum + 1e-8)
            #   == e*keymask / (Z_masked + 1e-8*Z_all),  e = exp(s - max)
            smax = jnp.max(s, axis=-1, keepdims=True)
            e = jnp.exp(s - smax)                                 # cross-batch -> 0
            z_all = jnp.sum(e, axis=-1, keepdims=True)
            e_m = e * keynp
            z_m = jnp.sum(e_m, axis=-1, keepdims=True)
            attn = e_m * pl.reciprocal(z_m + 1e-8 * z_all, approx=True)
            ctx = jnp.dot(attn, vh, preferred_element_type=jnp.float32)     # (BS, d_v)
            # fc(concat_h ctx_h) == sum_h ctx_h @ fc_rows_h  -> no concatenate
            contrib = jnp.dot(ctx, fcw[hh * d_v:(hh + 1) * d_v, :],
                              preferred_element_type=jnp.float32)
            mha = contrib if mha is None else mha + contrib
        mha = mha + fc_b

        # residual + LayerNorm + non-pad mask
        y = mha + h
        mu = jnp.mean(y, axis=-1, keepdims=True)
        yc = y - mu
        var = jnp.mean(yc * yc, axis=-1, keepdims=True)
        y = (yc * jax.lax.rsqrt(var + eps)) * ln1_g + ln1_b
        y = y * nonpad

        # ------- positionwise FFN: k1-tap conv as sum of shifted matmuls -----
        h1 = None
        for j in range(k1):                 # static tap loop
            o = j - pad1                    # tap reads y[t + o] (zero outside sequence)
            shifted = y if o == 0 else pltpu.roll(y, shift=(-o) % BS, axis=0)
            tap = shifted * tapmask[j]      # zero out-of-sequence / cross-batch rows
            contrib = jnp.dot(tap, conv1_ref[l, j],
                              preferred_element_type=jnp.float32)
            h1 = contrib if h1 is None else h1 + contrib
        h1 = jnp.maximum(h1 + conv1_b, 0.0)                       # (BS, d_hid), ReLU
        ffn = jnp.dot(h1, w2, preferred_element_type=jnp.float32) + conv2_b

        z = ffn + y
        mu = jnp.mean(z, axis=-1, keepdims=True)
        zc = z - mu
        var = jnp.mean(zc * zc, axis=-1, keepdims=True)
        z = (zc * jax.lax.rsqrt(var + eps)) * ln2_g + ln2_b
        h = z * nonpad

    out_ref[...] = h.astype(out_ref.dtype)


# ------------------------------ wrapper -------------------------------------
def pack_decoder_params(layer_params, cfg):
    """Stack per-layer params (leading layer axis) and pack small vectors."""
    D = cfg.encoder_dim
    d_hid = cfg.encoder_conv1d_filter_size
    # pad packed vector rows to a full 128-lane vreg (lane-dense DMA / slices)
    VW = ((max(3 * D, d_hid, D) + 127) // 128) * 128

    def padv(v):  # (1, n) -> (1, VW)
        return jnp.pad(v, ((0, 0), (0, VW - v.shape[1])))

    wqkv = jnp.stack([jnp.concatenate([p["wq_w"], p["wk_w"], p["wv_w"]], axis=1)
                      for p in layer_params])                        # (L, D, 3D)
    fcw = jnp.stack([p["fc_w"] for p in layer_params])               # (L, H*dv, D)
    conv1 = jnp.stack([p["conv1_w"] for p in layer_params])          # (L, k1, D, d_hid)
    conv2 = jnp.stack([p["conv2_w"] for p in layer_params])          # (L, d_hid, D)
    vec = jnp.stack([jnp.concatenate(
        [padv(jnp.concatenate([p["wq_b"], p["wk_b"], p["wv_b"]], axis=1)),
         padv(p["fc_b"]), padv(p["ln1_g"]), padv(p["ln1_b"]),
         padv(p["conv1_b"]), padv(p["conv2_b"]),
         padv(p["ln2_g"]), padv(p["ln2_b"])], axis=0)
        for p in layer_params])                                      # (L, 8, 128)
    return wqkv, fcw, conv1, conv2, vec


def decoder_forward(enc_seq, enc_pos, pos_emb_table, layer_params, cfg):
    B, S, D = enc_seq.shape
    BS = B * S
    k1, _ = cfg.fft_conv1d_kernel
    pad1, _ = cfg.fft_conv1d_padding
    assert 2 * pad1 == k1 - 1, "conv padding must preserve sequence length"

    # masks + positional embedding gather stay in plain JAX (cheap glue);
    # all reshapes to the flattened (B*S, .) layout happen out here (free).
    nonpad_tok = (enc_pos != cfg.PAD).astype(jnp.float32)            # (B, S)
    nonpad = nonpad_tok.reshape(BS, 1)                               # token not pad
    keynp = nonpad_tok.reshape(1, BS)                                # key not pad
    bids = jnp.arange(BS) // S
    attn_bias = jnp.where(bids[:, None] == bids[None, :],
                          0.0, -1e30).astype(jnp.float32)            # (BS, BS)
    sidx = jnp.arange(BS) % S
    offs = jnp.arange(k1) - pad1
    tapmask = (((sidx[None, :] + offs[:, None]) >= 0) &
               ((sidx[None, :] + offs[:, None]) < S)
               ).astype(jnp.float32)[:, :, None]                     # (k1, BS, 1)

    x = (enc_seq + pos_emb_table[enc_pos]).astype(jnp.float32).reshape(BS, D)

    wqkv, fcw, conv1, conv2, vec = pack_decoder_params(layer_params, cfg)

    kernel = functools.partial(
        decoder_stack_kernel,
        n_head=cfg.encoder_head,
        d_k=D // cfg.encoder_head,
        d_v=D // cfg.encoder_head,
        k1=k1, pad1=pad1)

    # Single invocation: whole batch + all layers fused; everything in VMEM
    # (~0.2 MiB at these sizes).  At production sizes (S~1k, D>=256) one would
    # add a "parallel" grid axis over S tiles (>= 2 for v7x's two TensorCores)
    # and set vmem_limit_bytes explicitly against v7x's 64 MiB.
    vmem = pl.BlockSpec(memory_space=pltpu.MemorySpace.VMEM)
    out = pl.pallas_call(
        kernel,
        out_shape=jax.ShapeDtypeStruct((BS, D), jnp.float32),
        in_specs=[vmem] * 10,
        out_specs=vmem,
    )(x, attn_bias, keynp, nonpad, tapmask, wqkv, fcw, conv1, conv2, vec)
    return out.reshape(B, S, D).astype(enc_seq.dtype)


# ------------------------ pure-JAX reference (validation) -------------------
def decoder_reference(enc_seq, enc_pos, pos_emb_table, layer_params, cfg, eps=1e-5):
    B, S, D = enc_seq.shape
    H = cfg.encoder_head
    dk = D // H
    k1, _ = cfg.fft_conv1d_kernel
    pad1, _ = cfg.fft_conv1d_padding
    nonpad = (enc_pos != cfg.PAD).astype(jnp.float32)[:, :, None]    # (B, S, 1)
    keypad = (enc_pos == cfg.PAD)[:, None, None, :]                  # (B, 1, 1, S)

    def ln(v, g, b):
        mu = v.mean(-1, keepdims=True)
        var = ((v - mu) ** 2).mean(-1, keepdims=True)
        return (v - mu) * jax.lax.rsqrt(var + eps) * g + b

    h = (enc_seq + pos_emb_table[enc_pos]).astype(jnp.float32)
    for p in layer_params:
        q = (h @ p["wq_w"] + p["wq_b"]).reshape(B, S, H, dk).transpose(0, 2, 1, 3)
        k = (h @ p["wk_w"] + p["wk_b"]).reshape(B, S, H, dk).transpose(0, 2, 1, 3)
        v = (h @ p["wv_w"] + p["wv_b"]).reshape(B, S, H, dk).transpose(0, 2, 1, 3)
        s = jnp.einsum("bhqd,bhkd->bhqk", q, k) / (dk ** 0.5)
        attn = jax.nn.softmax(s, axis=-1)
        attn = jnp.where(keypad, 0.0, attn)
        attn = attn / (attn.sum(-1, keepdims=True) + 1e-8)
        ctx = jnp.einsum("bhqk,bhkd->bhqd", attn, v)
        ctx = ctx.transpose(0, 2, 1, 3).reshape(B, S, H * dk)
        mha = ctx @ p["fc_w"] + p["fc_b"]
        y = ln(mha + h, p["ln1_g"], p["ln1_b"]) * nonpad
        ypad = jnp.pad(y, ((0, 0), (pad1, pad1), (0, 0)))
        h1 = sum(ypad[:, j:j + S, :] @ p["conv1_w"][j] for j in range(k1))
        h1 = jax.nn.relu(h1 + p["conv1_b"])
        ffn = h1 @ p["conv2_w"] + p["conv2_b"]
        h = ln(ffn + y, p["ln2_g"], p["ln2_b"]) * nonpad
    return h


# ----------------------------- parameter init -------------------------------
def init_layer_params(key, cfg):
    D = cfg.encoder_dim
    H = cfg.encoder_head
    dk = D // H
    d_hid = cfg.encoder_conv1d_filter_size
    k1, _ = cfg.fft_conv1d_kernel
    keys = jax.random.split(key, 8)
    p = {}
    # Linear weights stored as (in, out) so the kernel does x @ W
    p["wq_w"] = 0.1 * jax.random.normal(keys[0], (D, H * dk), jnp.float32)
    p["wq_b"] = jnp.zeros((1, H * dk), jnp.float32)
    p["wk_w"] = 0.1 * jax.random.normal(keys[1], (D, H * dk), jnp.float32)
    p["wk_b"] = jnp.zeros((1, H * dk), jnp.float32)
    p["wv_w"] = 0.1 * jax.random.normal(keys[2], (D, H * dk), jnp.float32)
    p["wv_b"] = jnp.zeros((1, H * dk), jnp.float32)
    p["fc_w"] = 0.1 * jax.random.normal(keys[3], (H * dk, D), jnp.float32)
    p["fc_b"] = jnp.zeros((1, D), jnp.float32)
    p["ln1_g"] = jnp.ones((1, D), jnp.float32)
    p["ln1_b"] = jnp.zeros((1, D), jnp.float32)
    # Conv1d weights: PyTorch (out, in, k) -> stored (k, in, out)
    p["conv1_w"] = 0.1 * jax.random.normal(keys[4], (k1, D, d_hid), jnp.float32)
    p["conv1_b"] = jnp.zeros((1, d_hid), jnp.float32)
    p["conv2_w"] = 0.1 * jax.random.normal(keys[5], (d_hid, D), jnp.float32)
    p["conv2_b"] = jnp.zeros((1, D), jnp.float32)
    p["ln2_g"] = jnp.ones((1, D), jnp.float32)
    p["ln2_b"] = jnp.zeros((1, D), jnp.float32)
    return p


# --------------------------------- main --------------------------------------
if __name__ == "__main__":
    cfg = Config()
    B, S, D = 2, 8, cfg.encoder_dim

    key = jax.random.PRNGKey(0)
    k_emb, k_seq, *k_layers = jax.random.split(key, 2 + cfg.decoder_n_layer)

    # position embedding table (n_position, D); padding_idx=PAD row is zero
    n_position = cfg.max_seq_len + 1
    pos_emb_table = jax.random.normal(k_emb, (n_position, D), jnp.float32)
    pos_emb_table = pos_emb_table.at[cfg.PAD].set(0.0)

    layer_params = [init_layer_params(k, cfg) for k in k_layers]

    # inputs: enc_seq (B, S, D), enc_pos (B, S) positions with PAD=0 padding
    enc_seq = jax.random.normal(k_seq, (B, S, D), jnp.float32)
    enc_pos = jnp.array([[1, 2, 3, 4, 5, 6, 7, 8],
                         [1, 2, 3, 4, 5, 6, 0, 0]], dtype=jnp.int32)

    out = decoder_forward(enc_seq, enc_pos, pos_emb_table, layer_params, cfg)
    jax.block_until_ready(out)
    assert out.shape == (B, S, D)

    # parity check against a pure-JAX reference (loose tolerance: the kernel
    # uses an approximate EUP reciprocal in the softmax renormalization)
    with jax.default_matmul_precision("float32"):
        ref = decoder_reference(enc_seq, enc_pos, pos_emb_table, layer_params, cfg)
    assert jnp.allclose(out, ref, atol=2e-2, rtol=2e-2), \
        float(jnp.max(jnp.abs(out - ref)))
    print("KERNEL_OK")
</pallas_src>

<mosaic_0001>
module attributes {stable_mosaic.version = 11 : i64} {
  func.func @decoder_stack_kernel(%arg0: memref<16x32xf32, #tpu.memory_space<vmem>>, %arg1: memref<16x16xf32, #tpu.memory_space<vmem>>, %arg2: memref<1x16xf32, #tpu.memory_space<vmem>>, %arg3: memref<16x1xf32, #tpu.memory_space<vmem>>, %arg4: memref<9x16x1xf32, #tpu.memory_space<vmem>>, %arg5: memref<2x32x96xf32, #tpu.memory_space<vmem>>, %arg6: memref<2x32x32xf32, #tpu.memory_space<vmem>>, %arg7: memref<2x9x32x64xf32, #tpu.memory_space<vmem>>, %arg8: memref<2x64x32xf32, #tpu.memory_space<vmem>>, %arg9: memref<2x8x128xf32, #tpu.memory_space<vmem>>, %arg10: memref<16x32xf32, #tpu.memory_space<vmem>>) attributes {dimension_semantics = [], scalar_prefetch = 0 : i64, scratch_operands = 0 : i64, tpu.core_type = #tpu.core_type<tc>} {
    %c0 = arith.constant 0 : index
    %c0_0 = arith.constant 0 : index
    %0 = vector.load %arg1[%c0, %c0_0] : memref<16x16xf32, #tpu.memory_space<vmem>>, vector<16x16xf32>
    %c0_1 = arith.constant 0 : index
    %c0_2 = arith.constant 0 : index
    %1 = vector.load %arg2[%c0_1, %c0_2] : memref<1x16xf32, #tpu.memory_space<vmem>>, vector<1x16xf32>
    %c0_3 = arith.constant 0 : index
    %c0_4 = arith.constant 0 : index
    %2 = vector.load %arg3[%c0_3, %c0_4] : memref<16x1xf32, #tpu.memory_space<vmem>>, vector<16x1xf32>
    %c0_5 = arith.constant 0 : index
    %c0_6 = arith.constant 0 : index
    %c0_7 = arith.constant 0 : index
    %3 = vector.load %arg4[%c0_5, %c0_6, %c0_7] : memref<9x16x1xf32, #tpu.memory_space<vmem>>, vector<9x16x1xf32>
    %c0_8 = arith.constant 0 : index
    %c0_9 = arith.constant 0 : index
    %4 = vector.load %arg0[%c0_8, %c0_9] : memref<16x32xf32, #tpu.memory_space<vmem>>, vector<16x32xf32>
    %c0_10 = arith.constant 0 : index
    %c0_11 = arith.constant 0 : index
    %c0_12 = arith.constant 0 : index
    %5 = vector.load %arg5[%c0_10, %c0_11, %c0_12] : memref<2x32x96xf32, #tpu.memory_space<vmem>>, vector<1x32x96xf32>
    %6 = vector.shape_cast %5 : vector<1x32x96xf32> to vector<32x96xf32>
    %c0_13 = arith.constant 0 : index
    %c0_14 = arith.constant 0 : index
    %c0_15 = arith.constant 0 : index
    %7 = vector.load %arg6[%c0_13, %c0_14, %c0_15] : memref<2x32x32xf32, #tpu.memory_space<vmem>>, vector<1x32x32xf32>
    %8 = vector.shape_cast %7 : vector<1x32x32xf32> to vector<32x32xf32>
    %c0_16 = arith.constant 0 : index
    %c0_17 = arith.constant 0 : index
    %c0_18 = arith.constant 0 : index
    %9 = vector.load %arg8[%c0_16, %c0_17, %c0_18] : memref<2x64x32xf32, #tpu.memory_space<vmem>>, vector<1x64x32xf32>
    %10 = vector.shape_cast %9 : vector<1x64x32xf32> to vector<64x32xf32>
    %c0_19 = arith.constant 0 : index
    %c0_20 = arith.constant 0 : index
    %c0_21 = arith.constant 0 : index
    %11 = vector.load %arg9[%c0_19, %c0_20, %c0_21] : memref<2x8x128xf32, #tpu.memory_space<vmem>>, vector<1x8x128xf32>
    %12 = vector.shape_cast %11 : vector<1x8x128xf32> to vector<8x128xf32>
    %13 = vector.extract_strided_slice %12 {offsets = [0, 0], sizes = [1, 96], strides = [1, 1]} : vector<8x128xf32> to vector<1x96xf32>
    %14 = vector.extract_strided_slice %12 {offsets = [1, 0], sizes = [1, 32], strides = [1, 1]} : vector<8x128xf32> to vector<1x32xf32>
    %15 = vector.extract_strided_slice %12 {offsets = [2, 0], sizes = [1, 32], strides = [1, 1]} : vector<8x128xf32> to vector<1x32xf32>
    %16 = vector.extract_strided_slice %12 {offsets = [3, 0], sizes = [1, 32], strides = [1, 1]} : vector<8x128xf32> to vector<1x32xf32>
    %17 = vector.extract_strided_slice %12 {offsets = [4, 0], sizes = [1, 64], strides = [1, 1]} : vector<8x128xf32> to vector<1x64xf32>
    %18 = vector.extract_strided_slice %12 {offsets = [5, 0], sizes = [1, 32], strides = [1, 1]} : vector<8x128xf32> to vector<1x32xf32>
    %19 = vector.extract_strided_slice %12 {offsets = [6, 0], sizes = [1, 32], strides = [1, 1]} : vector<8x128xf32> to vector<1x32xf32>
    %20 = vector.extract_strided_slice %12 {offsets = [7, 0], sizes = [1, 32], strides = [1, 1]} : vector<8x128xf32> to vector<1x32xf32>
    %cst = arith.constant dense<0.000000e+00> : vector<16x96xf32>
    %21 = tpu.matmul %4, %6, %cst {dimension_numbers = #tpu.dot_dimension_numbers<[1], [0], [0], [1], [0, 0, 1, 1], [], []>} : vector<16x32xf32>, vector<32x96xf32>, vector<16x96xf32> -> vector<16x96xf32>
    %22 = vector.broadcast %13 : vector<1x96xf32> to vector<16x96xf32>
    %23 = arith.addf %21, %22 : vector<16x96xf32>
    %24 = vector.extract_strided_slice %23 {offsets = [0, 0], sizes = [16, 16], strides = [1, 1]} : vector<16x96xf32> to vector<16x16xf32>
    %25 = vector.extract_strided_slice %23 {offsets = [0, 32], sizes = [16, 16], strides = [1, 1]} : vector<16x96xf32> to vector<16x16xf32>
    %26 = vector.extract_strided_slice %23 {offsets = [0, 64], sizes = [16, 16], strides = [1, 1]} : vector<16x96xf32> to vector<16x16xf32>
    %cst_22 = arith.constant dense<0.000000e+00> : vector<16x16xf32>
    %27 = tpu.matmul %24, %25, %cst_22 {dimension_numbers = #tpu.dot_dimension_numbers<[1], [1], [0], [0], [0, 0, 1, 0], [], []>} : vector<16x16xf32>, vector<16x16xf32>, vector<16x16xf32> -> vector<16x16xf32>
    %cst_23 = arith.constant 2.500000e-01 : f32
    %28 = vector.broadcast %cst_23 : f32 to vector<16x16xf32>
    %29 = arith.mulf %27, %28 : vector<16x16xf32>
    %30 = arith.addf %29, %0 : vector<16x16xf32>
    %cst_24 = arith.constant dense<0xFF800000> : vector<16xf32>
    %31 = vector.multi_reduction <maximumf>, %30, %cst_24 [1] : vector<16x16xf32> to vector<16xf32>
    %32 = vector.shape_cast %31 : vector<16xf32> to vector<16x1xf32>
    %33 = vector.broadcast %32 : vector<16x1xf32> to vector<16x16xf32>
    %34 = arith.subf %30, %33 : vector<16x16xf32>
    %35 = math.exp %34 : vector<16x16xf32>
    %cst_25 = arith.constant dense<0.000000e+00> : vector<16xf32>
    %36 = vector.multi_reduction <add>, %35, %cst_25 [1] : vector<16x16xf32> to vector<16xf32>
    %37 = vector.shape_cast %36 : vector<16xf32> to vector<16x1xf32>
    %38 = vector.broadcast %1 : vector<1x16xf32> to vector<16x16xf32>
    %39 = arith.mulf %35, %38 : vector<16x16xf32>
    %cst_26 = arith.constant dense<0.000000e+00> : vector<16xf32>
    %40 = vector.multi_reduction <add>, %39, %cst_26 [1] : vector<16x16xf32> to vector<16xf32>
    %41 = vector.shape_cast %40 : vector<16xf32> to vector<16x1xf32>
    %cst_27 = arith.constant 9.99999993E-9 : f32
    %42 = vector.broadcast %cst_27 : f32 to vector<16x1xf32>
    %43 = arith.mulf %42, %37 : vector<16x1xf32>
    %44 = arith.addf %41, %43 : vector<16x1xf32>
    %45 = tpu.reciprocal %44 {approx = true} : vector<16x1xf32> -> vector<16x1xf32>
    %46 = vector.broadcast %45 : vector<16x1xf32> to vector<16x16xf32>
    %47 = arith.mulf %39, %46 : vector<16x16xf32>
    %cst_28 = arith.constant dense<0.000000e+00> : vector<16x16xf32>
    %48 = tpu.matmul %47, %26, %cst_28 {dimension_numbers = #tpu.dot_dimension_numbers<[1], [0], [0], [1], [0, 0, 1, 1], [], []>} : vector<16x16xf32>, vector<16x16xf32>, vector<16x16xf32> -> vector<16x16xf32>
    %49 = vector.extract_strided_slice %8 {offsets = [0, 0], sizes = [16, 32], strides = [1, 1]} : vector<32x32xf32> to vector<16x32xf32>
    %cst_29 = arith.constant dense<0.000000e+00> : vector<16x32xf32>
    %50 = tpu.matmul %48, %49, %cst_29 {dimension_numbers = #tpu.dot_dimension_numbers<[1], [0], [0], [1], [0, 0, 1, 1], [], []>} : vector<16x16xf32>, vector<16x32xf32>, vector<16x32xf32> -> vector<16x32xf32>
    %51 = vector.extract_strided_slice %23 {offsets = [0, 16], sizes = [16, 16], strides = [1, 1]} : vector<16x96xf32> to vector<16x16xf32>
    %52 = vector.extract_strided_slice %23 {offsets = [0, 48], sizes = [16, 16], strides = [1, 1]} : vector<16x96xf32> to vector<16x16xf32>
    %53 = vector.extract_strided_slice %23 {offsets = [0, 80], sizes = [16, 16], strides = [1, 1]} : vector<16x96xf32> to vector<16x16xf32>
    %cst_30 = arith.constant dense<0.000000e+00> : vector<16x16xf32>
    %54 = tpu.matmul %51, %52, %cst_30 {dimension_numbers = #tpu.dot_dimension_numbers<[1], [1], [0], [0], [0, 0, 1, 0], [], []>} : vector<16x16xf32>, vector<16x16xf32>, vector<16x16xf32> -> vector<16x16xf32>
    %cst_31 = arith.constant 2.500000e-01 : f32
    %55 = vector.broadcast %cst_31 : f32 to vector<16x16xf32>
    %56 = arith.mulf %54, %55 : vector<16x16xf32>
    %57 = arith.addf %56, %0 : vector<16x16xf32>
    %cst_32 = arith.constant dense<0xFF800000> : vector<16xf32>
    %58 = vector.multi_reduction <maximumf>, %57, %cst_32 [1] : vector<16x16xf32> to vector<16xf32>
    %59 = vector.shape_cast %58 : vector<16xf32> to vector<16x1xf32>
    %60 = vector.broadcast %59 : vector<16x1xf32> to vector<16x16xf32>
    %61 = arith.subf %57, %60 : vector<16x16xf32>
    %62 = math.exp %61 : vector<16x16xf32>
    %cst_33 = arith.constant dense<0.000000e+00> : vector<16xf32>
    %63 = vector.multi_reduction <add>, %62, %cst_33 [1] : vector<16x16xf32> to vector<16xf32>
    %64 = vector.shape_cast %63 : vector<16xf32> to vector<16x1xf32>
    %65 = vector.broadcast %1 : vector<1x16xf32> to vector<16x16xf32>
    %66 = arith.mulf %62, %65 : vector<16x16xf32>
    %cst_34 = arith.constant dense<0.000000e+00> : vector<16xf32>
    %67 = vector.multi_reduction <add>, %66, %cst_34 [1] : vector<16x16xf32> to vector<16xf32>
    %68 = vector.shape_cast %67 : vector<16xf32> to vector<16x1xf32>
    %cst_35 = arith.constant 9.99999993E-9 : f32
    %69 = vector.broadcast %cst_35 : f32 to vector<16x1xf32>
    %70 = arith.mulf %69, %64 : vector<16x1xf32>
    %71 = arith.addf %68, %70 : vector<16x1xf32>
    %72 = tpu.reciprocal %71 {approx = true} : vector<16x1xf32> -> vector<16x1xf32>
    %73 = vector.broadcast %72 : vector<16x1xf32> to vector<16x16xf32>
    %74 = arith.mulf %66, %73 : vector<16x16xf32>
    %cst_36 = arith.constant dense<0.000000e+00> : vector<16x16xf32>
    %75 = tpu.matmul %74, %53, %cst_36 {dimension_numbers = #tpu.dot_dimension_numbers<[1], [0], [0], [1], [0, 0, 1, 1], [], []>} : vector<16x16xf32>, vector<16x16xf32>, vector<16x16xf32> -> vector<16x16xf32>
    %76 = vector.extract_strided_slice %8 {offsets = [16, 0], sizes = [16, 32], strides = [1, 1]} : vector<32x32xf32> to vector<16x32xf32>
    %cst_37 = arith.constant dense<0.000000e+00> : vector<16x32xf32>
    %77 = tpu.matmul %75, %76, %cst_37 {dimension_numbers = #tpu.dot_dimension_numbers<[1], [0], [0], [1], [0, 0, 1, 1], [], []>} : vector<16x16xf32>, vector<16x32xf32>, vector<16x32xf32> -> vector<16x32xf32>
    %78 = arith.addf %50, %77 : vector<16x32xf32>
    %79 = vector.broadcast %14 : vector<1x32xf32> to vector<16x32xf32>
    %80 = arith.addf %78, %79 : vector<16x32xf32>
    %81 = arith.addf %80, %4 : vector<16x32xf32>
    %cst_38 = arith.constant dense<0.000000e+00> : vector<16xf32>
    %82 = vector.multi_reduction <add>, %81, %cst_38 [1] : vector<16x32xf32> to vector<16xf32>
    %83 = vector.shape_cast %82 : vector<16xf32> to vector<16x1xf32>
    %cst_39 = arith.constant 3.200000e+01 : f32
    %84 = vector.broadcast %cst_39 : f32 to vector<16x1xf32>
    %85 = arith.divf %83, %84 : vector<16x1xf32>
    %86 = vector.broadcast %85 : vector<16x1xf32> to vector<16x32xf32>
    %87 = arith.subf %81, %86 : vector<16x32xf32>
    %88 = arith.mulf %87, %87 : vector<16x32xf32>
    %cst_40 = arith.constant dense<0.000000e+00> : vector<16xf32>
    %89 = vector.multi_reduction <add>, %88, %cst_40 [1] : vector<16x32xf32> to vector<16xf32>
    %90 = vector.shape_cast %89 : vector<16xf32> to vector<16x1xf32>
    %cst_41 = arith.constant 3.200000e+01 : f32
    %91 = vector.broadcast %cst_41 : f32 to vector<16x1xf32>
    %92 = arith.divf %90, %91 : vector<16x1xf32>
    %cst_42 = arith.constant 9.99999974E-6 : f32
    %93 = vector.broadcast %cst_42 : f32 to vector<16x1xf32>
    %94 = arith.addf %92, %93 : vector<16x1xf32>
    %95 = math.rsqrt %94 : vector<16x1xf32>
    %96 = vector.broadcast %95 : vector<16x1xf32> to vector<16x32xf32>
    %97 = arith.mulf %87, %96 : vector<16x32xf32>
    %98 = vector.broadcast %15 : vector<1x32xf32> to vector<16x32xf32>
    %99 = arith.mulf %97, %98 : vector<16x32xf32>
    %100 = vector.broadcast %16 : vector<1x32xf32> to vector<16x32xf32>
    %101 = arith.addf %99, %100 : vector<16x32xf32>
    %102 = vector.broadcast %2 : vector<16x1xf32> to vector<16x32xf32>
    %103 = arith.mulf %101, %102 : vector<16x32xf32>
    %c4_i32 = arith.constant 4 : i32
    %104 = tpu.dynamic_rotate %103 by %c4_i32 dim 0 : vector<16x32xf32>, i32 -> vector<16x32xf32>
    %105 = vector.extract_strided_slice %3 {offsets = [0, 0, 0], sizes = [1, 16, 1], strides = [1, 1, 1]} : vector<9x16x1xf32> to vector<1x16x1xf32>
    %106 = vector.shape_cast %105 : vector<1x16x1xf32> to vector<16x1xf32>
    %107 = vector.broadcast %106 : vector<16x1xf32> to vector<16x32xf32>
    %108 = arith.mulf %104, %107 : vector<16x32xf32>
    %c0_43 = arith.constant 0 : index
    %c0_44 = arith.constant 0 : index
    %c0_45 = arith.constant 0 : index
    %c0_46 = arith.constant 0 : index
    %109 = vector.load %arg7[%c0_43, %c0_44, %c0_45, %c0_46] : memref<2x9x32x64xf32, #tpu.memory_space<vmem>>, vector<1x1x32x64xf32>
    %110 = vector.shape_cast %109 : vector<1x1x32x64xf32> to vector<32x64xf32>
    %cst_47 = arith.constant dense<0.000000e+00> : vector<16x64xf32>
    %111 = tpu.matmul %108, %110, %cst_47 {dimension_numbers = #tpu.dot_dimension_numbers<[1], [0], [0], [1], [0, 0, 1, 1], [], []>} : vector<16x32xf32>, vector<32x64xf32>, vector<16x64xf32> -> vector<16x64xf32>
    %c3_i32 = arith.constant 3 : i32
    %112 = tpu.dynamic_rotate %103 by %c3_i32 dim 0 : vector<16x32xf32>, i32 -> vector<16x32xf32>
    %113 = vector.extract_strided_slice %3 {offsets = [1, 0, 0], sizes = [1, 16, 1], strides = [1, 1, 1]} : vector<9x16x1xf32> to vector<1x16x1xf32>
    %114 = vector.shape_cast %113 : vector<1x16x1xf32> to vector<16x1xf32>
    %115 = vector.broadcast %114 : vector<16x1xf32> to vector<16x32xf32>
    %116 = arith.mulf %112, %115 : vector<16x32xf32>
    %c0_48 = arith.constant 0 : index
    %c1 = arith.constant 1 : index
    %c0_49 = arith.constant 0 : index
    %c0_50 = arith.constant 0 : index
    %117 = vector.load %arg7[%c0_48, %c1, %c0_49, %c0_50] : memref<2x9x32x64xf32, #tpu.memory_space<vmem>>, vector<1x1x32x64xf32>
    %118 = vector.shape_cast %117 : vector<1x1x32x64xf32> to vector<32x64xf32>
    %cst_51 = arith.constant dense<0.000000e+00> : vector<16x64xf32>
    %119 = tpu.matmul %116, %118, %cst_51 {dimension_numbers = #tpu.dot_dimension_numbers<[1], [0], [0], [1], [0, 0, 1, 1], [], []>} : vector<16x32xf32>, vector<32x64xf32>, vector<16x64xf32> -> vector<16x64xf32>
    %120 = arith.addf %111, %119 : vector<16x64xf32>
    %c2_i32 = arith.constant 2 : i32
    %121 = tpu.dynamic_rotate %103 by %c2_i32 dim 0 : vector<16x32xf32>, i32 -> vector<16x32xf32>
    %122 = vector.extract_strided_slice %3 {offsets = [2, 0, 0], sizes = [1, 16, 1], strides = [1, 1, 1]} : vector<9x16x1xf32> to vector<1x16x1xf32>
    %123 = vector.shape_cast %122 : vector<1x16x1xf32> to vector<16x1xf32>
    %124 = vector.broadcast %123 : vector<16x1xf32> to vector<16x32xf32>
    %125 = arith.mulf %121, %124 : vector<16x32xf32>
    %c0_52 = arith.constant 0 : index
    %c2 = arith.constant 2 : index
    %c0_53 = arith.constant 0 : index
    %c0_54 = arith.constant 0 : index
    %126 = vector.load %arg7[%c0_52, %c2, %c0_53, %c0_54] : memref<2x9x32x64xf32, #tpu.memory_space<vmem>>, vector<1x1x32x64xf32>
    %127 = vector.shape_cast %126 : vector<1x1x32x64xf32> to vector<32x64xf32>
    %cst_55 = arith.constant dense<0.000000e+00> : vector<16x64xf32>
    %128 = tpu.matmul %125, %127, %cst_55 {dimension_numbers = #tpu.dot_dimension_numbers<[1], [0], [0], [1], [0, 0, 1, 1], [], []>} : vector<16x32xf32>, vector<32x64xf32>, vector<16x64xf32> -> vector<16x64xf32>
    %129 = arith.addf %120, %128 : vector<16x64xf32>
    %c1_i32 = arith.constant 1 : i32
    %130 = tpu.dynamic_rotate %103 by %c1_i32 dim 0 : vector<16x32xf32>, i32 -> vector<16x32xf32>
    %131 = vector.extract_strided_slice %3 {offsets = [3, 0, 0], sizes = [1, 16, 1], strides = [1, 1, 1]} : vector<9x16x1xf32> to vector<1x16x1xf32>
    %132 = vector.shape_cast %131 : vector<1x16x1xf32> to vector<16x1xf32>
    %133 = vector.broadcast %132 : vector<16x1xf32> to vector<16x32xf32>
    %134 = arith.mulf %130, %133 : vector<16x32xf32>
    %c0_56 = arith.constant 0 : index
    %c3 = arith.constant 3 : index
    %c0_57 = arith.constant 0 : index
    %c0_58 = arith.constant 0 : index
    %135 = vector.load %arg7[%c0_56, %c3, %c0_57, %c0_58] : memref<2x9x32x64xf32, #tpu.memory_space<vmem>>, vector<1x1x32x64xf32>
    %136 = vector.shape_cast %135 : vector<1x1x32x64xf32> to vector<32x64xf32>
    %cst_59 = arith.constant dense<0.000000e+00> : vector<16x64xf32>
    %137 = tpu.matmul %134, %136, %cst_59 {dimension_numbers = #tpu.dot_dimension_numbers<[1], [0], [0], [1], [0, 0, 1, 1], [], []>} : vector<16x32xf32>, vector<32x64xf32>, vector<16x64xf32> -> vector<16x64xf32>
    %138 = arith.addf %129, %137 : vector<16x64xf32>
    %139 = vector.extract_strided_slice %3 {offsets = [4, 0, 0], sizes = [1, 16, 1], strides = [1, 1, 1]} : vector<9x16x1xf32> to vector<1x16x1xf32>
    %140 = vector.shape_cast %139 : vector<1x16x1xf32> to vector<16x1xf32>
    %141 = vector.broadcast %140 : vector<16x1xf32> to vector<16x32xf32>
    %142 = arith.mulf %103, %141 : vector<16x32xf32>
    %c0_60 = arith.constant 0 : index
    %c4 = arith.constant 4 : index
    %c0_61 = arith.constant 0 : index
    %c0_62 = arith.constant 0 : index
    %143 = vector.load %arg7[%c0_60, %c4, %c0_61, %c0_62] : memref<2x9x32x64xf32, #tpu.memory_space<vmem>>, vector<1x1x32x64xf32>
    %144 = vector.shape_cast %143 : vector<1x1x32x64xf32> to vector<32x64xf32>
    %cst_63 = arith.constant dense<0.000000e+00> : vector<16x64xf32>
    %145 = tpu.matmul %142, %144, %cst_63 {dimension_numbers = #tpu.dot_dimension_numbers<[1], [0], [0], [1], [0, 0, 1, 1], [], []>} : vector<16x32xf32>, vector<32x64xf32>, vector<16x64xf32> -> vector<16x64xf32>
    %146 = arith.addf %138, %145 : vector<16x64xf32>
    %c15_i32 = arith.constant 15 : i32
    %147 = tpu.dynamic_rotate %103 by %c15_i32 dim 0 : vector<16x32xf32>, i32 -> vector<16x32xf32>
    %148 = vector.extract_strided_slice %3 {offsets = [5, 0, 0], sizes = [1, 16, 1], strides = [1, 1, 1]} : vector<9x16x1xf32> to vector<1x16x1xf32>
    %149 = vector.shape_cast %148 : vector<1x16x1xf32> to vector<16x1xf32>
    %150 = vector.broadcast %149 : vector<16x1xf32> to vector<16x32xf32>
    %151 = arith.mulf %147, %150 : vector<16x32xf32>
    %c0_64 = arith.constant 0 : index
    %c5 = arith.constant 5 : index
    %c0_65 = arith.constant 0 : index
    %c0_66 = arith.constant 0 : index
    %152 = vector.load %arg7[%c0_64, %c5, %c0_65, %c0_66] : memref<2x9x32x64xf32, #tpu.memory_space<vmem>>, vector<1x1x32x64xf32>
    %153 = vector.shape_cast %152 : vector<1x1x32x64xf32> to vector<32x64xf32>
    %cst_67 = arith.constant dense<0.000000e+00> : vector<16x64xf32>
    %154 = tpu.matmul %151, %153, %cst_67 {dimension_numbers = #tpu.dot_dimension_numbers<[1], [0], [0], [1], [0, 0, 1, 1], [], []>} : vector<16x32xf32>, vector<32x64xf32>, vector<16x64xf32> -> vector<16x64xf32>
    %155 = arith.addf %146, %154 : vector<16x64xf32>
    %c14_i32 = arith.constant 14 : i32
    %156 = tpu.dynamic_rotate %103 by %c14_i32 dim 0 : vector<16x32xf32>, i32 -> vector<16x32xf32>
    %157 = vector.extract_strided_slice %3 {offsets = [6, 0, 0], sizes = [1, 16, 1], strides = [1, 1, 1]} : vector<9x16x1xf32> to vector<1x16x1xf32>
    %158 = vector.shape_cast %157 : vector<1x16x1xf32> to vector<16x1xf32>
    %159 = vector.broadcast %158 : vector<16x1xf32> to vector<16x32xf32>
    %160 = arith.mulf %156, %159 : vector<16x32xf32>
    %c0_68 = arith.constant 0 : index
    %c6 = arith.constant 6 : index
    %c0_69 = arith.constant 0 : index
    %c0_70 = arith.constant 0 : index
    %161 = vector.load %arg7[%c0_68, %c6, %c0_69, %c0_70] : memref<2x9x32x64xf32, #tpu.memory_space<vmem>>, vector<1x1x32x64xf32>
    %162 = vector.shape_cast %161 : vector<1x1x32x64xf32> to vector<32x64xf32>
    %cst_71 = arith.constant dense<0.000000e+00> : vector<16x64xf32>
    %163 = tpu.matmul %160, %162, %cst_71 {dimension_numbers = #tpu.dot_dimension_numbers<[1], [0], [0], [1], [0, 0, 1, 1], [], []>} : vector<16x32xf32>, vector<32x64xf32>, vector<16x64xf32> -> vector<16x64xf32>
    %164 = arith.addf %155, %163 : vector<16x64xf32>
    %c13_i32 = arith.constant 13 : i32
    %165 = tpu.dynamic_rotate %103 by %c13_i32 dim 0 : vector<16x32xf32>, i32 -> vector<16x32xf32>
    %166 = vector.extract_strided_slice %3 {offsets = [7, 0, 0], sizes = [1, 16, 1], strides = [1, 1, 1]} : vector<9x16x1xf32> to vector<1x16x1xf32>
    %167 = vector.shape_cast %166 : vector<1x16x1xf32> to vector<16x1xf32>
    %168 = vector.broadcast %167 : vector<16x1xf32> to vector<16x32xf32>
    %169 = arith.mulf %165, %168 : vector<16x32xf32>
    %c0_72 = arith.constant 0 : index
    %c7 = arith.constant 7 : index
    %c0_73 = arith.constant 0 : index
    %c0_74 = arith.constant 0 : index
    %170 = vector.load %arg7[%c0_72, %c7, %c0_73, %c0_74] : memref<2x9x32x64xf32, #tpu.memory_space<vmem>>, vector<1x1x32x64xf32>
    %171 = vector.shape_cast %170 : vector<1x1x32x64xf32> to vector<32x64xf32>
    %cst_75 = arith.constant dense<0.000000e+00> : vector<16x64xf32>
    %172 = tpu.matmul %169, %171, %cst_75 {dimension_numbers = #tpu.dot_dimension_numbers<[1], [0], [0], [1], [0, 0, 1, 1], [], []>} : vector<16x32xf32>, vector<32x64xf32>, vector<16x64xf32> -> vector<16x64xf32>
    %173 = arith.addf %164, %172 : vector<16x64xf32>
    %c12_i32 = arith.constant 12 : i32
    %174 = tpu.dynamic_rotate %103 by %c12_i32 dim 0 : vector<16x32xf32>, i32 -> vector<16x32xf32>
    %175 = vector.extract_strided_slice %3 {offsets = [8, 0, 0], sizes = [1, 16, 1], strides = [1, 1, 1]} : vector<9x16x1xf32> to vector<1x16x1xf32>
    %176 = vector.shape_cast %175 : vector<1x16x1xf32> to vector<16x1xf32>
    %177 = vector.broadcast %176 : vector<16x1xf32> to vector<16x32xf32>
    %178 = arith.mulf %174, %177 : vector<16x32xf32>
    %c0_76 = arith.constant 0 : index
    %c8 = arith.constant 8 : index
    %c0_77 = arith.constant 0 : index
    %c0_78 = arith.constant 0 : index
    %179 = vector.load %arg7[%c0_76, %c8, %c0_77, %c0_78] : memref<2x9x32x64xf32, #tpu.memory_space<vmem>>, vector<1x1x32x64xf32>
    %180 = vector.shape_cast %179 : vector<1x1x32x64xf32> to vector<32x64xf32>
    %cst_79 = arith.constant dense<0.000000e+00> : vector<16x64xf32>
    %181 = tpu.matmul %178, %180, %cst_79 {dimension_numbers = #tpu.dot_dimension_numbers<[1], [0], [0], [1], [0, 0, 1, 1], [], []>} : vector<16x32xf32>, vector<32x64xf32>, vector<16x64xf32> -> vector<16x64xf32>
    %182 = arith.addf %173, %181 : vector<16x64xf32>
    %183 = vector.broadcast %17 : vector<1x64xf32> to vector<16x64xf32>
    %184 = arith.addf %182, %183 : vector<16x64xf32>
    %cst_80 = arith.constant 0.000000e+00 : f32
    %185 = vector.broadcast %cst_80 : f32 to vector<16x64xf32>
    %186 = arith.maximumf %184, %185 : vector<16x64xf32>
    %cst_81 = arith.constant dense<0.000000e+00> : vector<16x32xf32>
    %187 = tpu.matmul %186, %10, %cst_81 {dimension_numbers = #tpu.dot_dimension_numbers<[1], [0], [0], [1], [0, 0, 1, 1], [], []>} : vector<16x64xf32>, vector<64x32xf32>, vector<16x32xf32> -> vector<16x32xf32>
    %188 = vector.broadcast %18 : vector<1x32xf32> to vector<16x32xf32>
    %189 = arith.addf %187, %188 : vector<16x32xf32>
    %190 = arith.addf %189, %103 : vector<16x32xf32>
    %cst_82 = arith.constant dense<0.000000e+00> : vector<16xf32>
    %191 = vector.multi_reduction <add>, %190, %cst_82 [1] : vector<16x32xf32> to vector<16xf32>
    %192 = vector.shape_cast %191 : vector<16xf32> to vector<16x1xf32>
    %cst_83 = arith.constant 3.200000e+01 : f32
    %193 = vector.broadcast %cst_83 : f32 to vector<16x1xf32>
    %194 = arith.divf %192, %193 : vector<16x1xf32>
    %195 = vector.broadcast %194 : vector<16x1xf32> to vector<16x32xf32>
    %196 = arith.subf %190, %195 : vector<16x32xf32>
    %197 = arith.mulf %196, %196 : vector<16x32xf32>
    %cst_84 = arith.constant dense<0.000000e+00> : vector<16xf32>
    %198 = vector.multi_reduction <add>, %197, %cst_84 [1] : vector<16x32xf32> to vector<16xf32>
    %199 = vector.shape_cast %198 : vector<16xf32> to vector<16x1xf32>
    %cst_85 = arith.constant 3.200000e+01 : f32
    %200 = vector.broadcast %cst_85 : f32 to vector<16x1xf32>
    %201 = arith.divf %199, %200 : vector<16x1xf32>
    %cst_86 = arith.constant 9.99999974E-6 : f32
    %202 = vector.broadcast %cst_86 : f32 to vector<16x1xf32>
    %203 = arith.addf %201, %202 : vector<16x1xf32>
    %204 = math.rsqrt %203 : vector<16x1xf32>
    %205 = vector.broadcast %204 : vector<16x1xf32> to vector<16x32xf32>
    %206 = arith.mulf %196, %205 : vector<16x32xf32>
    %207 = vector.broadcast %19 : vector<1x32xf32> to vector<16x32xf32>
    %208 = arith.mulf %206, %207 : vector<16x32xf32>
    %209 = vector.broadcast %20 : vector<1x32xf32> to vector<16x32xf32>
    %210 = arith.addf %208, %209 : vector<16x32xf32>
    %211 = vector.broadcast %2 : vector<16x1xf32> to vector<16x32xf32>
    %212 = arith.mulf %210, %211 : vector<16x32xf32>
    %c1_87 = arith.constant 1 : index
    %c0_88 = arith.constant 0 : index
    %c0_89 = arith.constant 0 : index
    %213 = vector.load %arg5[%c1_87, %c0_88, %c0_89] : memref<2x32x96xf32, #tpu.memory_space<vmem>>, vector<1x32x96xf32>
    %214 = vector.shape_cast %213 : vector<1x32x96xf32> to vector<32x96xf32>
    %c1_90 = arith.constant 1 : index
    %c0_91 = arith.constant 0 : index
    %c0_92 = arith.constant 0 : index
    %215 = vector.load %arg6[%c1_90, %c0_91, %c0_92] : memref<2x32x32xf32, #tpu.memory_space<vmem>>, vector<1x32x32xf32>
    %216 = vector.shape_cast %215 : vector<1x32x32xf32> to vector<32x32xf32>
    %c1_93 = arith.constant 1 : index
    %c0_94 = arith.constant 0 : index
    %c0_95 = arith.constant 0 : index
    %217 = vector.load %arg8[%c1_93, %c0_94, %c0_95] : memref<2x64x32xf32, #tpu.memory_space<vmem>>, vector<1x64x32xf32>
    %218 = vector.shape_cast %217 : vector<1x64x32xf32> to vector<64x32xf32>
    %c1_96 = arith.constant 1 : index
    %c0_97 = arith.constant 0 : index
    %c0_98 = arith.constant 0 : index
    %219 = vector.load %arg9[%c1_96, %c0_97, %c0_98] : memref<2x8x128xf32, #tpu.memory_space<vmem>>, vector<1x8x128xf32>
    %220 = vector.shape_cast %219 : vector<1x8x128xf32> to vector<8x128xf32>
    %221 = vector.extract_strided_slice %220 {offsets = [0, 0], sizes = [1, 96], strides = [1, 1]} : vector<8x128xf32> to vector<1x96xf32>
    %222 = vector.extract_strided_slice %220 {offsets = [1, 0], sizes = [1, 32], strides = [1, 1]} : vector<8x128xf32> to vector<1x32xf32>
    %223 = vector.extract_strided_slice %220 {offsets = [2, 0], sizes = [1, 32], strides = [1, 1]} : vector<8x128xf32> to vector<1x32xf32>
    %224 = vector.extract_strided_slice %220 {offsets = [3, 0], sizes = [1, 32], strides = [1, 1]} : vector<8x128xf32> to vector<1x32xf32>
    %225 = vector.extract_strided_slice %220 {offsets = [4, 0], sizes = [1, 64], strides = [1, 1]} : vector<8x128xf32> to vector<1x64xf32>
    %226 = vector.extract_strided_slice %220 {offsets = [5, 0], sizes = [1, 32], strides = [1, 1]} : vector<8x128xf32> to vector<1x32xf32>
    %227 = vector.extract_strided_slice %220 {offsets = [6, 0], sizes = [1, 32], strides = [1, 1]} : vector<8x128xf32> to vector<1x32xf32>
    %228 = vector.extract_strided_slice %220 {offsets = [7, 0], sizes = [1, 32], strides = [1, 1]} : vector<8x128xf32> to vector<1x32xf32>
    %cst_99 = arith.constant dense<0.000000e+00> : vector<16x96xf32>
    %229 = tpu.matmul %212, %214, %cst_99 {dimension_numbers = #tpu.dot_dimension_numbers<[1], [0], [0], [1], [0, 0, 1, 1], [], []>} : vector<16x32xf32>, vector<32x96xf32>, vector<16x96xf32> -> vector<16x96xf32>
    %230 = vector.broadcast %221 : vector<1x96xf32> to vector<16x96xf32>
    %231 = arith.addf %229, %230 : vector<16x96xf32>
    %232 = vector.extract_strided_slice %231 {offsets = [0, 0], sizes = [16, 16], strides = [1, 1]} : vector<16x96xf32> to vector<16x16xf32>
    %233 = vector.extract_strided_slice %231 {offsets = [0, 32], sizes = [16, 16], strides = [1, 1]} : vector<16x96xf32> to vector<16x16xf32>
    %234 = vector.extract_strided_slice %231 {offsets = [0, 64], sizes = [16, 16], strides = [1, 1]} : vector<16x96xf32> to vector<16x16xf32>
    %cst_100 = arith.constant dense<0.000000e+00> : vector<16x16xf32>
    %235 = tpu.matmul %232, %233, %cst_100 {dimension_numbers = #tpu.dot_dimension_numbers<[1], [1], [0], [0], [0, 0, 1, 0], [], []>} : vector<16x16xf32>, vector<16x16xf32>, vector<16x16xf32> -> vector<16x16xf32>
    %cst_101 = arith.constant 2.500000e-01 : f32
    %236 = vector.broadcast %cst_101 : f32 to vector<16x16xf32>
    %237 = arith.mulf %235, %236 : vector<16x16xf32>
    %238 = arith.addf %237, %0 : vector<16x16xf32>
    %cst_102 = arith.constant dense<0xFF800000> : vector<16xf32>
    %239 = vector.multi_reduction <maximumf>, %238, %cst_102 [1] : vector<16x16xf32> to vector<16xf32>
    %240 = vector.shape_cast %239 : vector<16xf32> to vector<16x1xf32>
    %241 = vector.broadcast %240 : vector<16x1xf32> to vector<16x16xf32>
    %242 = arith.subf %238, %241 : vector<16x16xf32>
    %243 = math.exp %242 : vector<16x16xf32>
    %cst_103 = arith.constant dense<0.000000e+00> : vector<16xf32>
    %244 = vector.multi_reduction <add>, %243, %cst_103 [1] : vector<16x16xf32> to vector<16xf32>
    %245 = vector.shape_cast %244 : vector<16xf32> to vector<16x1xf32>
    %246 = vector.broadcast %1 : vector<1x16xf32> to vector<16x16xf32>
    %247 = arith.mulf %243, %246 : vector<16x16xf32>
    %cst_104 = arith.constant dense<0.000000e+00> : vector<16xf32>
    %248 = vector.multi_reduction <add>, %247, %cst_104 [1] : vector<16x16xf32> to vector<16xf32>
    %249 = vector.shape_cast %248 : vector<16xf32> to vector<16x1xf32>
    %cst_105 = arith.constant 9.99999993E-9 : f32
    %250 = vector.broadcast %cst_105 : f32 to vector<16x1xf32>
    %251 = arith.mulf %250, %245 : vector<16x1xf32>
    %252 = arith.addf %249, %251 : vector<16x1xf32>
    %253 = tpu.reciprocal %252 {approx = true} : vector<16x1xf32> -> vector<16x1xf32>
    %254 = vector.broadcast %253 : vector<16x1xf32> to vector<16x16xf32>
    %255 = arith.mulf %247, %254 : vector<16x16xf32>
    %cst_106 = arith.constant dense<0.000000e+00> : vector<16x16xf32>
    %256 = tpu.matmul %255, %234, %cst_106 {dimension_numbers = #tpu.dot_dimension_numbers<[1], [0], [0], [1], [0, 0, 1, 1], [], []>} : vector<16x16xf32>, vector<16x16xf32>, vector<16x16xf32> -> vector<16x16xf32>
    %257 = vector.extract_strided_slice %216 {offsets = [0, 0], sizes = [16, 32], strides = [1, 1]} : vector<32x32xf32> to vector<16x32xf32>
    %cst_107 = arith.constant dense<0.000000e+00> : vector<16x32xf32>
    %258 = tpu.matmul %256, %257, %cst_107 {dimension_numbers = #tpu.dot_dimension_numbers<[1], [0], [0], [1], [0, 0, 1, 1], [], []>} : vector<16x16xf32>, vector<16x32xf32>, vector<16x32xf32> -> vector<16x32xf32>
    %259 = vector.extract_strided_slice %231 {offsets = [0, 16], sizes = [16, 16], strides = [1, 1]} : vector<16x96xf32> to vector<16x16xf32>
    %260 = vector.extract_strided_slice %231 {offsets = [0, 48], sizes = [16, 16], strides = [1, 1]} : vector<16x96xf32> to vector<16x16xf32>
    %261 = vector.extract_strided_slice %231 {offsets = [0, 80], sizes = [16, 16], strides = [1, 1]} : vector<16x96xf32> to vector<16x16xf32>
    %cst_108 = arith.constant dense<0.000000e+00> : vector<16x16xf32>
    %262 = tpu.matmul %259, %260, %cst_108 {dimension_numbers = #tpu.dot_dimension_numbers<[1], [1], [0], [0], [0, 0, 1, 0], [], []>} : vector<16x16xf32>, vector<16x16xf32>, vector<16x16xf32> -> vector<16x16xf32>
    %cst_109 = arith.constant 2.500000e-01 : f32
    %263 = vector.broadcast %cst_109 : f32 to vector<16x16xf32>
    %264 = arith.mulf %262, %263 : vector<16x16xf32>
    %265 = arith.addf %264, %0 : vector<16x16xf32>
    %cst_110 = arith.constant dense<0xFF800000> : vector<16xf32>
    %266 = vector.multi_reduction <maximumf>, %265, %cst_110 [1] : vector<16x16xf32> to vector<16xf32>
    %267 = vector.shape_cast %266 : vector<16xf32> to vector<16x1xf32>
    %268 = vector.broadcast %267 : vector<16x1xf32> to vector<16x16xf32>
    %269 = arith.subf %265, %268 : vector<16x16xf32>
    %270 = math.exp %269 : vector<16x16xf32>
    %cst_111 = arith.constant dense<0.000000e+00> : vector<16xf32>
    %271 = vector.multi_reduction <add>, %270, %cst_111 [1] : vector<16x16xf32> to vector<16xf32>
    %272 = vector.shape_cast %271 : vector<16xf32> to vector<16x1xf32>
    %273 = vector.broadcast %1 : vector<1x16xf32> to vector<16x16xf32>
    %274 = arith.mulf %270, %273 : vector<16x16xf32>
    %cst_112 = arith.constant dense<0.000000e+00> : vector<16xf32>
    %275 = vector.multi_reduction <add>, %274, %cst_112 [1] : vector<16x16xf32> to vector<16xf32>
    %276 = vector.shape_cast %275 : vector<16xf32> to vector<16x1xf32>
    %cst_113 = arith.constant 9.99999993E-9 : f32
    %277 = vector.broadcast %cst_113 : f32 to vector<16x1xf32>
    %278 = arith.mulf %277, %272 : vector<16x1xf32>
    %279 = arith.addf %276, %278 : vector<16x1xf32>
    %280 = tpu.reciprocal %279 {approx = true} : vector<16x1xf32> -> vector<16x1xf32>
    %281 = vector.broadcast %280 : vector<16x1xf32> to vector<16x16xf32>
    %282 = arith.mulf %274, %281 : vector<16x16xf32>
    %cst_114 = arith.constant dense<0.000000e+00> : vector<16x16xf32>
    %283 = tpu.matmul %282, %261, %cst_114 {dimension_numbers = #tpu.dot_dimension_numbers<[1], [0], [0], [1], [0, 0, 1, 1], [], []>} : vector<16x16xf32>, vector<16x16xf32>, vector<16x16xf32> -> vector<16x16xf32>
    %284 = vector.extract_strided_slice %216 {offsets = [16, 0], sizes = [16, 32], strides = [1, 1]} : vector<32x32xf32> to vector<16x32xf32>
    %cst_115 = arith.constant dense<0.000000e+00> : vector<16x32xf32>
    %285 = tpu.matmul %283, %284, %cst_115 {dimension_numbers = #tpu.dot_dimension_numbers<[1], [0], [0], [1], [0, 0, 1, 1], [], []>} : vector<16x16xf32>, vector<16x32xf32>, vector<16x32xf32> -> vector<16x32xf32>
    %286 = arith.addf %258, %285 : vector<16x32xf32>
    %287 = vector.broadcast %222 : vector<1x32xf32> to vector<16x32xf32>
    %288 = arith.addf %286, %287 : vector<16x32xf32>
    %289 = arith.addf %288, %212 : vector<16x32xf32>
    %cst_116 = arith.constant dense<0.000000e+00> : vector<16xf32>
    %290 = vector.multi_reduction <add>, %289, %cst_116 [1] : vector<16x32xf32> to vector<16xf32>
    %291 = vector.shape_cast %290 : vector<16xf32> to vector<16x1xf32>
    %cst_117 = arith.constant 3.200000e+01 : f32
    %292 = vector.broadcast %cst_117 : f32 to vector<16x1xf32>
    %293 = arith.divf %291, %292 : vector<16x1xf32>
    %294 = vector.broadcast %293 : vector<16x1xf32> to vector<16x32xf32>
    %295 = arith.subf %289, %294 : vector<16x32xf32>
    %296 = arith.mulf %295, %295 : vector<16x32xf32>
    %cst_118 = arith.constant dense<0.000000e+00> : vector<16xf32>
    %297 = vector.multi_reduction <add>, %296, %cst_118 [1] : vector<16x32xf32> to vector<16xf32>
    %298 = vector.shape_cast %297 : vector<16xf32> to vector<16x1xf32>
    %cst_119 = arith.constant 3.200000e+01 : f32
    %299 = vector.broadcast %cst_119 : f32 to vector<16x1xf32>
    %300 = arith.divf %298, %299 : vector<16x1xf32>
    %cst_120 = arith.constant 9.99999974E-6 : f32
    %301 = vector.broadcast %cst_120 : f32 to vector<16x1xf32>
    %302 = arith.addf %300, %301 : vector<16x1xf32>
    %303 = math.rsqrt %302 : vector<16x1xf32>
    %304 = vector.broadcast %303 : vector<16x1xf32> to vector<16x32xf32>
    %305 = arith.mulf %295, %304 : vector<16x32xf32>
    %306 = vector.broadcast %223 : vector<1x32xf32> to vector<16x32xf32>
    %307 = arith.mulf %305, %306 : vector<16x32xf32>
    %308 = vector.broadcast %224 : vector<1x32xf32> to vector<16x32xf32>
    %309 = arith.addf %307, %308 : vector<16x32xf32>
    %310 = vector.broadcast %2 : vector<16x1xf32> to vector<16x32xf32>
    %311 = arith.mulf %309, %310 : vector<16x32xf32>
    %c4_i32_121 = arith.constant 4 : i32
    %312 = tpu.dynamic_rotate %311 by %c4_i32_121 dim 0 : vector<16x32xf32>, i32 -> vector<16x32xf32>
    %313 = vector.extract_strided_slice %3 {offsets = [0, 0, 0], sizes = [1, 16, 1], strides = [1, 1, 1]} : vector<9x16x1xf32> to vector<1x16x1xf32>
    %314 = vector.shape_cast %313 : vector<1x16x1xf32> to vector<16x1xf32>
    %315 = vector.broadcast %314 : vector<16x1xf32> to vector<16x32xf32>
    %316 = arith.mulf %312, %315 : vector<16x32xf32>
    %c1_122 = arith.constant 1 : index
    %c0_123 = arith.constant 0 : index
    %c0_124 = arith.constant 0 : index
    %c0_125 = arith.constant 0 : index
    %317 = vector.load %arg7[%c1_122, %c0_123, %c0_124, %c0_125] : memref<2x9x32x64xf32, #tpu.memory_space<vmem>>, vector<1x1x32x64xf32>
    %318 = vector.shape_cast %317 : vector<1x1x32x64xf32> to vector<32x64xf32>
    %cst_126 = arith.constant dense<0.000000e+00> : vector<16x64xf32>
    %319 = tpu.matmul %316, %318, %cst_126 {dimension_numbers = #tpu.dot_dimension_numbers<[1], [0], [0], [1], [0, 0, 1, 1], [], []>} : vector<16x32xf32>, vector<32x64xf32>, vector<16x64xf32> -> vector<16x64xf32>
    %c3_i32_127 = arith.constant 3 : i32
    %320 = tpu.dynamic_rotate %311 by %c3_i32_127 dim 0 : vector<16x32xf32>, i32 -> vector<16x32xf32>
    %321 = vector.extract_strided_slice %3 {offsets = [1, 0, 0], sizes = [1, 16, 1], strides = [1, 1, 1]} : vector<9x16x1xf32> to vector<1x16x1xf32>
    %322 = vector.shape_cast %321 : vector<1x16x1xf32> to vector<16x1xf32>
    %323 = vector.broadcast %322 : vector<16x1xf32> to vector<16x32xf32>
    %324 = arith.mulf %320, %323 : vector<16x32xf32>
    %c1_128 = arith.constant 1 : index
    %c1_129 = arith.constant 1 : index
    %c0_130 = arith.constant 0 : index
    %c0_131 = arith.constant 0 : index
    %325 = vector.load %arg7[%c1_128, %c1_129, %c0_130, %c0_131] : memref<2x9x32x64xf32, #tpu.memory_space<vmem>>, vector<1x1x32x64xf32>
    %326 = vector.shape_cast %325 : vector<1x1x32x64xf32> to vector<32x64xf32>
    %cst_132 = arith.constant dense<0.000000e+00> : vector<16x64xf32>
    %327 = tpu.matmul %324, %326, %cst_132 {dimension_numbers = #tpu.dot_dimension_numbers<[1], [0], [0], [1], [0, 0, 1, 1], [], []>} : vector<16x32xf32>, vector<32x64xf32>, vector<16x64xf32> -> vector<16x64xf32>
    %328 = arith.addf %319, %327 : vector<16x64xf32>
    %c2_i32_133 = arith.constant 2 : i32
    %329 = tpu.dynamic_rotate %311 by %c2_i32_133 dim 0 : vector<16x32xf32>, i32 -> vector<16x32xf32>
    %330 = vector.extract_strided_slice %3 {offsets = [2, 0, 0], sizes = [1, 16, 1], strides = [1, 1, 1]} : vector<9x16x1xf32> to vector<1x16x1xf32>
    %331 = vector.shape_cast %330 : vector<1x16x1xf32> to vector<16x1xf32>
    %332 = vector.broadcast %331 : vector<16x1xf32> to vector<16x32xf32>
    %333 = arith.mulf %329, %332 : vector<16x32xf32>
    %c1_134 = arith.constant 1 : index
    %c2_135 = arith.constant 2 : index
    %c0_136 = arith.constant 0 : index
    %c0_137 = arith.constant 0 : index
    %334 = vector.load %arg7[%c1_134, %c2_135, %c0_136, %c0_137] : memref<2x9x32x64xf32, #tpu.memory_space<vmem>>, vector<1x1x32x64xf32>
    %335 = vector.shape_cast %334 : vector<1x1x32x64xf32> to vector<32x64xf32>
    %cst_138 = arith.constant dense<0.000000e+00> : vector<16x64xf32>
    %336 = tpu.matmul %333, %335, %cst_138 {dimension_numbers = #tpu.dot_dimension_numbers<[1], [0], [0], [1], [0, 0, 1, 1], [], []>} : vector<16x32xf32>, vector<32x64xf32>, vector<16x64xf32> -> vector<16x64xf32>
    %337 = arith.addf %328, %336 : vector<16x64xf32>
    %c1_i32_139 = arith.constant 1 : i32
    %338 = tpu.dynamic_rotate %311 by %c1_i32_139 dim 0 : vector<16x32xf32>, i32 -> vector<16x32xf32>
    %339 = vector.extract_strided_slice %3 {offsets = [3, 0, 0], sizes = [1, 16, 1], strides = [1, 1, 1]} : vector<9x16x1xf32> to vector<1x16x1xf32>
    %340 = vector.shape_cast %339 : vector<1x16x1xf32> to vector<16x1xf32>
    %341 = vector.broadcast %340 : vector<16x1xf32> to vector<16x32xf32>
    %342 = arith.mulf %338, %341 : vector<16x32xf32>
    %c1_140 = arith.constant 1 : index
    %c3_141 = arith.constant 3 : index
    %c0_142 = arith.constant 0 : index
    %c0_143 = arith.constant 0 : index
    %343 = vector.load %arg7[%c1_140, %c3_141, %c0_142, %c0_143] : memref<2x9x32x64xf32, #tpu.memory_space<vmem>>, vector<1x1x32x64xf32>
    %344 = vector.shape_cast %343 : vector<1x1x32x64xf32> to vector<32x64xf32>
    %cst_144 = arith.constant dense<0.000000e+00> : vector<16x64xf32>
    %345 = tpu.matmul %342, %344, %cst_144 {dimension_numbers = #tpu.dot_dimension_numbers<[1], [0], [0], [1], [0, 0, 1, 1], [], []>} : vector<16x32xf32>, vector<32x64xf32>, vector<16x64xf32> -> vector<16x64xf32>
    %346 = arith.addf %337, %345 : vector<16x64xf32>
    %347 = vector.extract_strided_slice %3 {offsets = [4, 0, 0], sizes = [1, 16, 1], strides = [1, 1, 1]} : vector<9x16x1xf32> to vector<1x16x1xf32>
    %348 = vector.shape_cast %347 : vector<1x16x1xf32> to vector<16x1xf32>
    %349 = vector.broadcast %348 : vector<16x1xf32> to vector<16x32xf32>
    %350 = arith.mulf %311, %349 : vector<16x32xf32>
    %c1_145 = arith.constant 1 : index
    %c4_146 = arith.constant 4 : index
    %c0_147 = arith.constant 0 : index
    %c0_148 = arith.constant 0 : index
    %351 = vector.load %arg7[%c1_145, %c4_146, %c0_147, %c0_148] : memref<2x9x32x64xf32, #tpu.memory_space<vmem>>, vector<1x1x32x64xf32>
    %352 = vector.shape_cast %351 : vector<1x1x32x64xf32> to vector<32x64xf32>
    %cst_149 = arith.constant dense<0.000000e+00> : vector<16x64xf32>
    %353 = tpu.matmul %350, %352, %cst_149 {dimension_numbers = #tpu.dot_dimension_numbers<[1], [0], [0], [1], [0, 0, 1, 1], [], []>} : vector<16x32xf32>, vector<32x64xf32>, vector<16x64xf32> -> vector<16x64xf32>
    %354 = arith.addf %346, %353 : vector<16x64xf32>
    %c15_i32_150 = arith.constant 15 : i32
    %355 = tpu.dynamic_rotate %311 by %c15_i32_150 dim 0 : vector<16x32xf32>, i32 -> vector<16x32xf32>
    %356 = vector.extract_strided_slice %3 {offsets = [5, 0, 0], sizes = [1, 16, 1], strides = [1, 1, 1]} : vector<9x16x1xf32> to vector<1x16x1xf32>
    %357 = vector.shape_cast %356 : vector<1x16x1xf32> to vector<16x1xf32>
    %358 = vector.broadcast %357 : vector<16x1xf32> to vector<16x32xf32>
    %359 = arith.mulf %355, %358 : vector<16x32xf32>
    %c1_151 = arith.constant 1 : index
    %c5_152 = arith.constant 5 : index
    %c0_153 = arith.constant 0 : index
    %c0_154 = arith.constant 0 : index
    %360 = vector.load %arg7[%c1_151, %c5_152, %c0_153, %c0_154] : memref<2x9x32x64xf32, #tpu.memory_space<vmem>>, vector<1x1x32x64xf32>
    %361 = vector.shape_cast %360 : vector<1x1x32x64xf32> to vector<32x64xf32>
    %cst_155 = arith.constant dense<0.000000e+00> : vector<16x64xf32>
    %362 = tpu.matmul %359, %361, %cst_155 {dimension_numbers = #tpu.dot_dimension_numbers<[1], [0], [0], [1], [0, 0, 1, 1], [], []>} : vector<16x32xf32>, vector<32x64xf32>, vector<16x64xf32> -> vector<16x64xf32>
    %363 = arith.addf %354, %362 : vector<16x64xf32>
    %c14_i32_156 = arith.constant 14 : i32
    %364 = tpu.dynamic_rotate %311 by %c14_i32_156 dim 0 : vector<16x32xf32>, i32 -> vector<16x32xf32>
    %365 = vector.extract_strided_slice %3 {offsets = [6, 0, 0], sizes = [1, 16, 1], strides = [1, 1, 1]} : vector<9x16x1xf32> to vector<1x16x1xf32>
    %366 = vector.shape_cast %365 : vector<1x16x1xf32> to vector<16x1xf32>
    %367 = vector.broadcast %366 : vector<16x1xf32> to vector<16x32xf32>
    %368 = arith.mulf %364, %367 : vector<16x32xf32>
    %c1_157 = arith.constant 1 : index
    %c6_158 = arith.constant 6 : index
    %c0_159 = arith.constant 0 : index
    %c0_160 = arith.constant 0 : index
    %369 = vector.load %arg7[%c1_157, %c6_158, %c0_159, %c0_160] : memref<2x9x32x64xf32, #tpu.memory_space<vmem>>, vector<1x1x32x64xf32>
    %370 = vector.shape_cast %369 : vector<1x1x32x64xf32> to vector<32x64xf32>
    %cst_161 = arith.constant dense<0.000000e+00> : vector<16x64xf32>
    %371 = tpu.matmul %368, %370, %cst_161 {dimension_numbers = #tpu.dot_dimension_numbers<[1], [0], [0], [1], [0, 0, 1, 1], [], []>} : vector<16x32xf32>, vector<32x64xf32>, vector<16x64xf32> -> vector<16x64xf32>
    %372 = arith.addf %363, %371 : vector<16x64xf32>
    %c13_i32_162 = arith.constant 13 : i32
    %373 = tpu.dynamic_rotate %311 by %c13_i32_162 dim 0 : vector<16x32xf32>, i32 -> vector<16x32xf32>
    %374 = vector.extract_strided_slice %3 {offsets = [7, 0, 0], sizes = [1, 16, 1], strides = [1, 1, 1]} : vector<9x16x1xf32> to vector<1x16x1xf32>
    %375 = vector.shape_cast %374 : vector<1x16x1xf32> to vector<16x1xf32>
    %376 = vector.broadcast %375 : vector<16x1xf32> to vector<16x32xf32>
    %377 = arith.mulf %373, %376 : vector<16x32xf32>
    %c1_163 = arith.constant 1 : index
    %c7_164 = arith.constant 7 : index
    %c0_165 = arith.constant 0 : index
    %c0_166 = arith.constant 0 : index
    %378 = vector.load %arg7[%c1_163, %c7_164, %c0_165, %c0_166] : memref<2x9x32x64xf32, #tpu.memory_space<vmem>>, vector<1x1x32x64xf32>
    %379 = vector.shape_cast %378 : vector<1x1x32x64xf32> to vector<32x64xf32>
    %cst_167 = arith.constant dense<0.000000e+00> : vector<16x64xf32>
    %380 = tpu.matmul %377, %379, %cst_167 {dimension_numbers = #tpu.dot_dimension_numbers<[1], [0], [0], [1], [0, 0, 1, 1], [], []>} : vector<16x32xf32>, vector<32x64xf32>, vector<16x64xf32> -> vector<16x64xf32>
    %381 = arith.addf %372, %380 : vector<16x64xf32>
    %c12_i32_168 = arith.constant 12 : i32
    %382 = tpu.dynamic_rotate %311 by %c12_i32_168 dim 0 : vector<16x32xf32>, i32 -> vector<16x32xf32>
    %383 = vector.extract_strided_slice %3 {offsets = [8, 0, 0], sizes = [1, 16, 1], strides = [1, 1, 1]} : vector<9x16x1xf32> to vector<1x16x1xf32>
    %384 = vector.shape_cast %383 : vector<1x16x1xf32> to vector<16x1xf32>
    %385 = vector.broadcast %384 : vector<16x1xf32> to vector<16x32xf32>
    %386 = arith.mulf %382, %385 : vector<16x32xf32>
    %c1_169 = arith.constant 1 : index
    %c8_170 = arith.constant 8 : index
    %c0_171 = arith.constant 0 : index
    %c0_172 = arith.constant 0 : index
    %387 = vector.load %arg7[%c1_169, %c8_170, %c0_171, %c0_172] : memref<2x9x32x64xf32, #tpu.memory_space<vmem>>, vector<1x1x32x64xf32>
    %388 = vector.shape_cast %387 : vector<1x1x32x64xf32> to vector<32x64xf32>
    %cst_173 = arith.constant dense<0.000000e+00> : vector<16x64xf32>
    %389 = tpu.matmul %386, %388, %cst_173 {dimension_numbers = #tpu.dot_dimension_numbers<[1], [0], [0], [1], [0, 0, 1, 1], [], []>} : vector<16x32xf32>, vector<32x64xf32>, vector<16x64xf32> -> vector<16x64xf32>
    %390 = arith.addf %381, %389 : vector<16x64xf32>
    %391 = vector.broadcast %225 : vector<1x64xf32> to vector<16x64xf32>
    %392 = arith.addf %390, %391 : vector<16x64xf32>
    %cst_174 = arith.constant 0.000000e+00 : f32
    %393 = vector.broadcast %cst_174 : f32 to vector<16x64xf32>
    %394 = arith.maximumf %392, %393 : vector<16x64xf32>
    %cst_175 = arith.constant dense<0.000000e+00> : vector<16x32xf32>
    %395 = tpu.matmul %394, %218, %cst_175 {dimension_numbers = #tpu.dot_dimension_numbers<[1], [0], [0], [1], [0, 0, 1, 1], [], []>} : vector<16x64xf32>, vector<64x32xf32>, vector<16x32xf32> -> vector<16x32xf32>
    %396 = vector.broadcast %226 : vector<1x32xf32> to vector<16x32xf32>
    %397 = arith.addf %395, %396 : vector<16x32xf32>
    %398 = arith.addf %397, %311 : vector<16x32xf32>
    %cst_176 = arith.constant dense<0.000000e+00> : vector<16xf32>
    %399 = vector.multi_reduction <add>, %398, %cst_176 [1] : vector<16x32xf32> to vector<16xf32>
    %400 = vector.shape_cast %399 : vector<16xf32> to vector<16x1xf32>
    %cst_177 = arith.constant 3.200000e+01 : f32
    %401 = vector.broadcast %cst_177 : f32 to vector<16x1xf32>
    %402 = arith.divf %400, %401 : vector<16x1xf32>
    %403 = vector.broadcast %402 : vector<16x1xf32> to vector<16x32xf32>
    %404 = arith.subf %398, %403 : vector<16x32xf32>
    %405 = arith.mulf %404, %404 : vector<16x32xf32>
    %cst_178 = arith.constant dense<0.000000e+00> : vector<16xf32>
    %406 = vector.multi_reduction <add>, %405, %cst_178 [1] : vector<16x32xf32> to vector<16xf32>
    %407 = vector.shape_cast %406 : vector<16xf32> to vector<16x1xf32>
    %cst_179 = arith.constant 3.200000e+01 : f32
    %408 = vector.broadcast %cst_179 : f32 to vector<16x1xf32>
    %409 = arith.divf %407, %408 : vector<16x1xf32>
    %cst_180 = arith.constant 9.99999974E-6 : f32
    %410 = vector.broadcast %cst_180 : f32 to vector<16x1xf32>
    %411 = arith.addf %409, %410 : vector<16x1xf32>
    %412 = math.rsqrt %411 : vector<16x1xf32>
    %413 = vector.broadcast %412 : vector<16x1xf32> to vector<16x32xf32>
    %414 = arith.mulf %404, %413 : vector<16x32xf32>
    %415 = vector.broadcast %227 : vector<1x32xf32> to vector<16x32xf32>
    %416 = arith.mulf %414, %415 : vector<16x32xf32>
    %417 = vector.broadcast %228 : vector<1x32xf32> to vector<16x32xf32>
    %418 = arith.addf %416, %417 : vector<16x32xf32>
    %419 = vector.broadcast %2 : vector<16x1xf32> to vector<16x32xf32>
    %420 = arith.mulf %418, %419 : vector<16x32xf32>
    %c0_181 = arith.constant 0 : index
    %c0_182 = arith.constant 0 : index
    %421 = vector.load %arg10[%c0_181, %c0_182] : memref<16x32xf32, #tpu.memory_space<vmem>>, vector<16x32xf32>
    tpu.vector_store %arg10[%c0_181, %c0_182], %420 {strides = array<i32>} : memref<16x32xf32, #tpu.memory_space<vmem>>, vector<16x32xf32>,
    return
  }
}

</mosaic_0001>

<llo_original>
// kernel: tpu_custom_call.1
$region0: #{tpu_custom_call.1}
  #allocation0 [shape = 'u32[]', space=smem, size = 0x4, offset = 0x4, fixed_abs, tag = 'smem constant byte address 0x4 - core index']
  #allocation1 [shape = 'u32[144,128]{1,0:T(1,128)}', space=vmem, size = 0x12000, scoped, tag = 'internal scratch']
  %s0 = inlined_call_operand.vmem [shape: f32[16,32], index: 0, kind: input, shape index: {}]
  %s1 = inlined_call_operand.vmem [shape: f32[16,16], index: 1, kind: input, shape index: {}]
  %s2 = inlined_call_operand.vmem [shape: f32[1,16], index: 2, kind: input, shape index: {}]
  %s3 = inlined_call_operand.vmem [shape: f32[16,1], index: 3, kind: input, shape index: {}]
  %s4 = inlined_call_operand.vmem [shape: f32[9,16,1], index: 4, kind: input, shape index: {}]
  %s5 = inlined_call_operand.vmem [shape: f32[2,32,96], index: 5, kind: input, shape index: {}]
  %s6 = inlined_call_operand.vmem [shape: f32[2,32,32], index: 6, kind: input, shape index: {}]
  %s7 = inlined_call_operand.hbm [shape: f32[2,9,32,64], index: 7, kind: input, shape index: {}]
  %s8 = inlined_call_operand.vmem [shape: f32[2,64,32], index: 8, kind: input, shape index: {}]
  %s9 = inlined_call_operand.vmem [shape: f32[2,8,128], index: 9, kind: input, shape index: {}]
  %s10 = inlined_call_operand.hbm [shape: f32[16,32], index: 10, kind: output, shape index: {}]
  %s11 = sld [smem:[#allocation0]]
  $region54: #{tpu_custom_call.1} parent=0
    _
  %s13 = ssub.s32 1, %s11
  %s14 = scalar_select 0, %s13, %s11
  $region1: #{tpu_custom_call.1} parent=0
    #allocation2 [shape = 'u8[294912]{0}', space=vmem, size = 0x48000, scoped, tag = 'input window, operand 7, single buffered']
    #allocation3 [shape = 's32[1]{0}', space=sflag, size = 0x4, scoped, tag = 'scoped memory for tpu_custom_call.1']
    #allocation4 [shape = 's32[1]{0}', space=sflag, size = 0x4, scoped, tag = 'scoped memory for tpu_custom_call.1']
    #allocation5 [shape = 'u8[8192]{0}', space=vmem, size = 0x2000, scoped, tag = 'output window, operand 0, single buffered']
    %15 = vsyncpa [#allocation3], 0
    %16 = vsyncpa [#allocation4], 0
    // Predicated region
    $region2: #{tpu_custom_call.1} parent=1 // pred_check
      _
    $region3: #{tpu_custom_call.1} parent=1 // pred_check_branch
      %18 = sbr.rel (0) target = $region5
    $region4: #{tpu_custom_call.1} parent=1 // pred_region
      _
    $region5: #{tpu_custom_call.1} parent=1 // pred_fallthru
      _
    // Predicated region
    $region6: #{tpu_custom_call.1} parent=1 // pred_check
      _
    $region7: #{tpu_custom_call.1} parent=1 // pred_check_branch
      %20 = sbr.rel (0) target = $region9
    $region8: #{tpu_custom_call.1} parent=1 // pred_region
      _
    $region9: #{tpu_custom_call.1} parent=1 // pred_fallthru
      _
    // Predicated region
    $region10: #{tpu_custom_call.1} parent=1 // pred_check
      _
    $region11: #{tpu_custom_call.1} parent=1 // pred_check_branch
      %22 = sbr.rel (0) target = $region13
    $region12: #{tpu_custom_call.1} parent=1 // pred_region
      _
    $region13: #{tpu_custom_call.1} parent=1 // pred_fallthru
      _
    // Predicated region
    $region14: #{tpu_custom_call.1} parent=1 // pred_check
      _
    $region15: #{tpu_custom_call.1} parent=1 // pred_check_branch
      %24 = sbr.rel (0) target = $region17
    $region16: #{tpu_custom_call.1} parent=1 // pred_region
      _
    $region17: #{tpu_custom_call.1} parent=1 // pred_fallthru
      _
    // Predicated region
    $region18: #{tpu_custom_call.1} parent=1 // pred_check
      _
    $region19: #{tpu_custom_call.1} parent=1 // pred_check_branch
      %26 = sbr.rel (0) target = $region21
    $region20: #{tpu_custom_call.1} parent=1 // pred_region
      _
    $region21: #{tpu_custom_call.1} parent=1 // pred_fallthru
      _
    // Predicated region
    $region22: #{tpu_custom_call.1} parent=1 // pred_check
      _
    $region23: #{tpu_custom_call.1} parent=1 // pred_check_branch
      %28 = sbr.rel (0) target = $region25
    $region24: #{tpu_custom_call.1} parent=1 // pred_region
      _
    $region25: #{tpu_custom_call.1} parent=1 // pred_fallthru
      _
    // Predicated region
    $region26: #{tpu_custom_call.1} parent=1 // pred_check
      _
    $region27: #{tpu_custom_call.1} parent=1 // pred_check_branch
      %30 = sbr.rel (0) target = $region29
    $region28: #{tpu_custom_call.1} parent=1 // pred_region
      _
    $region29: #{tpu_custom_call.1} parent=1 // pred_fallthru
      _
    // Predicated region
    $region30: #{tpu_custom_call.1} parent=1 // pred_check
      _
    $region31: #{tpu_custom_call.1} parent=1 // pred_check_branch
      %32 = sbr.rel (0) target = $region33
    $region32: #{tpu_custom_call.1} parent=1 // pred_region
      %s34 = ssub.s32 9216, 9216
      %35 = vsyncadd [#allocation3], %s34
      %s36 = sshll.u32 [#allocation2], 4
      %s37 = int_to_ptr.vmem [resolvable:$true] %s36
      %42 = dma.hbm_to_vmem [thread:$0]  %s7, 9216, %s37, [#allocation3], 128, 128, 8
    $region33: #{tpu_custom_call.1} parent=1 // pred_fallthru
      _
    // Predicated region
    $region34: #{tpu_custom_call.1} parent=1 // pred_check
      _
    $region35: #{tpu_custom_call.1} parent=1 // pred_check_branch
      %44 = sbr.rel (0) target = $region37
    $region36: #{tpu_custom_call.1} parent=1 // pred_region
      _
    $region37: #{tpu_custom_call.1} parent=1 // pred_fallthru
      _
    // Predicated region
    $region38: #{tpu_custom_call.1} parent=1 // pred_check
      _
    $region39: #{tpu_custom_call.1} parent=1 // pred_check_branch
      %46 = sbr.rel (0) target = $region41
    $region40: #{tpu_custom_call.1} parent=1 // pred_region
      _
    $region41: #{tpu_custom_call.1} parent=1 // pred_fallthru
      _
    // Predicated region
    $region42: #{tpu_custom_call.1} parent=1 // pred_check
      _
    $region43: #{tpu_custom_call.1} parent=1 // pred_check_branch
      %48 = sbr.rel (0) target = $region45
    $region44: #{tpu_custom_call.1} parent=1 // pred_region
      %49 = dma.done [#allocation3], 9216
    $region45: #{tpu_custom_call.1} parent=1 // pred_fallthru
      _
    %v50 = vld [vmem:[%s1] sm:$0xff]
    %v51 = vld [vmem:[%s1 + $0x8] sm:$0xff]
    %v52 = vld [vmem:[%s2] sm:$0x1]
    %v53 = vld [vmem:[%s3] sm:$0xff]
    %v54 = vld [vmem:[%s3 + $0x8] sm:$0xff]
    %v55 = vld [vmem:[%s4] sm:$0xff]
    %v56 = vld [vmem:[%s4 + $0x8] sm:$0xff]
    %v57 = vld [vmem:[%s4 + $0x10] sm:$0xff]
    %v58 = vld [vmem:[%s4 + $0x18] sm:$0xff]
    %v59 = vld [vmem:[%s4 + $0x20] sm:$0xff]
    %v60 = vld [vmem:[%s4 + $0x28] sm:$0xff]
    %v61 = vld [vmem:[%s4 + $0x30] sm:$0xff]
    %v62 = vld [vmem:[%s4 + $0x38] sm:$0xff]
    %v63 = vld [vmem:[%s4 + $0x40] sm:$0xff]
    %v64 = vld [vmem:[%s4 + $0x48] sm:$0xff]
    %v65 = vld [vmem:[%s4 + $0x50] sm:$0xff]
    %v66 = vld [vmem:[%s4 + $0x58] sm:$0xff]
    %v67 = vld [vmem:[%s4 + $0x60] sm:$0xff]
    %v68 = vld [vmem:[%s4 + $0x68] sm:$0xff]
    %v69 = vld [vmem:[%s4 + $0x70] sm:$0xff]
    %v70 = vld [vmem:[%s4 + $0x78] sm:$0xff]
    %v71 = vld [vmem:[%s4 + $0x80] sm:$0xff]
    %v72 = vld [vmem:[%s4 + $0x88] sm:$0xff]
    %v73 = vld [vmem:[%s0] sm:$0xff]
    %v74 = vld [vmem:[%s0 + $0x8] sm:$0xff]
    %v75 = vld [vmem:[%s5] sm:$0xff]
    %v76 = vld [vmem:[%s5 + $0x8] sm:$0xff]
    %v77 = vld [vmem:[%s5 + $0x10] sm:$0xff]
    %v78 = vld [vmem:[%s5 + $0x18] sm:$0xff]
    %v79 = vld [vmem:[%s6] sm:$0xff]
    %v80 = vld [vmem:[%s6 + $0x8] sm:$0xff]
    %v81 = vld [vmem:[%s6 + $0x10] sm:$0xff]
    %v82 = vld [vmem:[%s6 + $0x18] sm:$0xff]
    %v83 = vld [vmem:[%s8] sm:$0xff]
    %v84 = vld [vmem:[%s8 + $0x8] sm:$0xff]
    %v85 = vld [vmem:[%s8 + $0x10] sm:$0xff]
    %v86 = vld [vmem:[%s8 + $0x18] sm:$0xff]
    %v87 = vld [vmem:[%s8 + $0x20] sm:$0xff]
    %v88 = vld [vmem:[%s8 + $0x28] sm:$0xff]
    %v89 = vld [vmem:[%s8 + $0x30] sm:$0xff]
    %v90 = vld [vmem:[%s8 + $0x38] sm:$0xff]
    %v91 = vld [vmem:[%s9] sm:$0xff]
    %v92 = vlaneseq
    %v93 = vshrl.u32 %v92, 7
    %v94 = vsub.s32 0, %v93
    %v95 = vrot.slane %v91, %v94
    %vm96 = vcmask 261120
    %v98 = vsel %vm96, %v73, 0
    %v101 = vsel %vm96, %v74, 0
    %103 = vmatprep.subr.mxu0 0.0
    %104 = vmatpush1.msra.mxu0 %v75
    %105 = vmatprep.subr.mxu0 0.0
    %106 = vmatpush1.msra.mxu0 %v76
    %107 = vmatprep.subr.mxu0 0.0
    %108 = vmatpush1.msra.mxu0 %v77
    %109 = vmatprep.subr.mxu0 0.0
    %110 = vmatpush1.msra.mxu0 %v78
    %111 = vmatprep.subr.mxu0 0.0
    %112 = vmatpush1.msra.mxu0 0.0
    %113 = vmatprep.subr.mxu0 0.0
    %114 = vmatpush1.msra.mxu0 0.0
    %115 = vmatprep.subr.mxu0 0.0
    %116 = vmatpush1.msra.mxu0 0.0
    %117 = vmatprep.subr.mxu0 0.0
    %118 = vmatpush1.msra.mxu0 0.0
    %119 = vmatprep.subr.mxu0 0.0
    %120 = vmatpush1.msra.mxu0 0.0
    %121 = vmatprep.subr.mxu0 0.0
    %122 = vmatpush1.msra.mxu0 0.0
    %123 = vmatprep.subr.mxu0 0.0
    %124 = vmatpush1.msra.mxu0 0.0
    %125 = vmatprep.subr.mxu0 0.0
    %126 = vmatpush1.msra.mxu0 0.0
    %127 = vmatprep.subr.mxu0 0.0
    %128 = vmatpush1.msra.mxu0 0.0
    %129 = vmatprep.subr.mxu0 0.0
    %130 = vmatpush1.msra.mxu0 0.0
    %131 = vmatprep.subr.mxu0 0.0
    %132 = vmatpush1.msra.mxu0 0.0
    %133 = vmatprep.subr.mxu0 0.0
    %134 = vmatpush1.msra.mxu0 0.0
    %135 = vmatprep.subr.mxu0 0.0
    %136 = vmatpush1.msra.mxu0 0.0
    %137 = vmatprep.subr.mxu0 0.0
    %138 = vmatpush1.msra.mxu0 0.0
    %139 = vmatprep.subr.mxu0 0.0
    %140 = vmatpush1.msra.mxu0 0.0
    %141 = vmatprep.subr.mxu0 0.0
    %142 = vmatpush1.msra.mxu0 0.0
    %143 = vmatprep.subr.mxu0 0.0
    %144 = vmatpush1.msra.mxu0 0.0
    %145 = vmatprep.subr.mxu0 0.0
    %146 = vmatpush1.msra.mxu0 0.0
    %147 = vmatprep.subr.mxu0 0.0
    %148 = vmatpush1.msra.mxu0 0.0
    %149 = vmatprep.subr.mxu0 0.0
    %150 = vmatpush1.msra.mxu0 0.0
    %151 = vmatprep.subr.mxu0 0.0
    %152 = vmatpush1.msra.mxu0 0.0
    %153 = vmatprep.subr.mxu0 0.0
    %154 = vmatpush1.msra.mxu0 0.0
    %155 = vmatprep.subr.mxu0 0.0
    %156 = vmatpush1.msra.mxu0 0.0
    %157 = vmatprep.subr.mxu0 0.0
    %158 = vmatpush1.msra.mxu0 0.0
    %159 = vmatprep.subr.mxu0 0.0
    %160 = vmatpush1.msra.mxu0 0.0
    %161 = vmatprep.subr.mxu0 0.0
    %162 = vmatpush1.msra.mxu0 0.0
    %163 = vmatprep.subr.mxu0 0.0
    %164 = vmatpush1.msra.mxu0 0.0
    %165 = vmatprep.subr.mxu0 0.0
    %166 = vmatpush1.msra.mxu0 0.0
    %167 = vmatprep.mubr.f32.mxu0 0.0
    %168 = vmatmul.mubr.f32.gmra.mrb[0].mxu0 %v98
    %v169 = vpop.f32.mrb[0].mxu0
    %v170 = vadd.f32 %v95, %v169
    %v171 = vpop.f32.mrb[0].mxu0
    %172 = vmatprep.mubr.f32.mxu0 0.0
    %173 = vmatmul.mubr.f32.gmra.mrb[0].mxu0 %v101
    %v174 = vpop.f32.mrb[0].mxu0
    %v175 = vadd.f32 %v95, %v174
    %v176 = vpop.f32.mrb[0].mxu0
    %177 = vdwg.mxu0
    %180 = vrot.lane.b32.xlu0 %v170, 96
    %v181 = vpop.permute.xlu0 %180
    %182 = vrot.lane.b32.xlu0 %v175, 96
    %v183 = vpop.permute.xlu0 %182
    %vm184 = vcmask 130048
    %v185 = vsel %vm184, %v170, 0
    %v187 = vsel %vm184, %v175, 0
    %v189 = vsel %vm184, %v181, 0
    %v191 = vsel %vm184, %v183, 0
    %193 = vmatprep.subr.mxu0 0.0
    %194 = vmatpush1.xpose.msra.mxu0 %v189
    %195 = vmatprep.subr.mxu0 0.0
    %196 = vmatpush1.xpose.msra.mxu0 %v191
    %197 = vmatprep.subr.mxu0 0.0
    %198 = vmatpush1.xpose.msra.mxu0 0.0
    %199 = vmatprep.subr.mxu0 0.0
    %200 = vmatpush1.xpose.msra.mxu0 0.0
    %201 = vmatprep.subr.mxu0 0.0
    %202 = vmatpush1.xpose.msra.mxu0 0.0
    %203 = vmatprep.subr.mxu0 0.0
    %204 = vmatpush1.xpose.msra.mxu0 0.0
    %205 = vmatprep.subr.mxu0 0.0
    %206 = vmatpush1.xpose.msra.mxu0 0.0
    %207 = vmatprep.subr.mxu0 0.0
    %208 = vmatpush1.xpose.msra.mxu0 0.0
    %209 = vmatprep.subr.mxu0 0.0
    %210 = vmatpush1.xpose.msra.mxu0 0.0
    %211 = vmatprep.subr.mxu0 0.0
    %212 = vmatpush1.xpose.msra.mxu0 0.0
    %213 = vmatprep.subr.mxu0 0.0
    %214 = vmatpush1.xpose.msra.mxu0 0.0
    %215 = vmatprep.subr.mxu0 0.0
    %216 = vmatpush1.xpose.msra.mxu0 0.0
    %217 = vmatprep.subr.mxu0 0.0
    %218 = vmatpush1.xpose.msra.mxu0 0.0
    %219 = vmatprep.subr.mxu0 0.0
    %220 = vmatpush1.xpose.msra.mxu0 0.0
    %221 = vmatprep.subr.mxu0 0.0
    %222 = vmatpush1.xpose.msra.mxu0 0.0
    %223 = vmatprep.subr.mxu0 0.0
    %224 = vmatpush1.xpose.msra.mxu0 0.0
    %225 = vmatprep.subr.mxu0 0.0
    %226 = vmatpush1.xpose.msra.mxu0 0.0
    %227 = vmatprep.subr.mxu0 0.0
    %228 = vmatpush1.xpose.msra.mxu0 0.0
    %229 = vmatprep.subr.mxu0 0.0
    %230 = vmatpush1.xpose.msra.mxu0 0.0
    %231 = vmatprep.subr.mxu0 0.0
    %232 = vmatpush1.xpose.msra.mxu0 0.0
    %233 = vmatprep.subr.mxu0 0.0
    %234 = vmatpush1.xpose.msra.mxu0 0.0
    %235 = vmatprep.subr.mxu0 0.0
    %236 = vmatpush1.xpose.msra.mxu0 0.0
    %237 = vmatprep.subr.mxu0 0.0
    %238 = vmatpush1.xpose.msra.mxu0 0.0
    %239 = vmatprep.subr.mxu0 0.0
    %240 = vmatpush1.xpose.msra.mxu0 0.0
    %241 = vmatprep.subr.mxu0 0.0
    %242 = vmatpush1.xpose.msra.mxu0 0.0
    %243 = vmatprep.subr.mxu0 0.0
    %244 = vmatpush1.xpose.msra.mxu0 0.0
    %245 = vmatprep.subr.mxu0 0.0
    %246 = vmatpush1.xpose.msra.mxu0 0.0
    %247 = vmatprep.subr.mxu0 0.0
    %248 = vmatpush1.xpose.msra.mxu0 0.0
    %249 = vmatprep.subr.mxu0 0.0
    %250 = vmatpush1.xpose.msra.mxu0 0.0
    %251 = vmatprep.subr.mxu0 0.0
    %252 = vmatpush1.xpose.msra.mxu0 0.0
    %253 = vmatprep.subr.mxu0 0.0
    %254 = vmatpush1.xpose.msra.mxu0 0.0
    %255 = vmatprep.subr.mxu0 0.0
    %256 = vmatpush1.xpose.msra.mxu0 0.0
    %257 = vmatprep.mubr.f32.mxu0 0.0
    %258 = vmatmul.mubr.f32.gmra.mrb[0].mxu0 %v185
    %v259 = vpop.f32.mrb[0].mxu0
    %v260 = vadd.f32 0.0, %v259
    %v261 = vpop.f32.mrb[0].mxu0
    %262 = vmatprep.mubr.f32.mxu0 0.0
    %263 = vmatmul.mubr.f32.gmra.mrb[0].mxu0 %v187
    %v264 = vpop.f32.mrb[0].mxu0
    %v265 = vadd.f32 0.0, %v264
    %v266 = vpop.f32.mrb[0].mxu0
    %267 = vdwg.mxu0
    %v268 = vmul.f32 %v260, 0.25
    %v269 = vmul.f32 %v265, 0.25
    %v270 = vadd.f32 %v268, %v50
    %v271 = vadd.f32 %v269, %v51
    %v272 = vsel %vm184, %v270, -inf
    %273 = vmax.xlane.f32.xlu0 %v272
    %v274 = vpop.xlane.xlu0 %273
    %v275 = vsel %vm184, %v271, -inf
    %276 = vmax.xlane.f32.xlu0 %v275
    %v277 = vpop.xlane.xlu0 %276
    %v278 = vsub.f32 %v270, %v274
    %v279 = vsub.f32 %v271, %v277
    %v280 = vmul.f32 %v278, 1.442695
    %v281 = vpow.pop %v280
    %v282 = vmul.f32 %v279, 1.442695
    %v283 = vpow.pop %v282
    %v284 = vsel %vm184, %v281, 0.0
    %285 = vadd.xlane.f32.xlu0 %v284
    %v286 = vpop.xlane.xlu0 %285
    %v287 = vsel %vm184, %v283, 0.0
    %288 = vadd.xlane.f32.xlu0 %v287
    %v289 = vpop.xlane.xlu0 %288
    %v291 = vlaneseq
    %v292 = vshrl.u32 %v291, 7
    %v293 = vsub.s32 0, %v292
    %v294 = vrot.slane %v52, %v293
    %v296 = vmul.f32 %v281, %v294
    %v297 = vmul.f32 %v283, %v294
    %v298 = vsel %vm184, %v296, 0.0
    %299 = vadd.xlane.f32.xlu0 %v298
    %v300 = vpop.xlane.xlu0 %299
    %v301 = vsel %vm184, %v297, 0.0
    %302 = vadd.xlane.f32.xlu0 %v301
    %v303 = vpop.xlane.xlu0 %302
    %v304 = vmul.f32 %v286, 1e-08
    %v305 = vmul.f32 %v289, 1e-08
    %v306 = vadd.f32 %v300, %v304
    %v307 = vadd.f32 %v303, %v305
    %v308 = vrcp.pop %v306
    %v309 = vrcp.pop %v307
    %v310 = vmul.f32 %v296, %v308
    %v311 = vmul.f32 %v297, %v309
    %312 = vrot.lane.b32.xlu0 %v170, 64
    %v313 = vpop.permute.xlu0 %312
    %314 = vrot.lane.b32.xlu0 %v175, 64
    %v315 = vpop.permute.xlu0 %314
    %v319 = vsel %vm184, %v310, 0
    %v322 = vsel %vm184, %v311, 0
    %324 = vmatprep.subr.mxu0 0.0
    %325 = vmatpush1.msra.mxu0 %v313
    %326 = vmatprep.subr.mxu0 0.0
    %327 = vmatpush1.msra.mxu0 %v315
    %328 = vmatprep.subr.mxu0 0.0
    %329 = vmatpush1.msra.mxu0 0.0
    %330 = vmatprep.subr.mxu0 0.0
    %331 = vmatpush1.msra.mxu0 0.0
    %332 = vmatprep.subr.mxu0 0.0
    %333 = vmatpush1.msra.mxu0 0.0
    %334 = vmatprep.subr.mxu0 0.0
    %335 = vmatpush1.msra.mxu0 0.0
    %336 = vmatprep.subr.mxu0 0.0
    %337 = vmatpush1.msra.mxu0 0.0
    %338 = vmatprep.subr.mxu0 0.0
    %339 = vmatpush1.msra.mxu0 0.0
    %340 = vmatprep.subr.mxu0 0.0
    %341 = vmatpush1.msra.mxu0 0.0
    %342 = vmatprep.subr.mxu0 0.0
    %343 = vmatpush1.msra.mxu0 0.0
    %344 = vmatprep.subr.mxu0 0.0
    %345 = vmatpush1.msra.mxu0 0.0
    %346 = vmatprep.subr.mxu0 0.0
    %347 = vmatpush1.msra.mxu0 0.0
    %348 = vmatprep.subr.mxu0 0.0
    %349 = vmatpush1.msra.mxu0 0.0
    %350 = vmatprep.subr.mxu0 0.0
    %351 = vmatpush1.msra.mxu0 0.0
    %352 = vmatprep.subr.mxu0 0.0
    %353 = vmatpush1.msra.mxu0 0.0
    %354 = vmatprep.subr.mxu0 0.0
    %355 = vmatpush1.msra.mxu0 0.0
    %356 = vmatprep.subr.mxu0 0.0
    %357 = vmatpush1.msra.mxu0 0.0
    %358 = vmatprep.subr.mxu0 0.0
    %359 = vmatpush1.msra.mxu0 0.0
    %360 = vmatprep.subr.mxu0 0.0
    %361 = vmatpush1.msra.mxu0 0.0
    %362 = vmatprep.subr.mxu0 0.0
    %363 = vmatpush1.msra.mxu0 0.0
    %364 = vmatprep.subr.mxu0 0.0
    %365 = vmatpush1.msra.mxu0 0.0
    %366 = vmatprep.subr.mxu0 0.0
    %367 = vmatpush1.msra.mxu0 0.0
    %368 = vmatprep.subr.mxu0 0.0
    %369 = vmatpush1.msra.mxu0 0.0
    %370 = vmatprep.subr.mxu0 0.0
    %371 = vmatpush1.msra.mxu0 0.0
    %372 = vmatprep.subr.mxu0 0.0
    %373 = vmatpush1.msra.mxu0 0.0
    %374 = vmatprep.subr.mxu0 0.0
    %375 = vmatpush1.msra.mxu0 0.0
    %376 = vmatprep.subr.mxu0 0.0
    %377 = vmatpush1.msra.mxu0 0.0
    %378 = vmatprep.subr.mxu0 0.0
    %379 = vmatpush1.msra.mxu0 0.0
    %380 = vmatprep.subr.mxu0 0.0
    %381 = vmatpush1.msra.mxu0 0.0
    %382 = vmatprep.subr.mxu0 0.0
    %383 = vmatpush1.msra.mxu0 0.0
    %384 = vmatprep.subr.mxu0 0.0
    %385 = vmatpush1.msra.mxu0 0.0
    %386 = vmatprep.subr.mxu0 0.0
    %387 = vmatpush1.msra.mxu0 0.0
    %388 = vmatprep.mubr.f32.mxu0 0.0
    %389 = vmatmul.mubr.f32.gmra.mrb[0].mxu0 %v319
    %v390 = vpop.f32.mrb[0].mxu0
    %v391 = vadd.f32 0.0, %v390
    %v392 = vpop.f32.mrb[0].mxu0
    %393 = vmatprep.mubr.f32.mxu0 0.0
    %394 = vmatmul.mubr.f32.gmra.mrb[0].mxu0 %v322
    %v395 = vpop.f32.mrb[0].mxu0
    %v396 = vadd.f32 0.0, %v395
    %v397 = vpop.f32.mrb[0].mxu0
    %398 = vdwg.mxu0
    %399 = vrot.lane.b32.xlu0 %v170, 112
    %v400 = vpop.permute.xlu0 %399
    %401 = vrot.lane.b32.xlu0 %v175, 112
    %v402 = vpop.permute.xlu0 %401
    %403 = vrot.lane.b32.xlu0 %v170, 80
    %v404 = vpop.permute.xlu0 %403
    %405 = vrot.lane.b32.xlu0 %v175, 80
    %v406 = vpop.permute.xlu0 %405
    %v407 = vsel %vm184, %v400, 0
    %v409 = vsel %vm184, %v402, 0
    %v411 = vsel %vm184, %v404, 0
    %v413 = vsel %vm184, %v406, 0
    %415 = vmatprep.subr.mxu0 0.0
    %416 = vmatpush1.xpose.msra.mxu0 %v411
    %417 = vmatprep.subr.mxu0 0.0
    %418 = vmatpush1.xpose.msra.mxu0 %v413
    %419 = vmatprep.subr.mxu0 0.0
    %420 = vmatpush1.xpose.msra.mxu0 0.0
    %421 = vmatprep.subr.mxu0 0.0
    %422 = vmatpush1.xpose.msra.mxu0 0.0
    %423 = vmatprep.subr.mxu0 0.0
    %424 = vmatpush1.xpose.msra.mxu0 0.0
    %425 = vmatprep.subr.mxu0 0.0
    %426 = vmatpush1.xpose.msra.mxu0 0.0
    %427 = vmatprep.subr.mxu0 0.0
    %428 = vmatpush1.xpose.msra.mxu0 0.0
    %429 = vmatprep.subr.mxu0 0.0
    %430 = vmatpush1.xpose.msra.mxu0 0.0
    %431 = vmatprep.subr.mxu0 0.0
    %432 = vmatpush1.xpose.msra.mxu0 0.0
    %433 = vmatprep.subr.mxu0 0.0
    %434 = vmatpush1.xpose.msra.mxu0 0.0
    %435 = vmatprep.subr.mxu0 0.0
    %436 = vmatpush1.xpose.msra.mxu0 0.0
    %437 = vmatprep.subr.mxu0 0.0
    %438 = vmatpush1.xpose.msra.mxu0 0.0
    %439 = vmatprep.subr.mxu0 0.0
    %440 = vmatpush1.xpose.msra.mxu0 0.0
    %441 = vmatprep.subr.mxu0 0.0
    %442 = vmatpush1.xpose.msra.mxu0 0.0
    %443 = vmatprep.subr.mxu0 0.0
    %444 = vmatpush1.xpose.msra.mxu0 0.0
    %445 = vmatprep.subr.mxu0 0.0
    %446 = vmatpush1.xpose.msra.mxu0 0.0
    %447 = vmatprep.subr.mxu0 0.0
    %448 = vmatpush1.xpose.msra.mxu0 0.0
    %449 = vmatprep.subr.mxu0 0.0
    %450 = vmatpush1.xpose.msra.mxu0 0.0
    %451 = vmatprep.subr.mxu0 0.0
    %452 = vmatpush1.xpose.msra.mxu0 0.0
    %453 = vmatprep.subr.mxu0 0.0
    %454 = vmatpush1.xpose.msra.mxu0 0.0
    %455 = vmatprep.subr.mxu0 0.0
    %456 = vmatpush1.xpose.msra.mxu0 0.0
    %457 = vmatprep.subr.mxu0 0.0
    %458 = vmatpush1.xpose.msra.mxu0 0.0
    %459 = vmatprep.subr.mxu0 0.0
    %460 = vmatpush1.xpose.msra.mxu0 0.0
    %461 = vmatprep.subr.mxu0 0.0
    %462 = vmatpush1.xpose.msra.mxu0 0.0
    %463 = vmatprep.subr.mxu0 0.0
    %464 = vmatpush1.xpose.msra.mxu0 0.0
    %465 = vmatprep.subr.mxu0 0.0
    %466 = vmatpush1.xpose.msra.mxu0 0.0
    %467 = vmatprep.subr.mxu0 0.0
    %468 = vmatpush1.xpose.msra.mxu0 0.0
    %469 = vmatprep.subr.mxu0 0.0
    %470 = vmatpush1.xpose.msra.mxu0 0.0
    %471 = vmatprep.subr.mxu0 0.0
    %472 = vmatpush1.xpose.msra.mxu0 0.0
    %473 = vmatprep.subr.mxu0 0.0
    %474 = vmatpush1.xpose.msra.mxu0 0.0
    %475 = vmatprep.subr.mxu0 0.0
    %476 = vmatpush1.xpose.msra.mxu0 0.0
    %477 = vmatprep.subr.mxu0 0.0
    %478 = vmatpush1.xpose.msra.mxu0 0.0
    %479 = vmatprep.mubr.f32.mxu0 0.0
    %480 = vmatmul.mubr.f32.gmra.mrb[0].mxu0 %v407
    %v481 = vpop.f32.mrb[0].mxu0
    %v482 = vadd.f32 0.0, %v481
    %v483 = vpop.f32.mrb[0].mxu0
    %484 = vmatprep.mubr.f32.mxu0 0.0
    %485 = vmatmul.mubr.f32.gmra.mrb[0].mxu0 %v409
    %v486 = vpop.f32.mrb[0].mxu0
    %v487 = vadd.f32 0.0, %v486
    %v488 = vpop.f32.mrb[0].mxu0
    %489 = vdwg.mxu0
    %v490 = vmul.f32 %v482, 0.25
    %v491 = vmul.f32 %v487, 0.25
    %v492 = vadd.f32 %v490, %v50
    %v493 = vadd.f32 %v491, %v51
    %v494 = vsel %vm184, %v492, -inf
    %495 = vmax.xlane.f32.xlu0 %v494
    %v496 = vpop.xlane.xlu0 %495
    %v497 = vsel %vm184, %v493, -inf
    %498 = vmax.xlane.f32.xlu0 %v497
    %v499 = vpop.xlane.xlu0 %498
    %v500 = vsub.f32 %v492, %v496
    %v501 = vsub.f32 %v493, %v499
    %v502 = vmul.f32 %v500, 1.442695
    %v503 = vpow.pop %v502
    %v504 = vmul.f32 %v501, 1.442695
    %v505 = vpow.pop %v504
    %v506 = vsel %vm184, %v503, 0.0
    %507 = vadd.xlane.f32.xlu0 %v506
    %v508 = vpop.xlane.xlu0 %507
    %v509 = vsel %vm184, %v505, 0.0
    %510 = vadd.xlane.f32.xlu0 %v509
    %v511 = vpop.xlane.xlu0 %510
    %v512 = vmul.f32 %v503, %v294
    %v513 = vmul.f32 %v505, %v294
    %v514 = vsel %vm184, %v512, 0.0
    %515 = vadd.xlane.f32.xlu0 %v514
    %v516 = vpop.xlane.xlu0 %515
    %v517 = vsel %vm184, %v513, 0.0
    %518 = vadd.xlane.f32.xlu0 %v517
    %v519 = vpop.xlane.xlu0 %518
    %v520 = vmul.f32 %v508, 1e-08
    %v521 = vmul.f32 %v511, 1e-08
    %v522 = vadd.f32 %v516, %v520
    %v523 = vadd.f32 %v519, %v521
    %v524 = vrcp.pop %v522
    %v525 = vrcp.pop %v523
    %v526 = vmul.f32 %v512, %v524
    %v527 = vmul.f32 %v513, %v525
    %528 = vrot.lane.b32.xlu0 %v170, 48
    %v529 = vpop.permute.xlu0 %528
    %530 = vrot.lane.b32.xlu0 %v175, 48
    %v531 = vpop.permute.xlu0 %530
    %v535 = vsel %vm184, %v526, 0
    %v538 = vsel %vm184, %v527, 0
    %540 = vmatprep.subr.mxu0 0.0
    %541 = vmatpush1.msra.mxu0 %v529
    %542 = vmatprep.subr.mxu0 0.0
    %543 = vmatpush1.msra.mxu0 %v531
    %544 = vmatprep.subr.mxu0 0.0
    %545 = vmatpush1.msra.mxu0 0.0
    %546 = vmatprep.subr.mxu0 0.0
    %547 = vmatpush1.msra.mxu0 0.0
    %548 = vmatprep.subr.mxu0 0.0
    %549 = vmatpush1.msra.mxu0 0.0
    %550 = vmatprep.subr.mxu0 0.0
    %551 = vmatpush1.msra.mxu0 0.0
    %552 = vmatprep.subr.mxu0 0.0
    %553 = vmatpush1.msra.mxu0 0.0
    %554 = vmatprep.subr.mxu0 0.0
    %555 = vmatpush1.msra.mxu0 0.0
    %556 = vmatprep.subr.mxu0 0.0
    %557 = vmatpush1.msra.mxu0 0.0
    %558 = vmatprep.subr.mxu0 0.0
    %559 = vmatpush1.msra.mxu0 0.0
    %560 = vmatprep.subr.mxu0 0.0
    %561 = vmatpush1.msra.mxu0 0.0
    %562 = vmatprep.subr.mxu0 0.0
    %563 = vmatpush1.msra.mxu0 0.0
    %564 = vmatprep.subr.mxu0 0.0
    %565 = vmatpush1.msra.mxu0 0.0
    %566 = vmatprep.subr.mxu0 0.0
    %567 = vmatpush1.msra.mxu0 0.0
    %568 = vmatprep.subr.mxu0 0.0
    %569 = vmatpush1.msra.mxu0 0.0
    %570 = vmatprep.subr.mxu0 0.0
    %571 = vmatpush1.msra.mxu0 0.0
    %572 = vmatprep.subr.mxu0 0.0
    %573 = vmatpush1.msra.mxu0 0.0
    %574 = vmatprep.subr.mxu0 0.0
    %575 = vmatpush1.msra.mxu0 0.0
    %576 = vmatprep.subr.mxu0 0.0
    %577 = vmatpush1.msra.mxu0 0.0
    %578 = vmatprep.subr.mxu0 0.0
    %579 = vmatpush1.msra.mxu0 0.0
    %580 = vmatprep.subr.mxu0 0.0
    %581 = vmatpush1.msra.mxu0 0.0
    %582 = vmatprep.subr.mxu0 0.0
    %583 = vmatpush1.msra.mxu0 0.0
    %584 = vmatprep.subr.mxu0 0.0
    %585 = vmatpush1.msra.mxu0 0.0
    %586 = vmatprep.subr.mxu0 0.0
    %587 = vmatpush1.msra.mxu0 0.0
    %588 = vmatprep.subr.mxu0 0.0
    %589 = vmatpush1.msra.mxu0 0.0
    %590 = vmatprep.subr.mxu0 0.0
    %591 = vmatpush1.msra.mxu0 0.0
    %592 = vmatprep.subr.mxu0 0.0
    %593 = vmatpush1.msra.mxu0 0.0
    %594 = vmatprep.subr.mxu0 0.0
    %595 = vmatpush1.msra.mxu0 0.0
    %596 = vmatprep.subr.mxu0 0.0
    %597 = vmatpush1.msra.mxu0 0.0
    %598 = vmatprep.subr.mxu0 0.0
    %599 = vmatpush1.msra.mxu0 0.0
    %600 = vmatprep.subr.mxu0 0.0
    %601 = vmatpush1.msra.mxu0 0.0
    %602 = vmatprep.subr.mxu0 0.0
    %603 = vmatpush1.msra.mxu0 0.0
    %604 = vmatprep.mubr.f32.mxu0 0.0
    %605 = vmatmul.mubr.f32.gmra.mrb[0].mxu0 %v535
    %v606 = vpop.f32.mrb[0].mxu0
    %v607 = vadd.f32 0.0, %v606
    %v608 = vpop.f32.mrb[0].mxu0
    %609 = vmatprep.mubr.f32.mxu0 0.0
    %610 = vmatmul.mubr.f32.gmra.mrb[0].mxu0 %v538
    %v611 = vpop.f32.mrb[0].mxu0
    %v612 = vadd.f32 0.0, %v611
    %v613 = vpop.f32.mrb[0].mxu0
    %614 = vdwg.mxu0
    %v616 = vsel %vm184, %v607, 0
    %v619 = vsel %vm184, %v612, 0
    %621 = vmatprep.subr.mxu0 0.0
    %622 = vmatpush1.msra.mxu0 %v81
    %623 = vmatprep.subr.mxu0 0.0
    %624 = vmatpush1.msra.mxu0 %v82
    %625 = vmatprep.subr.mxu0 0.0
    %626 = vmatpush1.msra.mxu0 0.0
    %627 = vmatprep.subr.mxu0 0.0
    %628 = vmatpush1.msra.mxu0 0.0
    %629 = vmatprep.subr.mxu0 0.0
    %630 = vmatpush1.msra.mxu0 0.0
    %631 = vmatprep.subr.mxu0 0.0
    %632 = vmatpush1.msra.mxu0 0.0
    %633 = vmatprep.subr.mxu0 0.0
    %634 = vmatpush1.msra.mxu0 0.0
    %635 = vmatprep.subr.mxu0 0.0
    %636 = vmatpush1.msra.mxu0 0.0
    %637 = vmatprep.subr.mxu0 0.0
    %638 = vmatpush1.msra.mxu0 0.0
    %639 = vmatprep.subr.mxu0 0.0
    %640 = vmatpush1.msra.mxu0 0.0
    %641 = vmatprep.subr.mxu0 0.0
    %642 = vmatpush1.msra.mxu0 0.0
    %643 = vmatprep.subr.mxu0 0.0
    %644 = vmatpush1.msra.mxu0 0.0
    %645 = vmatprep.subr.mxu0 0.0
    %646 = vmatpush1.msra.mxu0 0.0
    %647 = vmatprep.subr.mxu0 0.0
    %648 = vmatpush1.msra.mxu0 0.0
    %649 = vmatprep.subr.mxu0 0.0
    %650 = vmatpush1.msra.mxu0 0.0
    %651 = vmatprep.subr.mxu0 0.0
    %652 = vmatpush1.msra.mxu0 0.0
    %653 = vmatprep.subr.mxu0 0.0
    %654 = vmatpush1.msra.mxu0 0.0
    %655 = vmatprep.subr.mxu0 0.0
    %656 = vmatpush1.msra.mxu0 0.0
    %657 = vmatprep.subr.mxu0 0.0
    %658 = vmatpush1.msra.mxu0 0.0
    %659 = vmatprep.subr.mxu0 0.0
    %660 = vmatpush1.msra.mxu0 0.0
    %661 = vmatprep.subr.mxu0 0.0
    %662 = vmatpush1.msra.mxu0 0.0
    %663 = vmatprep.subr.mxu0 0.0
    %664 = vmatpush1.msra.mxu0 0.0
    %665 = vmatprep.subr.mxu0 0.0
    %666 = vmatpush1.msra.mxu0 0.0
    %667 = vmatprep.subr.mxu0 0.0
    %668 = vmatpush1.msra.mxu0 0.0
    %669 = vmatprep.subr.mxu0 0.0
    %670 = vmatpush1.msra.mxu0 0.0
    %671 = vmatprep.subr.mxu0 0.0
    %672 = vmatpush1.msra.mxu0 0.0
    %673 = vmatprep.subr.mxu0 0.0
    %674 = vmatpush1.msra.mxu0 0.0
    %675 = vmatprep.subr.mxu0 0.0
    %676 = vmatpush1.msra.mxu0 0.0
    %677 = vmatprep.subr.mxu0 0.0
    %678 = vmatpush1.msra.mxu0 0.0
    %679 = vmatprep.subr.mxu0 0.0
    %680 = vmatpush1.msra.mxu0 0.0
    %681 = vmatprep.subr.mxu0 0.0
    %682 = vmatpush1.msra.mxu0 0.0
    %683 = vmatprep.subr.mxu0 0.0
    %684 = vmatpush1.msra.mxu0 0.0
    %685 = vmatprep.mubr.f32.mxu0 0.0
    %686 = vmatmul.mubr.f32.gmra.mrb[0].mxu0 %v616
    %v687 = vpop.f32.mrb[0].mxu0
    %v688 = vadd.f32 0.0, %v687
    %v689 = vpop.f32.mrb[0].mxu0
    %690 = vmatprep.mubr.f32.mxu0 0.0
    %691 = vmatmul.mubr.f32.gmra.mrb[0].mxu0 %v619
    %v692 = vpop.f32.mrb[0].mxu0
    %v693 = vadd.f32 0.0, %v692
    %v694 = vpop.f32.mrb[0].mxu0
    %695 = vdwg.mxu0
    %v697 = vsel %vm184, %v391, 0
    %v700 = vsel %vm184, %v396, 0
    %702 = vmatprep.subr.mxu0 0.0
    %703 = vmatpush1.msra.mxu0 %v79
    %704 = vmatprep.subr.mxu0 0.0
    %705 = vmatpush1.msra.mxu0 %v80
    %706 = vmatprep.subr.mxu0 0.0
    %707 = vmatpush1.msra.mxu0 0.0
    %708 = vmatprep.subr.mxu0 0.0
    %709 = vmatpush1.msra.mxu0 0.0
    %710 = vmatprep.subr.mxu0 0.0
    %711 = vmatpush1.msra.mxu0 0.0
    %712 = vmatprep.subr.mxu0 0.0
    %713 = vmatpush1.msra.mxu0 0.0
    %714 = vmatprep.subr.mxu0 0.0
    %715 = vmatpush1.msra.mxu0 0.0
    %716 = vmatprep.subr.mxu0 0.0
    %717 = vmatpush1.msra.mxu0 0.0
    %718 = vmatprep.subr.mxu0 0.0
    %719 = vmatpush1.msra.mxu0 0.0
    %720 = vmatprep.subr.mxu0 0.0
    %721 = vmatpush1.msra.mxu0 0.0
    %722 = vmatprep.subr.mxu0 0.0
    %723 = vmatpush1.msra.mxu0 0.0
    %724 = vmatprep.subr.mxu0 0.0
    %725 = vmatpush1.msra.mxu0 0.0
    %726 = vmatprep.subr.mxu0 0.0
    %727 = vmatpush1.msra.mxu0 0.0
    %728 = vmatprep.subr.mxu0 0.0
    %729 = vmatpush1.msra.mxu0 0.0
    %730 = vmatprep.subr.mxu0 0.0
    %731 = vmatpush1.msra.mxu0 0.0
    %732 = vmatprep.subr.mxu0 0.0
    %733 = vmatpush1.msra.mxu0 0.0
    %734 = vmatprep.subr.mxu0 0.0
    %735 = vmatpush1.msra.mxu0 0.0
    %736 = vmatprep.subr.mxu0 0.0
    %737 = vmatpush1.msra.mxu0 0.0
    %738 = vmatprep.subr.mxu0 0.0
    %739 = vmatpush1.msra.mxu0 0.0
    %740 = vmatprep.subr.mxu0 0.0
    %741 = vmatpush1.msra.mxu0 0.0
    %742 = vmatprep.subr.mxu0 0.0
    %743 = vmatpush1.msra.mxu0 0.0
    %744 = vmatprep.subr.mxu0 0.0
    %745 = vmatpush1.msra.mxu0 0.0
    %746 = vmatprep.subr.mxu0 0.0
    %747 = vmatpush1.msra.mxu0 0.0
    %748 = vmatprep.subr.mxu0 0.0
    %749 = vmatpush1.msra.mxu0 0.0
    %750 = vmatprep.subr.mxu0 0.0
    %751 = vmatpush1.msra.mxu0 0.0
    %752 = vmatprep.subr.mxu0 0.0
    %753 = vmatpush1.msra.mxu0 0.0
    %754 = vmatprep.subr.mxu0 0.0
    %755 = vmatpush1.msra.mxu0 0.0
    %756 = vmatprep.subr.mxu0 0.0
    %757 = vmatpush1.msra.mxu0 0.0
    %758 = vmatprep.subr.mxu0 0.0
    %759 = vmatpush1.msra.mxu0 0.0
    %760 = vmatprep.subr.mxu0 0.0
    %761 = vmatpush1.msra.mxu0 0.0
    %762 = vmatprep.subr.mxu0 0.0
    %763 = vmatpush1.msra.mxu0 0.0
    %764 = vmatprep.subr.mxu0 0.0
    %765 = vmatpush1.msra.mxu0 0.0
    %766 = vmatprep.mubr.f32.mxu0 0.0
    %767 = vmatmul.mubr.f32.gmra.mrb[0].mxu0 %v697
    %v768 = vpop.f32.mrb[0].mxu0
    %v769 = vadd.f32 %v688, %v768
    %v770 = vpop.f32.mrb[0].mxu0
    %771 = vmatprep.mubr.f32.mxu0 0.0
    %772 = vmatmul.mubr.f32.gmra.mrb[0].mxu0 %v700
    %v773 = vpop.f32.mrb[0].mxu0
    %v774 = vadd.f32 %v693, %v773
    %v775 = vpop.f32.mrb[0].mxu0
    %776 = vdwg.mxu0
    %v777 = vlaneseq
    %v778 = vshrl.u32 %v777, 7
    %v779 = vsub.s32 1, %v778
    %v780 = vrot.slane %v91, %v779
    %v781 = vadd.f32 %v769, %v780
    %v782 = vadd.f32 %v774, %v780
    %v783 = vadd.f32 %v781, %v73
    %v784 = vadd.f32 %v782, %v74
    %v785 = vsel %vm96, %v783, 0.0
    %786 = vadd.xlane.f32.xlu0 %v785
    %v787 = vpop.xlane.xlu0 %786
    %v788 = vsel %vm96, %v784, 0.0
    %789 = vadd.xlane.f32.xlu0 %v788
    %v790 = vpop.xlane.xlu0 %789
    %v791 = vrcp.pop 32.0
    %v792 = vmul.f32 %v787, %v791
    %v793 = vmul.f32 %v790, %v791
    %v794 = vsub.f32 %v783, %v792
    %v795 = vsub.f32 %v784, %v793
    %v796 = vmul.f32 %v794, %v794
    %v797 = vmul.f32 %v795, %v795
    %v798 = vsel %vm96, %v796, 0.0
    %799 = vadd.xlane.f32.xlu0 %v798
    %v800 = vpop.xlane.xlu0 %799
    %v801 = vsel %vm96, %v797, 0.0
    %802 = vadd.xlane.f32.xlu0 %v801
    %v803 = vpop.xlane.xlu0 %802
    %v804 = vmul.f32 %v800, %v791
    %v805 = vmul.f32 %v803, %v791
    %v806 = vadd.f32 %v804, 1e-05
    %v807 = vadd.f32 %v805, 1e-05
    %v808 = vrsqrt.pop %v806
    %v809 = vrsqrt.pop %v807
    %v810 = vmul.f32 %v794, %v808
    %v811 = vmul.f32 %v795, %v809
    %v812 = vlaneseq
    %v813 = vshrl.u32 %v812, 7
    %v814 = vsub.s32 2, %v813
    %v815 = vrot.slane %v91, %v814
    %v816 = vmul.f32 %v810, %v815
    %v817 = vmul.f32 %v811, %v815
    %v818 = vlaneseq
    %v819 = vshrl.u32 %v818, 7
    %v820 = vsub.s32 3, %v819
    %v821 = vrot.slane %v91, %v820
    %v822 = vadd.f32 %v816, %v821
    %v823 = vadd.f32 %v817, %v821
    %825 = vset.pattern.permute.xlu0 0
    %826 = vperm.xlu0 %825, %v53
    %v827 = vpop.permute.xlu0 %826
    %830 = vset.pattern.permute.xlu0 0
    %831 = vperm.xlu0 %830, %v54
    %v832 = vpop.permute.xlu0 %831
    %v834 = vmul.f32 %v822, %v827
    %v835 = vmul.f32 %v823, %v832
    %v836 = vrot.slane %v834, 4
    %v837 = vrot.slane %v835, 4
    %v838 = vlaneseq
    %v839 = vshrl.u32 %v838, 7
    %vm840 = vcmp.lt.s32.totalorder %v839, 4
    %v841 = vsel %vm840, %v836, %v837
    %v842 = vsel %vm840, %v837, %v836
    %844 = vset.pattern.permute.xlu0 0
    %845 = vperm.xlu0 %844, %v55
    %v846 = vpop.permute.xlu0 %845
    %849 = vset.pattern.permute.xlu0 0
    %850 = vperm.xlu0 %849, %v56
    %v851 = vpop.permute.xlu0 %850
    %v853 = vmul.f32 %v842, %v846
    %v854 = vmul.f32 %v841, %v851
    %v855 = vld [vmem:[#allocation2] sm:$0xff]
    %v856 = vld [vmem:[#allocation2 + $0x8] sm:$0xff]
    %v857 = vld [vmem:[#allocation2 + $0x10] sm:$0xff]
    %v858 = vld [vmem:[#allocation2 + $0x18] sm:$0xff]
    %v859 = vrot.slane %v834, 5
    %v860 = vrot.slane %v835, 5
    %vm861 = vcmp.lt.s32.totalorder %v839, 3
    %v862 = vsel %vm861, %v859, %v860
    %v863 = vsel %vm861, %v860, %v859
    %865 = vset.pattern.permute.xlu0 0
    %866 = vperm.xlu0 %865, %v57
    %v867 = vpop.permute.xlu0 %866
    %870 = vset.pattern.permute.xlu0 0
    %871 = vperm.xlu0 %870, %v58
    %v872 = vpop.permute.xlu0 %871
    %v874 = vmul.f32 %v863, %v867
    %v875 = vmul.f32 %v862, %v872
    %s876 = scalar_lea.vmem [#allocation2], 32
    %v877 = vld [vmem:[%s876] sm:$0xff]
    %v878 = vld [vmem:[%s876 + $0x8] sm:$0xff]
    %v879 = vld [vmem:[%s876 + $0x10] sm:$0xff]
    %v880 = vld [vmem:[%s876 + $0x18] sm:$0xff]
    %v882 = vsel %vm96, %v874, 0
    %v885 = vsel %vm96, %v875, 0
    %887 = vmatprep.subr.mxu0 0.0
    %888 = vmatpush1.msra.mxu0 %v877
    %889 = vmatprep.subr.mxu0 0.0
    %890 = vmatpush1.msra.mxu0 %v878
    %891 = vmatprep.subr.mxu0 0.0
    %892 = vmatpush1.msra.mxu0 %v879
    %893 = vmatprep.subr.mxu0 0.0
    %894 = vmatpush1.msra.mxu0 %v880
    %895 = vmatprep.subr.mxu0 0.0
    %896 = vmatpush1.msra.mxu0 0.0
    %897 = vmatprep.subr.mxu0 0.0
    %898 = vmatpush1.msra.mxu0 0.0
    %899 = vmatprep.subr.mxu0 0.0
    %900 = vmatpush1.msra.mxu0 0.0
    %901 = vmatprep.subr.mxu0 0.0
    %902 = vmatpush1.msra.mxu0 0.0
    %903 = vmatprep.subr.mxu0 0.0
    %904 = vmatpush1.msra.mxu0 0.0
    %905 = vmatprep.subr.mxu0 0.0
    %906 = vmatpush1.msra.mxu0 0.0
    %907 = vmatprep.subr.mxu0 0.0
    %908 = vmatpush1.msra.mxu0 0.0
    %909 = vmatprep.subr.mxu0 0.0
    %910 = vmatpush1.msra.mxu0 0.0
    %911 = vmatprep.subr.mxu0 0.0
    %912 = vmatpush1.msra.mxu0 0.0
    %913 = vmatprep.subr.mxu0 0.0
    %914 = vmatpush1.msra.mxu0 0.0
    %915 = vmatprep.subr.mxu0 0.0
    %916 = vmatpush1.msra.mxu0 0.0
    %917 = vmatprep.subr.mxu0 0.0
    %918 = vmatpush1.msra.mxu0 0.0
    %919 = vmatprep.subr.mxu0 0.0
    %920 = vmatpush1.msra.mxu0 0.0
    %921 = vmatprep.subr.mxu0 0.0
    %922 = vmatpush1.msra.mxu0 0.0
    %923 = vmatprep.subr.mxu0 0.0
    %924 = vmatpush1.msra.mxu0 0.0
    %925 = vmatprep.subr.mxu0 0.0
    %926 = vmatpush1.msra.mxu0 0.0
    %927 = vmatprep.subr.mxu0 0.0
    %928 = vmatpush1.msra.mxu0 0.0
    %929 = vmatprep.subr.mxu0 0.0
    %930 = vmatpush1.msra.mxu0 0.0
    %931 = vmatprep.subr.mxu0 0.0
    %932 = vmatpush1.msra.mxu0 0.0
    %933 = vmatprep.subr.mxu0 0.0
    %934 = vmatpush1.msra.mxu0 0.0
    %935 = vmatprep.subr.mxu0 0.0
    %936 = vmatpush1.msra.mxu0 0.0
    %937 = vmatprep.subr.mxu0 0.0
    %938 = vmatpush1.msra.mxu0 0.0
    %939 = vmatprep.subr.mxu0 0.0
    %940 = vmatpush1.msra.mxu0 0.0
    %941 = vmatprep.subr.mxu0 0.0
    %942 = vmatpush1.msra.mxu0 0.0
    %943 = vmatprep.subr.mxu0 0.0
    %944 = vmatpush1.msra.mxu0 0.0
    %945 = vmatprep.subr.mxu0 0.0
    %946 = vmatpush1.msra.mxu0 0.0
    %947 = vmatprep.subr.mxu0 0.0
    %948 = vmatpush1.msra.mxu0 0.0
    %949 = vmatprep.subr.mxu0 0.0
    %950 = vmatpush1.msra.mxu0 0.0
    %951 = vmatprep.mubr.f32.mxu0 0.0
    %952 = vmatmul.mubr.f32.gmra.mrb[0].mxu0 %v882
    %v953 = vpop.f32.mrb[0].mxu0
    %v954 = vadd.f32 0.0, %v953
    %v955 = vpop.f32.mrb[0].mxu0
    %956 = vmatprep.mubr.f32.mxu0 0.0
    %957 = vmatmul.mubr.f32.gmra.mrb[0].mxu0 %v885
    %v958 = vpop.f32.mrb[0].mxu0
    %v959 = vadd.f32 0.0, %v958
    %v960 = vpop.f32.mrb[0].mxu0
    %961 = vdwg.mxu0
    %v963 = vsel %vm96, %v853, 0
    %v966 = vsel %vm96, %v854, 0
    %968 = vmatprep.subr.mxu0 0.0
    %969 = vmatpush1.msra.mxu0 %v855
    %970 = vmatprep.subr.mxu0 0.0
    %971 = vmatpush1.msra.mxu0 %v856
    %972 = vmatprep.subr.mxu0 0.0
    %973 = vmatpush1.msra.mxu0 %v857
    %974 = vmatprep.subr.mxu0 0.0
    %975 = vmatpush1.msra.mxu0 %v858
    %976 = vmatprep.subr.mxu0 0.0
    %977 = vmatpush1.msra.mxu0 0.0
    %978 = vmatprep.subr.mxu0 0.0
    %979 = vmatpush1.msra.mxu0 0.0
    %980 = vmatprep.subr.mxu0 0.0
    %981 = vmatpush1.msra.mxu0 0.0
    %982 = vmatprep.subr.mxu0 0.0
    %983 = vmatpush1.msra.mxu0 0.0
    %984 = vmatprep.subr.mxu0 0.0
    %985 = vmatpush1.msra.mxu0 0.0
    %986 = vmatprep.subr.mxu0 0.0
    %987 = vmatpush1.msra.mxu0 0.0
    %988 = vmatprep.subr.mxu0 0.0
    %989 = vmatpush1.msra.mxu0 0.0
    %990 = vmatprep.subr.mxu0 0.0
    %991 = vmatpush1.msra.mxu0 0.0
    %992 = vmatprep.subr.mxu0 0.0
    %993 = vmatpush1.msra.mxu0 0.0
    %994 = vmatprep.subr.mxu0 0.0
    %995 = vmatpush1.msra.mxu0 0.0
    %996 = vmatprep.subr.mxu0 0.0
    %997 = vmatpush1.msra.mxu0 0.0
    %998 = vmatprep.subr.mxu0 0.0
    %999 = vmatpush1.msra.mxu0 0.0
    %1000 = vmatprep.subr.mxu0 0.0
    %1001 = vmatpush1.msra.mxu0 0.0
    %1002 = vmatprep.subr.mxu0 0.0
    %1003 = vmatpush1.msra.mxu0 0.0
    %1004 = vmatprep.subr.mxu0 0.0
    %1005 = vmatpush1.msra.mxu0 0.0
    %1006 = vmatprep.subr.mxu0 0.0
    %1007 = vmatpush1.msra.mxu0 0.0
    %1008 = vmatprep.subr.mxu0 0.0
    %1009 = vmatpush1.msra.mxu0 0.0
    %1010 = vmatprep.subr.mxu0 0.0
    %1011 = vmatpush1.msra.mxu0 0.0
    %1012 = vmatprep.subr.mxu0 0.0
    %1013 = vmatpush1.msra.mxu0 0.0
    %1014 = vmatprep.subr.mxu0 0.0
    %1015 = vmatpush1.msra.mxu0 0.0
    %1016 = vmatprep.subr.mxu0 0.0
    %1017 = vmatpush1.msra.mxu0 0.0
    %1018 = vmatprep.subr.mxu0 0.0
    %1019 = vmatpush1.msra.mxu0 0.0
    %1020 = vmatprep.subr.mxu0 0.0
    %1021 = vmatpush1.msra.mxu0 0.0
    %1022 = vmatprep.subr.mxu0 0.0
    %1023 = vmatpush1.msra.mxu0 0.0
    %1024 = vmatprep.subr.mxu0 0.0
    %1025 = vmatpush1.msra.mxu0 0.0
    %1026 = vmatprep.subr.mxu0 0.0
    %1027 = vmatpush1.msra.mxu0 0.0
    %1028 = vmatprep.subr.mxu0 0.0
    %1029 = vmatpush1.msra.mxu0 0.0
    %1030 = vmatprep.subr.mxu0 0.0
    %1031 = vmatpush1.msra.mxu0 0.0
    %1032 = vmatprep.mubr.f32.mxu0 0.0
    %1033 = vmatmul.mubr.f32.gmra.mrb[0].mxu0 %v963
    %v1034 = vpop.f32.mrb[0].mxu0
    %v1035 = vadd.f32 %v954, %v1034
    %v1036 = vpop.f32.mrb[0].mxu0
    %1037 = vmatprep.mubr.f32.mxu0 0.0
    %1038 = vmatmul.mubr.f32.gmra.mrb[0].mxu0 %v966
    %v1039 = vpop.f32.mrb[0].mxu0
    %v1040 = vadd.f32 %v959, %v1039
    %v1041 = vpop.f32.mrb[0].mxu0
    %1042 = vdwg.mxu0
    %v1043 = vrot.slane %v834, 6
    %v1044 = vrot.slane %v835, 6
    %vm1045 = vcmp.lt.s32.totalorder %v839, 2
    %v1046 = vsel %vm1045, %v1043, %v1044
    %v1047 = vsel %vm1045, %v1044, %v1043
    %1049 = vset.pattern.permute.xlu0 0
    %1050 = vperm.xlu0 %1049, %v59
    %v1051 = vpop.permute.xlu0 %1050
    %1054 = vset.pattern.permute.xlu0 0
    %1055 = vperm.xlu0 %1054, %v60
    %v1056 = vpop.permute.xlu0 %1055
    %v1058 = vmul.f32 %v1047, %v1051
    %v1059 = vmul.f32 %v1046, %v1056
    %s1060 = scalar_lea.vmem [#allocation2], 64
    %v1061 = vld [vmem:[%s1060] sm:$0xff]
    %v1062 = vld [vmem:[%s1060 + $0x8] sm:$0xff]
    %v1063 = vld [vmem:[%s1060 + $0x10] sm:$0xff]
    %v1064 = vld [vmem:[%s1060 + $0x18] sm:$0xff]
    %v1066 = vsel %vm96, %v1058, 0
    %v1069 = vsel %vm96, %v1059, 0
    %1071 = vmatprep.subr.mxu0 0.0
    %1072 = vmatpush1.msra.mxu0 %v1061
    %1073 = vmatprep.subr.mxu0 0.0
    %1074 = vmatpush1.msra.mxu0 %v1062
    %1075 = vmatprep.subr.mxu0 0.0
    %1076 = vmatpush1.msra.mxu0 %v1063
    %1077 = vmatprep.subr.mxu0 0.0
    %1078 = vmatpush1.msra.mxu0 %v1064
    %1079 = vmatprep.subr.mxu0 0.0
    %1080 = vmatpush1.msra.mxu0 0.0
    %1081 = vmatprep.subr.mxu0 0.0
    %1082 = vmatpush1.msra.mxu0 0.0
    %1083 = vmatprep.subr.mxu0 0.0
    %1084 = vmatpush1.msra.mxu0 0.0
    %1085 = vmatprep.subr.mxu0 0.0
    %1086 = vmatpush1.msra.mxu0 0.0
    %1087 = vmatprep.subr.mxu0 0.0
    %1088 = vmatpush1.msra.mxu0 0.0
    %1089 = vmatprep.subr.mxu0 0.0
    %1090 = vmatpush1.msra.mxu0 0.0
    %1091 = vmatprep.subr.mxu0 0.0
    %1092 = vmatpush1.msra.mxu0 0.0
    %1093 = vmatprep.subr.mxu0 0.0
    %1094 = vmatpush1.msra.mxu0 0.0
    %1095 = vmatprep.subr.mxu0 0.0
    %1096 = vmatpush1.msra.mxu0 0.0
    %1097 = vmatprep.subr.mxu0 0.0
    %1098 = vmatpush1.msra.mxu0 0.0
    %1099 = vmatprep.subr.mxu0 0.0
    %1100 = vmatpush1.msra.mxu0 0.0
    %1101 = vmatprep.subr.mxu0 0.0
    %1102 = vmatpush1.msra.mxu0 0.0
    %1103 = vmatprep.subr.mxu0 0.0
    %1104 = vmatpush1.msra.mxu0 0.0
    %1105 = vmatprep.subr.mxu0 0.0
    %1106 = vmatpush1.msra.mxu0 0.0
    %1107 = vmatprep.subr.mxu0 0.0
    %1108 = vmatpush1.msra.mxu0 0.0
    %1109 = vmatprep.subr.mxu0 0.0
    %1110 = vmatpush1.msra.mxu0 0.0
    %1111 = vmatprep.subr.mxu0 0.0
    %1112 = vmatpush1.msra.mxu0 0.0
    %1113 = vmatprep.subr.mxu0 0.0
    %1114 = vmatpush1.msra.mxu0 0.0
    %1115 = vmatprep.subr.mxu0 0.0
    %1116 = vmatpush1.msra.mxu0 0.0
    %1117 = vmatprep.subr.mxu0 0.0
    %1118 = vmatpush1.msra.mxu0 0.0
    %1119 = vmatprep.subr.mxu0 0.0
    %1120 = vmatpush1.msra.mxu0 0.0
    %1121 = vmatprep.subr.mxu0 0.0
    %1122 = vmatpush1.msra.mxu0 0.0
    %1123 = vmatprep.subr.mxu0 0.0
    %1124 = vmatpush1.msra.mxu0 0.0
    %1125 = vmatprep.subr.mxu0 0.0
    %1126 = vmatpush1.msra.mxu0 0.0
    %1127 = vmatprep.subr.mxu0 0.0
    %1128 = vmatpush1.msra.mxu0 0.0
    %1129 = vmatprep.subr.mxu0 0.0
    %1130 = vmatpush1.msra.mxu0 0.0
    %1131 = vmatprep.subr.mxu0 0.0
    %1132 = vmatpush1.msra.mxu0 0.0
    %1133 = vmatprep.subr.mxu0 0.0
    %1134 = vmatpush1.msra.mxu0 0.0
    %1135 = vmatprep.mubr.f32.mxu0 0.0
    %1136 = vmatmul.mubr.f32.gmra.mrb[0].mxu0 %v1066
    %v1137 = vpop.f32.mrb[0].mxu0
    %v1138 = vadd.f32 0.0, %v1137
    %v1139 = vpop.f32.mrb[0].mxu0
    %1140 = vmatprep.mubr.f32.mxu0 0.0
    %1141 = vmatmul.mubr.f32.gmra.mrb[0].mxu0 %v1069
    %v1142 = vpop.f32.mrb[0].mxu0
    %v1143 = vadd.f32 0.0, %v1142
    %v1144 = vpop.f32.mrb[0].mxu0
    %1145 = vdwg.mxu0
    %v1146 = vadd.f32 %v1035, %v1138
    %v1147 = vadd.f32 %v1040, %v1143
    %v1148 = vrot.slane %v834, 7
    %v1149 = vrot.slane %v835, 7
    %vm1150 = vcmp.lt.s32.totalorder %v839, 1
    %v1151 = vsel %vm1150, %v1148, %v1149
    %v1152 = vsel %vm1150, %v1149, %v1148
    %1154 = vset.pattern.permute.xlu0 0
    %1155 = vperm.xlu0 %1154, %v61
    %v1156 = vpop.permute.xlu0 %1155
    %1159 = vset.pattern.permute.xlu0 0
    %1160 = vperm.xlu0 %1159, %v62
    %v1161 = vpop.permute.xlu0 %1160
    %v1163 = vmul.f32 %v1152, %v1156
    %v1164 = vmul.f32 %v1151, %v1161
    %s1165 = scalar_lea.vmem [#allocation2], 96
    %v1166 = vld [vmem:[%s1165] sm:$0xff]
    %v1167 = vld [vmem:[%s1165 + $0x8] sm:$0xff]
    %v1168 = vld [vmem:[%s1165 + $0x10] sm:$0xff]
    %v1169 = vld [vmem:[%s1165 + $0x18] sm:$0xff]
    %v1171 = vsel %vm96, %v1163, 0
    %v1174 = vsel %vm96, %v1164, 0
    %1176 = vmatprep.subr.mxu0 0.0
    %1177 = vmatpush1.msra.mxu0 %v1166
    %1178 = vmatprep.subr.mxu0 0.0
    %1179 = vmatpush1.msra.mxu0 %v1167
    %1180 = vmatprep.subr.mxu0 0.0
    %1181 = vmatpush1.msra.mxu0 %v1168
    %1182 = vmatprep.subr.mxu0 0.0
    %1183 = vmatpush1.msra.mxu0 %v1169
    %1184 = vmatprep.subr.mxu0 0.0
    %1185 = vmatpush1.msra.mxu0 0.0
    %1186 = vmatprep.subr.mxu0 0.0
    %1187 = vmatpush1.msra.mxu0 0.0
    %1188 = vmatprep.subr.mxu0 0.0
    %1189 = vmatpush1.msra.mxu0 0.0
    %1190 = vmatprep.subr.mxu0 0.0
    %1191 = vmatpush1.msra.mxu0 0.0
    %1192 = vmatprep.subr.mxu0 0.0
    %1193 = vmatpush1.msra.mxu0 0.0
    %1194 = vmatprep.subr.mxu0 0.0
    %1195 = vmatpush1.msra.mxu0 0.0
    %1196 = vmatprep.subr.mxu0 0.0
    %1197 = vmatpush1.msra.mxu0 0.0
    %1198 = vmatprep.subr.mxu0 0.0
    %1199 = vmatpush1.msra.mxu0 0.0
    %1200 = vmatprep.subr.mxu0 0.0
    %1201 = vmatpush1.msra.mxu0 0.0
    %1202 = vmatprep.subr.mxu0 0.0
    %1203 = vmatpush1.msra.mxu0 0.0
    %1204 = vmatprep.subr.mxu0 0.0
    %1205 = vmatpush1.msra.mxu0 0.0
    %1206 = vmatprep.subr.mxu0 0.0
    %1207 = vmatpush1.msra.mxu0 0.0
    %1208 = vmatprep.subr.mxu0 0.0
    %1209 = vmatpush1.msra.mxu0 0.0
    %1210 = vmatprep.subr.mxu0 0.0
    %1211 = vmatpush1.msra.mxu0 0.0
    %1212 = vmatprep.subr.mxu0 0.0
    %1213 = vmatpush1.msra.mxu0 0.0
    %1214 = vmatprep.subr.mxu0 0.0
    %1215 = vmatpush1.msra.mxu0 0.0
    %1216 = vmatprep.subr.mxu0 0.0
    %1217 = vmatpush1.msra.mxu0 0.0
    %1218 = vmatprep.subr.mxu0 0.0
    %1219 = vmatpush1.msra.mxu0 0.0
    %1220 = vmatprep.subr.mxu0 0.0
    %1221 = vmatpush1.msra.mxu0 0.0
    %1222 = vmatprep.subr.mxu0 0.0
    %1223 = vmatpush1.msra.mxu0 0.0
    %1224 = vmatprep.subr.mxu0 0.0
    %1225 = vmatpush1.msra.mxu0 0.0
    %1226 = vmatprep.subr.mxu0 0.0
    %1227 = vmatpush1.msra.mxu0 0.0
    %1228 = vmatprep.subr.mxu0 0.0
    %1229 = vmatpush1.msra.mxu0 0.0
    %1230 = vmatprep.subr.mxu0 0.0
    %1231 = vmatpush1.msra.mxu0 0.0
    %1232 = vmatprep.subr.mxu0 0.0
    %1233 = vmatpush1.msra.mxu0 0.0
    %1234 = vmatprep.subr.mxu0 0.0
    %1235 = vmatpush1.msra.mxu0 0.0
    %1236 = vmatprep.subr.mxu0 0.0
    %1237 = vmatpush1.msra.mxu0 0.0
    %1238 = vmatprep.subr.mxu0 0.0
    %1239 = vmatpush1.msra.mxu0 0.0
    %1240 = vmatprep.mubr.f32.mxu0 0.0
    %1241 = vmatmul.mubr.f32.gmra.mrb[0].mxu0 %v1171
    %v1242 = vpop.f32.mrb[0].mxu0
    %v1243 = vadd.f32 0.0, %v1242
    %v1244 = vpop.f32.mrb[0].mxu0
    %1245 = vmatprep.mubr.f32.mxu0 0.0
    %1246 = vmatmul.mubr.f32.gmra.mrb[0].mxu0 %v1174
    %v1247 = vpop.f32.mrb[0].mxu0
    %v1248 = vadd.f32 0.0, %v1247
    %v1249 = vpop.f32.mrb[0].mxu0
    %1250 = vdwg.mxu0
    %v1251 = vadd.f32 %v1146, %v1243
    %v1252 = vadd.f32 %v1147, %v1248
    %1254 = vset.pattern.permute.xlu0 0
    %1255 = vperm.xlu0 %1254, %v63
    %v1256 = vpop.permute.xlu0 %1255
    %1259 = vset.pattern.permute.xlu0 0
    %1260 = vperm.xlu0 %1259, %v64
    %v1261 = vpop.permute.xlu0 %1260
    %v1263 = vmul.f32 %v834, %v1256
    %v1264 = vmul.f32 %v835, %v1261
    %s1265 = scalar_lea.vmem [#allocation2], 128
    %v1266 = vld [vmem:[%s1265] sm:$0xff]
    %v1267 = vld [vmem:[%s1265 + $0x8] sm:$0xff]
    %v1268 = vld [vmem:[%s1265 + $0x10] sm:$0xff]
    %v1269 = vld [vmem:[%s1265 + $0x18] sm:$0xff]
    %v1271 = vsel %vm96, %v1263, 0
    %v1274 = vsel %vm96, %v1264, 0
    %1276 = vmatprep.subr.mxu0 0.0
    %1277 = vmatpush1.msra.mxu0 %v1266
    %1278 = vmatprep.subr.mxu0 0.0
    %1279 = vmatpush1.msra.mxu0 %v1267
    %1280 = vmatprep.subr.mxu0 0.0
    %1281 = vmatpush1.msra.mxu0 %v1268
    %1282 = vmatprep.subr.mxu0 0.0
    %1283 = vmatpush1.msra.mxu0 %v1269
    %1284 = vmatprep.subr.mxu0 0.0
    %1285 = vmatpush1.msra.mxu0 0.0
    %1286 = vmatprep.subr.mxu0 0.0
    %1287 = vmatpush1.msra.mxu0 0.0
    %1288 = vmatprep.subr.mxu0 0.0
    %1289 = vmatpush1.msra.mxu0 0.0
    %1290 = vmatprep.subr.mxu0 0.0
    %1291 = vmatpush1.msra.mxu0 0.0
    %1292 = vmatprep.subr.mxu0 0.0
    %1293 = vmatpush1.msra.mxu0 0.0
    %1294 = vmatprep.subr.mxu0 0.0
    %1295 = vmatpush1.msra.mxu0 0.0
    %1296 = vmatprep.subr.mxu0 0.0
    %1297 = vmatpush1.msra.mxu0 0.0
    %1298 = vmatprep.subr.mxu0 0.0
    %1299 = vmatpush1.msra.mxu0 0.0
    %1300 = vmatprep.subr.mxu0 0.0
    %1301 = vmatpush1.msra.mxu0 0.0
    %1302 = vmatprep.subr.mxu0 0.0
    %1303 = vmatpush1.msra.mxu0 0.0
    %1304 = vmatprep.subr.mxu0 0.0
    %1305 = vmatpush1.msra.mxu0 0.0
    %1306 = vmatprep.subr.mxu0 0.0
    %1307 = vmatpush1.msra.mxu0 0.0
    %1308 = vmatprep.subr.mxu0 0.0
    %1309 = vmatpush1.msra.mxu0 0.0
    %1310 = vmatprep.subr.mxu0 0.0
    %1311 = vmatpush1.msra.mxu0 0.0
    %1312 = vmatprep.subr.mxu0 0.0
    %1313 = vmatpush1.msra.mxu0 0.0
    %1314 = vmatprep.subr.mxu0 0.0
    %1315 = vmatpush1.msra.mxu0 0.0
    %1316 = vmatprep.subr.mxu0 0.0
    %1317 = vmatpush1.msra.mxu0 0.0
    %1318 = vmatprep.subr.mxu0 0.0
    %1319 = vmatpush1.msra.mxu0 0.0
    %1320 = vmatprep.subr.mxu0 0.0
    %1321 = vmatpush1.msra.mxu0 0.0
    %1322 = vmatprep.subr.mxu0 0.0
    %1323 = vmatpush1.msra.mxu0 0.0
    %1324 = vmatprep.subr.mxu0 0.0
    %1325 = vmatpush1.msra.mxu0 0.0
    %1326 = vmatprep.subr.mxu0 0.0
    %1327 = vmatpush1.msra.mxu0 0.0
    %1328 = vmatprep.subr.mxu0 0.0
    %1329 = vmatpush1.msra.mxu0 0.0
    %1330 = vmatprep.subr.mxu0 0.0
    %1331 = vmatpush1.msra.mxu0 0.0
    %1332 = vmatprep.subr.mxu0 0.0
    %1333 = vmatpush1.msra.mxu0 0.0
    %1334 = vmatprep.subr.mxu0 0.0
    %1335 = vmatpush1.msra.mxu0 0.0
    %1336 = vmatprep.subr.mxu0 0.0
    %1337 = vmatpush1.msra.mxu0 0.0
    %1338 = vmatprep.subr.mxu0 0.0
    %1339 = vmatpush1.msra.mxu0 0.0
    %1340 = vmatprep.mubr.f32.mxu0 0.0
    %1341 = vmatmul.mubr.f32.gmra.mrb[0].mxu0 %v1271
    %v1342 = vpop.f32.mrb[0].mxu0
    %v1343 = vadd.f32 0.0, %v1342
    %v1344 = vpop.f32.mrb[0].mxu0
    %1345 = vmatprep.mubr.f32.mxu0 0.0
    %1346 = vmatmul.mubr.f32.gmra.mrb[0].mxu0 %v1274
    %v1347 = vpop.f32.mrb[0].mxu0
    %v1348 = vadd.f32 0.0, %v1347
    %v1349 = vpop.f32.mrb[0].mxu0
    %1350 = vdwg.mxu0
    %v1351 = vadd.f32 %v1251, %v1343
    %v1352 = vadd.f32 %v1252, %v1348
    %v1353 = vrot.slane %v834, 1
    %v1354 = vrot.slane %v835, 1
    %vm1355 = vcmp.lt.s32.totalorder %v839, 7
    %v1356 = vsel %vm1355, %v1353, %v1354
    %v1357 = vsel %vm1355, %v1354, %v1353
    %1359 = vset.pattern.permute.xlu0 0
    %1360 = vperm.xlu0 %1359, %v65
    %v1361 = vpop.permute.xlu0 %1360
    %1364 = vset.pattern.permute.xlu0 0
    %1365 = vperm.xlu0 %1364, %v66
    %v1366 = vpop.permute.xlu0 %1365
    %v1368 = vmul.f32 %v1356, %v1361
    %v1369 = vmul.f32 %v1357, %v1366
    %s1370 = scalar_lea.vmem [#allocation2], 160
    %v1371 = vld [vmem:[%s1370] sm:$0xff]
    %v1372 = vld [vmem:[%s1370 + $0x8] sm:$0xff]
    %v1373 = vld [vmem:[%s1370 + $0x10] sm:$0xff]
    %v1374 = vld [vmem:[%s1370 + $0x18] sm:$0xff]
    %v1376 = vsel %vm96, %v1368, 0
    %v1379 = vsel %vm96, %v1369, 0
    %1381 = vmatprep.subr.mxu0 0.0
    %1382 = vmatpush1.msra.mxu0 %v1371
    %1383 = vmatprep.subr.mxu0 0.0
    %1384 = vmatpush1.msra.mxu0 %v1372
    %1385 = vmatprep.subr.mxu0 0.0
    %1386 = vmatpush1.msra.mxu0 %v1373
    %1387 = vmatprep.subr.mxu0 0.0
    %1388 = vmatpush1.msra.mxu0 %v1374
    %1389 = vmatprep.subr.mxu0 0.0
    %1390 = vmatpush1.msra.mxu0 0.0
    %1391 = vmatprep.subr.mxu0 0.0
    %1392 = vmatpush1.msra.mxu0 0.0
    %1393 = vmatprep.subr.mxu0 0.0
    %1394 = vmatpush1.msra.mxu0 0.0
    %1395 = vmatprep.subr.mxu0 0.0
    %1396 = vmatpush1.msra.mxu0 0.0
    %1397 = vmatprep.subr.mxu0 0.0
    %1398 = vmatpush1.msra.mxu0 0.0
    %1399 = vmatprep.subr.mxu0 0.0
    %1400 = vmatpush1.msra.mxu0 0.0
    %1401 = vmatprep.subr.mxu0 0.0
    %1402 = vmatpush1.msra.mxu0 0.0
    %1403 = vmatprep.subr.mxu0 0.0
    %1404 = vmatpush1.msra.mxu0 0.0
    %1405 = vmatprep.subr.mxu0 0.0
    %1406 = vmatpush1.msra.mxu0 0.0
    %1407 = vmatprep.subr.mxu0 0.0
    %1408 = vmatpush1.msra.mxu0 0.0
    %1409 = vmatprep.subr.mxu0 0.0
    %1410 = vmatpush1.msra.mxu0 0.0
    %1411 = vmatprep.subr.mxu0 0.0
    %1412 = vmatpush1.msra.mxu0 0.0
    %1413 = vmatprep.subr.mxu0 0.0
    %1414 = vmatpush1.msra.mxu0 0.0
    %1415 = vmatprep.subr.mxu0 0.0
    %1416 = vmatpush1.msra.mxu0 0.0
    %1417 = vmatprep.subr.mxu0 0.0
    %1418 = vmatpush1.msra.mxu0 0.0
    %1419 = vmatprep.subr.mxu0 0.0
    %1420 = vmatpush1.msra.mxu0 0.0
    %1421 = vmatprep.subr.mxu0 0.0
    %1422 = vmatpush1.msra.mxu0 0.0
    %1423 = vmatprep.subr.mxu0 0.0
    %1424 = vmatpush1.msra.mxu0 0.0
    %1425 = vmatprep.subr.mxu0 0.0
    %1426 = vmatpush1.msra.mxu0 0.0
    %1427 = vmatprep.subr.mxu0 0.0
    %1428 = vmatpush1.msra.mxu0 0.0
    %1429 = vmatprep.subr.mxu0 0.0
    %1430 = vmatpush1.msra.mxu0 0.0
    %1431 = vmatprep.subr.mxu0 0.0
    %1432 = vmatpush1.msra.mxu0 0.0
    %1433 = vmatprep.subr.mxu0 0.0
    %1434 = vmatpush1.msra.mxu0 0.0
    %1435 = vmatprep.subr.mxu0 0.0
    %1436 = vmatpush1.msra.mxu0 0.0
    %1437 = vmatprep.subr.mxu0 0.0
    %1438 = vmatpush1.msra.mxu0 0.0
    %1439 = vmatprep.subr.mxu0 0.0
    %1440 = vmatpush1.msra.mxu0 0.0
    %1441 = vmatprep.subr.mxu0 0.0
    %1442 = vmatpush1.msra.mxu0 0.0
    %1443 = vmatprep.subr.mxu0 0.0
    %1444 = vmatpush1.msra.mxu0 0.0
    %1445 = vmatprep.mubr.f32.mxu0 0.0
    %1446 = vmatmul.mubr.f32.gmra.mrb[0].mxu0 %v1376
    %v1447 = vpop.f32.mrb[0].mxu0
    %v1448 = vadd.f32 0.0, %v1447
    %v1449 = vpop.f32.mrb[0].mxu0
    %1450 = vmatprep.mubr.f32.mxu0 0.0
    %1451 = vmatmul.mubr.f32.gmra.mrb[0].mxu0 %v1379
    %v1452 = vpop.f32.mrb[0].mxu0
    %v1453 = vadd.f32 0.0, %v1452
    %v1454 = vpop.f32.mrb[0].mxu0
    %1455 = vdwg.mxu0
    %v1456 = vadd.f32 %v1351, %v1448
    %v1457 = vadd.f32 %v1352, %v1453
    %v1458 = vrot.slane %v834, 2
    %v1459 = vrot.slane %v835, 2
    %vm1460 = vcmp.lt.s32.totalorder %v839, 6
    %v1461 = vsel %vm1460, %v1458, %v1459
    %v1462 = vsel %vm1460, %v1459, %v1458
    %1464 = vset.pattern.permute.xlu0 0
    %1465 = vperm.xlu0 %1464, %v67
    %v1466 = vpop.permute.xlu0 %1465
    %1469 = vset.pattern.permute.xlu0 0
    %1470 = vperm.xlu0 %1469, %v68
    %v1471 = vpop.permute.xlu0 %1470
    %v1473 = vmul.f32 %v1461, %v1466
    %v1474 = vmul.f32 %v1462, %v1471
    %s1475 = scalar_lea.vmem [#allocation2], 192
    %v1476 = vld [vmem:[%s1475] sm:$0xff]
    %v1477 = vld [vmem:[%s1475 + $0x8] sm:$0xff]
    %v1478 = vld [vmem:[%s1475 + $0x10] sm:$0xff]
    %v1479 = vld [vmem:[%s1475 + $0x18] sm:$0xff]
    %v1481 = vsel %vm96, %v1473, 0
    %v1484 = vsel %vm96, %v1474, 0
    %1486 = vmatprep.subr.mxu0 0.0
    %1487 = vmatpush1.msra.mxu0 %v1476
    %1488 = vmatprep.subr.mxu0 0.0
    %1489 = vmatpush1.msra.mxu0 %v1477
    %1490 = vmatprep.subr.mxu0 0.0
    %1491 = vmatpush1.msra.mxu0 %v1478
    %1492 = vmatprep.subr.mxu0 0.0
    %1493 = vmatpush1.msra.mxu0 %v1479
    %1494 = vmatprep.subr.mxu0 0.0
    %1495 = vmatpush1.msra.mxu0 0.0
    %1496 = vmatprep.subr.mxu0 0.0
    %1497 = vmatpush1.msra.mxu0 0.0
    %1498 = vmatprep.subr.mxu0 0.0
    %1499 = vmatpush1.msra.mxu0 0.0
    %1500 = vmatprep.subr.mxu0 0.0
    %1501 = vmatpush1.msra.mxu0 0.0
    %1502 = vmatprep.subr.mxu0 0.0
    %1503 = vmatpush1.msra.mxu0 0.0
    %1504 = vmatprep.subr.mxu0 0.0
    %1505 = vmatpush1.msra.mxu0 0.0
    %1506 = vmatprep.subr.mxu0 0.0
    %1507 = vmatpush1.msra.mxu0 0.0
    %1508 = vmatprep.subr.mxu0 0.0
    %1509 = vmatpush1.msra.mxu0 0.0
    %1510 = vmatprep.subr.mxu0 0.0
    %1511 = vmatpush1.msra.mxu0 0.0
    %1512 = vmatprep.subr.mxu0 0.0
    %1513 = vmatpush1.msra.mxu0 0.0
    %1514 = vmatprep.subr.mxu0 0.0
    %1515 = vmatpush1.msra.mxu0 0.0
    %1516 = vmatprep.subr.mxu0 0.0
    %1517 = vmatpush1.msra.mxu0 0.0
    %1518 = vmatprep.subr.mxu0 0.0
    %1519 = vmatpush1.msra.mxu0 0.0
    %1520 = vmatprep.subr.mxu0 0.0
    %1521 = vmatpush1.msra.mxu0 0.0
    %1522 = vmatprep.subr.mxu0 0.0
    %1523 = vmatpush1.msra.mxu0 0.0
    %1524 = vmatprep.subr.mxu0 0.0
    %1525 = vmatpush1.msra.mxu0 0.0
    %1526 = vmatprep.subr.mxu0 0.0
    %1527 = vmatpush1.msra.mxu0 0.0
    %1528 = vmatprep.subr.mxu0 0.0
    %1529 = vmatpush1.msra.mxu0 0.0
    %1530 = vmatprep.subr.mxu0 0.0
    %1531 = vmatpush1.msra.mxu0 0.0
    %1532 = vmatprep.subr.mxu0 0.0
    %1533 = vmatpush1.msra.mxu0 0.0
    %1534 = vmatprep.subr.mxu0 0.0
    %1535 = vmatpush1.msra.mxu0 0.0
    %1536 = vmatprep.subr.mxu0 0.0
    %1537 = vmatpush1.msra.mxu0 0.0
    %1538 = vmatprep.subr.mxu0 0.0
    %1539 = vmatpush1.msra.mxu0 0.0
    %1540 = vmatprep.subr.mxu0 0.0
    %1541 = vmatpush1.msra.mxu0 0.0
    %1542 = vmatprep.subr.mxu0 0.0
    %1543 = vmatpush1.msra.mxu0 0.0
    %1544 = vmatprep.subr.mxu0 0.0
    %1545 = vmatpush1.msra.mxu0 0.0
    %1546 = vmatprep.subr.mxu0 0.0
    %1547 = vmatpush1.msra.mxu0 0.0
    %1548 = vmatprep.subr.mxu0 0.0
    %1549 = vmatpush1.msra.mxu0 0.0
    %1550 = vmatprep.mubr.f32.mxu0 0.0
    %1551 = vmatmul.mubr.f32.gmra.mrb[0].mxu0 %v1481
    %v1552 = vpop.f32.mrb[0].mxu0
    %v1553 = vadd.f32 0.0, %v1552
    %v1554 = vpop.f32.mrb[0].mxu0
    %1555 = vmatprep.mubr.f32.mxu0 0.0
    %1556 = vmatmul.mubr.f32.gmra.mrb[0].mxu0 %v1484
    %v1557 = vpop.f32.mrb[0].mxu0
    %v1558 = vadd.f32 0.0, %v1557
    %v1559 = vpop.f32.mrb[0].mxu0
    %1560 = vdwg.mxu0
    %v1561 = vadd.f32 %v1456, %v1553
    %v1562 = vadd.f32 %v1457, %v1558
    %v1563 = vrot.slane %v834, 3
    %v1564 = vrot.slane %v835, 3
    %vm1565 = vcmp.lt.s32.totalorder %v839, 5
    %v1566 = vsel %vm1565, %v1563, %v1564
    %v1567 = vsel %vm1565, %v1564, %v1563
    %1569 = vset.pattern.permute.xlu0 0
    %1570 = vperm.xlu0 %1569, %v69
    %v1571 = vpop.permute.xlu0 %1570
    %1574 = vset.pattern.permute.xlu0 0
    %1575 = vperm.xlu0 %1574, %v70
    %v1576 = vpop.permute.xlu0 %1575
    %v1578 = vmul.f32 %v1566, %v1571
    %v1579 = vmul.f32 %v1567, %v1576
    %s1580 = scalar_lea.vmem [#allocation2], 224
    %v1581 = vld [vmem:[%s1580] sm:$0xff]
    %v1582 = vld [vmem:[%s1580 + $0x8] sm:$0xff]
    %v1583 = vld [vmem:[%s1580 + $0x10] sm:$0xff]
    %v1584 = vld [vmem:[%s1580 + $0x18] sm:$0xff]
    %v1586 = vsel %vm96, %v1578, 0
    %v1589 = vsel %vm96, %v1579, 0
    %1591 = vmatprep.subr.mxu0 0.0
    %1592 = vmatpush1.msra.mxu0 %v1581
    %1593 = vmatprep.subr.mxu0 0.0
    %1594 = vmatpush1.msra.mxu0 %v1582
    %1595 = vmatprep.subr.mxu0 0.0
    %1596 = vmatpush1.msra.mxu0 %v1583
    %1597 = vmatprep.subr.mxu0 0.0
    %1598 = vmatpush1.msra.mxu0 %v1584
    %1599 = vmatprep.subr.mxu0 0.0
    %1600 = vmatpush1.msra.mxu0 0.0
    %1601 = vmatprep.subr.mxu0 0.0
    %1602 = vmatpush1.msra.mxu0 0.0
    %1603 = vmatprep.subr.mxu0 0.0
    %1604 = vmatpush1.msra.mxu0 0.0
    %1605 = vmatprep.subr.mxu0 0.0
    %1606 = vmatpush1.msra.mxu0 0.0
    %1607 = vmatprep.subr.mxu0 0.0
    %1608 = vmatpush1.msra.mxu0 0.0
    %1609 = vmatprep.subr.mxu0 0.0
    %1610 = vmatpush1.msra.mxu0 0.0
    %1611 = vmatprep.subr.mxu0 0.0
    %1612 = vmatpush1.msra.mxu0 0.0
    %1613 = vmatprep.subr.mxu0 0.0
    %1614 = vmatpush1.msra.mxu0 0.0
    %1615 = vmatprep.subr.mxu0 0.0
    %1616 = vmatpush1.msra.mxu0 0.0
    %1617 = vmatprep.subr.mxu0 0.0
    %1618 = vmatpush1.msra.mxu0 0.0
    %1619 = vmatprep.subr.mxu0 0.0
    %1620 = vmatpush1.msra.mxu0 0.0
    %1621 = vmatprep.subr.mxu0 0.0
    %1622 = vmatpush1.msra.mxu0 0.0
    %1623 = vmatprep.subr.mxu0 0.0
    %1624 = vmatpush1.msra.mxu0 0.0
    %1625 = vmatprep.subr.mxu0 0.0
    %1626 = vmatpush1.msra.mxu0 0.0
    %1627 = vmatprep.subr.mxu0 0.0
    %1628 = vmatpush1.msra.mxu0 0.0
    %1629 = vmatprep.subr.mxu0 0.0
    %1630 = vmatpush1.msra.mxu0 0.0
    %1631 = vmatprep.subr.mxu0 0.0
    %1632 = vmatpush1.msra.mxu0 0.0
    %1633 = vmatprep.subr.mxu0 0.0
    %1634 = vmatpush1.msra.mxu0 0.0
    %1635 = vmatprep.subr.mxu0 0.0
    %1636 = vmatpush1.msra.mxu0 0.0
    %1637 = vmatprep.subr.mxu0 0.0
    %1638 = vmatpush1.msra.mxu0 0.0
    %1639 = vmatprep.subr.mxu0 0.0
    %1640 = vmatpush1.msra.mxu0 0.0
    %1641 = vmatprep.subr.mxu0 0.0
    %1642 = vmatpush1.msra.mxu0 0.0
    %1643 = vmatprep.subr.mxu0 0.0
    %1644 = vmatpush1.msra.mxu0 0.0
    %1645 = vmatprep.subr.mxu0 0.0
    %1646 = vmatpush1.msra.mxu0 0.0
    %1647 = vmatprep.subr.mxu0 0.0
    %1648 = vmatpush1.msra.mxu0 0.0
    %1649 = vmatprep.subr.mxu0 0.0
    %1650 = vmatpush1.msra.mxu0 0.0
    %1651 = vmatprep.subr.mxu0 0.0
    %1652 = vmatpush1.msra.mxu0 0.0
    %1653 = vmatprep.subr.mxu0 0.0
    %1654 = vmatpush1.msra.mxu0 0.0
    %1655 = vmatprep.mubr.f32.mxu0 0.0
    %1656 = vmatmul.mubr.f32.gmra.mrb[0].mxu0 %v1586
    %v1657 = vpop.f32.mrb[0].mxu0
    %v1658 = vadd.f32 0.0, %v1657
    %v1659 = vpop.f32.mrb[0].mxu0
    %1660 = vmatprep.mubr.f32.mxu0 0.0
    %1661 = vmatmul.mubr.f32.gmra.mrb[0].mxu0 %v1589
    %v1662 = vpop.f32.mrb[0].mxu0
    %v1663 = vadd.f32 0.0, %v1662
    %v1664 = vpop.f32.mrb[0].mxu0
    %1665 = vdwg.mxu0
    %v1666 = vadd.f32 %v1561, %v1658
    %v1667 = vadd.f32 %v1562, %v1663
    %1669 = vset.pattern.permute.xlu0 0
    %1670 = vperm.xlu0 %1669, %v71
    %v1671 = vpop.permute.xlu0 %1670
    %1674 = vset.pattern.permute.xlu0 0
    %1675 = vperm.xlu0 %1674, %v72
    %v1676 = vpop.permute.xlu0 %1675
    %v1678 = vmul.f32 %v841, %v1671
    %v1679 = vmul.f32 %v842, %v1676
    %s1680 = scalar_lea.vmem [#allocation2], 256
    %v1681 = vld [vmem:[%s1680] sm:$0xff]
    %v1682 = vld [vmem:[%s1680 + $0x8] sm:$0xff]
    %v1683 = vld [vmem:[%s1680 + $0x10] sm:$0xff]
    %v1684 = vld [vmem:[%s1680 + $0x18] sm:$0xff]
    %v1686 = vsel %vm96, %v1678, 0
    %v1689 = vsel %vm96, %v1679, 0
    %1691 = vmatprep.subr.mxu0 0.0
    %1692 = vmatpush1.msra.mxu0 %v1681
    %1693 = vmatprep.subr.mxu0 0.0
    %1694 = vmatpush1.msra.mxu0 %v1682
    %1695 = vmatprep.subr.mxu0 0.0
    %1696 = vmatpush1.msra.mxu0 %v1683
    %1697 = vmatprep.subr.mxu0 0.0
    %1698 = vmatpush1.msra.mxu0 %v1684
    %1699 = vmatprep.subr.mxu0 0.0
    %1700 = vmatpush1.msra.mxu0 0.0
    %1701 = vmatprep.subr.mxu0 0.0
    %1702 = vmatpush1.msra.mxu0 0.0
    %1703 = vmatprep.subr.mxu0 0.0
    %1704 = vmatpush1.msra.mxu0 0.0
    %1705 = vmatprep.subr.mxu0 0.0
    %1706 = vmatpush1.msra.mxu0 0.0
    %1707 = vmatprep.subr.mxu0 0.0
    %1708 = vmatpush1.msra.mxu0 0.0
    %1709 = vmatprep.subr.mxu0 0.0
    %1710 = vmatpush1.msra.mxu0 0.0
    %1711 = vmatprep.subr.mxu0 0.0
    %1712 = vmatpush1.msra.mxu0 0.0
    %1713 = vmatprep.subr.mxu0 0.0
    %1714 = vmatpush1.msra.mxu0 0.0
    %1715 = vmatprep.subr.mxu0 0.0
    %1716 = vmatpush1.msra.mxu0 0.0
    %1717 = vmatprep.subr.mxu0 0.0
    %1718 = vmatpush1.msra.mxu0 0.0
    %1719 = vmatprep.subr.mxu0 0.0
    %1720 = vmatpush1.msra.mxu0 0.0
    %1721 = vmatprep.subr.mxu0 0.0
    %1722 = vmatpush1.msra.mxu0 0.0
    %1723 = vmatprep.subr.mxu0 0.0
    %1724 = vmatpush1.msra.mxu0 0.0
    %1725 = vmatprep.subr.mxu0 0.0
    %1726 = vmatpush1.msra.mxu0 0.0
    %1727 = vmatprep.subr.mxu0 0.0
    %1728 = vmatpush1.msra.mxu0 0.0
    %1729 = vmatprep.subr.mxu0 0.0
    %1730 = vmatpush1.msra.mxu0 0.0
    %1731 = vmatprep.subr.mxu0 0.0
    %1732 = vmatpush1.msra.mxu0 0.0
    %1733 = vmatprep.subr.mxu0 0.0
    %1734 = vmatpush1.msra.mxu0 0.0
    %1735 = vmatprep.subr.mxu0 0.0
    %1736 = vmatpush1.msra.mxu0 0.0
    %1737 = vmatprep.subr.mxu0 0.0
    %1738 = vmatpush1.msra.mxu0 0.0
    %1739 = vmatprep.subr.mxu0 0.0
    %1740 = vmatpush1.msra.mxu0 0.0
    %1741 = vmatprep.subr.mxu0 0.0
    %1742 = vmatpush1.msra.mxu0 0.0
    %1743 = vmatprep.subr.mxu0 0.0
    %1744 = vmatpush1.msra.mxu0 0.0
    %1745 = vmatprep.subr.mxu0 0.0
    %1746 = vmatpush1.msra.mxu0 0.0
    %1747 = vmatprep.subr.mxu0 0.0
    %1748 = vmatpush1.msra.mxu0 0.0
    %1749 = vmatprep.subr.mxu0 0.0
    %1750 = vmatpush1.msra.mxu0 0.0
    %1751 = vmatprep.subr.mxu0 0.0
    %1752 = vmatpush1.msra.mxu0 0.0
    %1753 = vmatprep.subr.mxu0 0.0
    %1754 = vmatpush1.msra.mxu0 0.0
    %1755 = vmatprep.mubr.f32.mxu0 0.0
    %1756 = vmatmul.mubr.f32.gmra.mrb[0].mxu0 %v1686
    %v1757 = vpop.f32.mrb[0].mxu0
    %v1758 = vadd.f32 0.0, %v1757
    %v1759 = vpop.f32.mrb[0].mxu0
    %1760 = vmatprep.mubr.f32.mxu0 0.0
    %1761 = vmatmul.mubr.f32.gmra.mrb[0].mxu0 %v1689
    %v1762 = vpop.f32.mrb[0].mxu0
    %v1763 = vadd.f32 0.0, %v1762
    %v1764 = vpop.f32.mrb[0].mxu0
    %1765 = vdwg.mxu0
    %v1766 = vadd.f32 %v1666, %v1758
    %v1767 = vadd.f32 %v1667, %v1763
    %v1768 = vlaneseq
    %v1769 = vshrl.u32 %v1768, 7
    %v1770 = vsub.s32 4, %v1769
    %v1771 = vrot.slane %v91, %v1770
    %v1772 = vadd.f32 %v1766, %v1771
    %v1773 = vadd.f32 %v1767, %v1771
    %v1774 = vmax.f32 %v1772, 0.0
    %v1775 = vmax.f32 %v1773, 0.0
    %v1776 = vlaneseq
    %v1777 = vshrl.u32 %v1776, 7
    %v1778 = vsub.s32 5, %v1777
    %v1779 = vrot.slane %v91, %v1778
    %vm1780 = vcmask 523264
    %v1782 = vsel %vm1780, %v1774, 0
    %v1785 = vsel %vm1780, %v1775, 0
    %1787 = vmatprep.subr.mxu0 0.0
    %1788 = vmatpush1.msra.mxu0 %v83
    %1789 = vmatprep.subr.mxu0 0.0
    %1790 = vmatpush1.msra.mxu0 %v84
    %1791 = vmatprep.subr.mxu0 0.0
    %1792 = vmatpush1.msra.mxu0 %v85
    %1793 = vmatprep.subr.mxu0 0.0
    %1794 = vmatpush1.msra.mxu0 %v86
    %1795 = vmatprep.subr.mxu0 0.0
    %1796 = vmatpush1.msra.mxu0 %v87
    %1797 = vmatprep.subr.mxu0 0.0
    %1798 = vmatpush1.msra.mxu0 %v88
    %1799 = vmatprep.subr.mxu0 0.0
    %1800 = vmatpush1.msra.mxu0 %v89
    %1801 = vmatprep.subr.mxu0 0.0
    %1802 = vmatpush1.msra.mxu0 %v90
    %1803 = vmatprep.subr.mxu0 0.0
    %1804 = vmatpush1.msra.mxu0 0.0
    %1805 = vmatprep.subr.mxu0 0.0
    %1806 = vmatpush1.msra.mxu0 0.0
    %1807 = vmatprep.subr.mxu0 0.0
    %1808 = vmatpush1.msra.mxu0 0.0
    %1809 = vmatprep.subr.mxu0 0.0
    %1810 = vmatpush1.msra.mxu0 0.0
    %1811 = vmatprep.subr.mxu0 0.0
    %1812 = vmatpush1.msra.mxu0 0.0
    %1813 = vmatprep.subr.mxu0 0.0
    %1814 = vmatpush1.msra.mxu0 0.0
    %1815 = vmatprep.subr.mxu0 0.0
    %1816 = vmatpush1.msra.mxu0 0.0
    %1817 = vmatprep.subr.mxu0 0.0
    %1818 = vmatpush1.msra.mxu0 0.0
    %1819 = vmatprep.subr.mxu0 0.0
    %1820 = vmatpush1.msra.mxu0 0.0
    %1821 = vmatprep.subr.mxu0 0.0
    %1822 = vmatpush1.msra.mxu0 0.0
    %1823 = vmatprep.subr.mxu0 0.0
    %1824 = vmatpush1.msra.mxu0 0.0
    %1825 = vmatprep.subr.mxu0 0.0
    %1826 = vmatpush1.msra.mxu0 0.0
    %1827 = vmatprep.subr.mxu0 0.0
    %1828 = vmatpush1.msra.mxu0 0.0
    %1829 = vmatprep.subr.mxu0 0.0
    %1830 = vmatpush1.msra.mxu0 0.0
    %1831 = vmatprep.subr.mxu0 0.0
    %1832 = vmatpush1.msra.mxu0 0.0
    %1833 = vmatprep.subr.mxu0 0.0
    %1834 = vmatpush1.msra.mxu0 0.0
    %1835 = vmatprep.subr.mxu0 0.0
    %1836 = vmatpush1.msra.mxu0 0.0
    %1837 = vmatprep.subr.mxu0 0.0
    %1838 = vmatpush1.msra.mxu0 0.0
    %1839 = vmatprep.subr.mxu0 0.0
    %1840 = vmatpush1.msra.mxu0 0.0
    %1841 = vmatprep.subr.mxu0 0.0
    %1842 = vmatpush1.msra.mxu0 0.0
    %1843 = vmatprep.subr.mxu0 0.0
    %1844 = vmatpush1.msra.mxu0 0.0
    %1845 = vmatprep.subr.mxu0 0.0
    %1846 = vmatpush1.msra.mxu0 0.0
    %1847 = vmatprep.subr.mxu0 0.0
    %1848 = vmatpush1.msra.mxu0 0.0
    %1849 = vmatprep.subr.mxu0 0.0
    %1850 = vmatpush1.msra.mxu0 0.0
    %1851 = vmatprep.mubr.f32.mxu0 0.0
    %1852 = vmatmul.mubr.f32.gmra.mrb[0].mxu0 %v1782
    %v1853 = vpop.f32.mrb[0].mxu0
    %v1854 = vadd.f32 %v1779, %v1853
    %v1855 = vpop.f32.mrb[0].mxu0
    %1856 = vmatprep.mubr.f32.mxu0 0.0
    %1857 = vmatmul.mubr.f32.gmra.mrb[0].mxu0 %v1785
    %v1858 = vpop.f32.mrb[0].mxu0
    %v1859 = vadd.f32 %v1779, %v1858
    %v1860 = vpop.f32.mrb[0].mxu0
    %1861 = vdwg.mxu0
    %v1862 = vadd.f32 %v1854, %v834
    %v1863 = vadd.f32 %v1859, %v835
    %v1864 = vsel %vm96, %v1862, 0.0
    %1865 = vadd.xlane.f32.xlu0 %v1864
    %v1866 = vpop.xlane.xlu0 %1865
    %v1867 = vsel %vm96, %v1863, 0.0
    %1868 = vadd.xlane.f32.xlu0 %v1867
    %v1869 = vpop.xlane.xlu0 %1868
    %v1870 = vmul.f32 %v1866, %v791
    %v1871 = vmul.f32 %v1869, %v791
    %v1872 = vsub.f32 %v1862, %v1870
    %v1873 = vsub.f32 %v1863, %v1871
    %v1874 = vmul.f32 %v1872, %v1872
    %v1875 = vmul.f32 %v1873, %v1873
    %v1876 = vsel %vm96, %v1874, 0.0
    %1877 = vadd.xlane.f32.xlu0 %v1876
    %v1878 = vpop.xlane.xlu0 %1877
    %v1879 = vsel %vm96, %v1875, 0.0
    %1880 = vadd.xlane.f32.xlu0 %v1879
    %v1881 = vpop.xlane.xlu0 %1880
    %v1882 = vmul.f32 %v1878, %v791
    %v1883 = vmul.f32 %v1881, %v791
    %v1884 = vadd.f32 %v1882, 1e-05
    %v1885 = vadd.f32 %v1883, 1e-05
    %v1886 = vrsqrt.pop %v1884
    %v1887 = vrsqrt.pop %v1885
    %v1888 = vmul.f32 %v1872, %v1886
    %v1889 = vmul.f32 %v1873, %v1887
    %v1890 = vlaneseq
    %v1891 = vshrl.u32 %v1890, 7
    %v1892 = vsub.s32 6, %v1891
    %v1893 = vrot.slane %v91, %v1892
    %v1894 = vmul.f32 %v1888, %v1893
    %v1895 = vmul.f32 %v1889, %v1893
    %v1896 = vlaneseq
    %v1897 = vshrl.u32 %v1896, 7
    %v1898 = vsub.s32 7, %v1897
    %v1899 = vrot.slane %v91, %v1898
    %v1900 = vadd.f32 %v1894, %v1899
    %v1901 = vadd.f32 %v1895, %v1899
    %v1902 = vmul.f32 %v1900, %v827
    %v1903 = vmul.f32 %v1901, %v832
    %s1904 = scalar_lea.vmem %s5, 32
    %v1905 = vld [vmem:[%s1904] sm:$0xff]
    %v1906 = vld [vmem:[%s1904 + $0x8] sm:$0xff]
    %v1907 = vld [vmem:[%s1904 + $0x10] sm:$0xff]
    %v1908 = vld [vmem:[%s1904 + $0x18] sm:$0xff]
    %s1909 = scalar_lea.vmem %s6, 32
    %v1910 = vld [vmem:[%s1909] sm:$0xff]
    %v1911 = vld [vmem:[%s1909 + $0x8] sm:$0xff]
    %v1912 = vld [vmem:[%s1909 + $0x10] sm:$0xff]
    %v1913 = vld [vmem:[%s1909 + $0x18] sm:$0xff]
    %s1914 = scalar_lea.vmem %s8, 64
    %v1915 = vld [vmem:[%s1914] sm:$0xff]
    %v1916 = vld [vmem:[%s1914 + $0x8] sm:$0xff]
    %v1917 = vld [vmem:[%s1914 + $0x10] sm:$0xff]
    %v1918 = vld [vmem:[%s1914 + $0x18] sm:$0xff]
    %v1919 = vld [vmem:[%s1914 + $0x20] sm:$0xff]
    %v1920 = vld [vmem:[%s1914 + $0x28] sm:$0xff]
    %v1921 = vld [vmem:[%s1914 + $0x30] sm:$0xff]
    %v1922 = vld [vmem:[%s1914 + $0x38] sm:$0xff]
    %s1923 = scalar_lea.vmem %s9, 8
    %v1924 = vld [vmem:[%s1923] sm:$0xff]
    %v1925 = vlaneseq
    %v1926 = vshrl.u32 %v1925, 7
    %v1927 = vsub.s32 0, %v1926
    %v1928 = vrot.slane %v1924, %v1927
    %v1930 = vsel %vm96, %v1902, 0
    %v1933 = vsel %vm96, %v1903, 0
    %1935 = vmatprep.subr.mxu0 0.0
    %1936 = vmatpush1.msra.mxu0 %v1905
    %1937 = vmatprep.subr.mxu0 0.0
    %1938 = vmatpush1.msra.mxu0 %v1906
    %1939 = vmatprep.subr.mxu0 0.0
    %1940 = vmatpush1.msra.mxu0 %v1907
    %1941 = vmatprep.subr.mxu0 0.0
    %1942 = vmatpush1.msra.mxu0 %v1908
    %1943 = vmatprep.subr.mxu0 0.0
    %1944 = vmatpush1.msra.mxu0 0.0
    %1945 = vmatprep.subr.mxu0 0.0
    %1946 = vmatpush1.msra.mxu0 0.0
    %1947 = vmatprep.subr.mxu0 0.0
    %1948 = vmatpush1.msra.mxu0 0.0
    %1949 = vmatprep.subr.mxu0 0.0
    %1950 = vmatpush1.msra.mxu0 0.0
    %1951 = vmatprep.subr.mxu0 0.0
    %1952 = vmatpush1.msra.mxu0 0.0
    %1953 = vmatprep.subr.mxu0 0.0
    %1954 = vmatpush1.msra.mxu0 0.0
    %1955 = vmatprep.subr.mxu0 0.0
    %1956 = vmatpush1.msra.mxu0 0.0
    %1957 = vmatprep.subr.mxu0 0.0
    %1958 = vmatpush1.msra.mxu0 0.0
    %1959 = vmatprep.subr.mxu0 0.0
    %1960 = vmatpush1.msra.mxu0 0.0
    %1961 = vmatprep.subr.mxu0 0.0
    %1962 = vmatpush1.msra.mxu0 0.0
    %1963 = vmatprep.subr.mxu0 0.0
    %1964 = vmatpush1.msra.mxu0 0.0
    %1965 = vmatprep.subr.mxu0 0.0
    %1966 = vmatpush1.msra.mxu0 0.0
    %1967 = vmatprep.subr.mxu0 0.0
    %1968 = vmatpush1.msra.mxu0 0.0
    %1969 = vmatprep.subr.mxu0 0.0
    %1970 = vmatpush1.msra.mxu0 0.0
    %1971 = vmatprep.subr.mxu0 0.0
    %1972 = vmatpush1.msra.mxu0 0.0
    %1973 = vmatprep.subr.mxu0 0.0
    %1974 = vmatpush1.msra.mxu0 0.0
    %1975 = vmatprep.subr.mxu0 0.0
    %1976 = vmatpush1.msra.mxu0 0.0
    %1977 = vmatprep.subr.mxu0 0.0
    %1978 = vmatpush1.msra.mxu0 0.0
    %1979 = vmatprep.subr.mxu0 0.0
    %1980 = vmatpush1.msra.mxu0 0.0
    %1981 = vmatprep.subr.mxu0 0.0
    %1982 = vmatpush1.msra.mxu0 0.0
    %1983 = vmatprep.subr.mxu0 0.0
    %1984 = vmatpush1.msra.mxu0 0.0
    %1985 = vmatprep.subr.mxu0 0.0
    %1986 = vmatpush1.msra.mxu0 0.0
    %1987 = vmatprep.subr.mxu0 0.0
    %1988 = vmatpush1.msra.mxu0 0.0
    %1989 = vmatprep.subr.mxu0 0.0
    %1990 = vmatpush1.msra.mxu0 0.0
    %1991 = vmatprep.subr.mxu0 0.0
    %1992 = vmatpush1.msra.mxu0 0.0
    %1993 = vmatprep.subr.mxu0 0.0
    %1994 = vmatpush1.msra.mxu0 0.0
    %1995 = vmatprep.subr.mxu0 0.0
    %1996 = vmatpush1.msra.mxu0 0.0
    %1997 = vmatprep.subr.mxu0 0.0
    %1998 = vmatpush1.msra.mxu0 0.0
    %1999 = vmatprep.mubr.f32.mxu0 0.0
    %2000 = vmatmul.mubr.f32.gmra.mrb[0].mxu0 %v1930
    %v2001 = vpop.f32.mrb[0].mxu0
    %v2002 = vadd.f32 %v1928, %v2001
    %v2003 = vpop.f32.mrb[0].mxu0
    %2004 = vmatprep.mubr.f32.mxu0 0.0
    %2005 = vmatmul.mubr.f32.gmra.mrb[0].mxu0 %v1933
    %v2006 = vpop.f32.mrb[0].mxu0
    %v2007 = vadd.f32 %v1928, %v2006
    %v2008 = vpop.f32.mrb[0].mxu0
    %2009 = vdwg.mxu0
    %2012 = vrot.lane.b32.xlu0 %v2002, 96
    %v2013 = vpop.permute.xlu0 %2012
    %2014 = vrot.lane.b32.xlu0 %v2007, 96
    %v2015 = vpop.permute.xlu0 %2014
    %v2016 = vsel %vm184, %v2002, 0
    %v2018 = vsel %vm184, %v2007, 0
    %v2020 = vsel %vm184, %v2013, 0
    %v2022 = vsel %vm184, %v2015, 0
    %2024 = vmatprep.subr.mxu0 0.0
    %2025 = vmatpush1.xpose.msra.mxu0 %v2020
    %2026 = vmatprep.subr.mxu0 0.0
    %2027 = vmatpush1.xpose.msra.mxu0 %v2022
    %2028 = vmatprep.subr.mxu0 0.0
    %2029 = vmatpush1.xpose.msra.mxu0 0.0
    %2030 = vmatprep.subr.mxu0 0.0
    %2031 = vmatpush1.xpose.msra.mxu0 0.0
    %2032 = vmatprep.subr.mxu0 0.0
    %2033 = vmatpush1.xpose.msra.mxu0 0.0
    %2034 = vmatprep.subr.mxu0 0.0
    %2035 = vmatpush1.xpose.msra.mxu0 0.0
    %2036 = vmatprep.subr.mxu0 0.0
    %2037 = vmatpush1.xpose.msra.mxu0 0.0
    %2038 = vmatprep.subr.mxu0 0.0
    %2039 = vmatpush1.xpose.msra.mxu0 0.0
    %2040 = vmatprep.subr.mxu0 0.0
    %2041 = vmatpush1.xpose.msra.mxu0 0.0
    %2042 = vmatprep.subr.mxu0 0.0
    %2043 = vmatpush1.xpose.msra.mxu0 0.0
    %2044 = vmatprep.subr.mxu0 0.0
    %2045 = vmatpush1.xpose.msra.mxu0 0.0
    %2046 = vmatprep.subr.mxu0 0.0
    %2047 = vmatpush1.xpose.msra.mxu0 0.0
    %2048 = vmatprep.subr.mxu0 0.0
    %2049 = vmatpush1.xpose.msra.mxu0 0.0
    %2050 = vmatprep.subr.mxu0 0.0
    %2051 = vmatpush1.xpose.msra.mxu0 0.0
    %2052 = vmatprep.subr.mxu0 0.0
    %2053 = vmatpush1.xpose.msra.mxu0 0.0
    %2054 = vmatprep.subr.mxu0 0.0
    %2055 = vmatpush1.xpose.msra.mxu0 0.0
    %2056 = vmatprep.subr.mxu0 0.0
    %2057 = vmatpush1.xpose.msra.mxu0 0.0
    %2058 = vmatprep.subr.mxu0 0.0
    %2059 = vmatpush1.xpose.msra.mxu0 0.0
    %2060 = vmatprep.subr.mxu0 0.0
    %2061 = vmatpush1.xpose.msra.mxu0 0.0
    %2062 = vmatprep.subr.mxu0 0.0
    %2063 = vmatpush1.xpose.msra.mxu0 0.0
    %2064 = vmatprep.subr.mxu0 0.0
    %2065 = vmatpush1.xpose.msra.mxu0 0.0
    %2066 = vmatprep.subr.mxu0 0.0
    %2067 = vmatpush1.xpose.msra.mxu0 0.0
    %2068 = vmatprep.subr.mxu0 0.0
    %2069 = vmatpush1.xpose.msra.mxu0 0.0
    %2070 = vmatprep.subr.mxu0 0.0
    %2071 = vmatpush1.xpose.msra.mxu0 0.0
    %2072 = vmatprep.subr.mxu0 0.0
    %2073 = vmatpush1.xpose.msra.mxu0 0.0
    %2074 = vmatprep.subr.mxu0 0.0
    %2075 = vmatpush1.xpose.msra.mxu0 0.0
    %2076 = vmatprep.subr.mxu0 0.0
    %2077 = vmatpush1.xpose.msra.mxu0 0.0
    %2078 = vmatprep.subr.mxu0 0.0
    %2079 = vmatpush1.xpose.msra.mxu0 0.0
    %2080 = vmatprep.subr.mxu0 0.0
    %2081 = vmatpush1.xpose.msra.mxu0 0.0
    %2082 = vmatprep.subr.mxu0 0.0
    %2083 = vmatpush1.xpose.msra.mxu0 0.0
    %2084 = vmatprep.subr.mxu0 0.0
    %2085 = vmatpush1.xpose.msra.mxu0 0.0
    %2086 = vmatprep.subr.mxu0 0.0
    %2087 = vmatpush1.xpose.msra.mxu0 0.0
    %2088 = vmatprep.mubr.f32.mxu0 0.0
    %2089 = vmatmul.mubr.f32.gmra.mrb[0].mxu0 %v2016
    %v2090 = vpop.f32.mrb[0].mxu0
    %v2091 = vadd.f32 0.0, %v2090
    %v2092 = vpop.f32.mrb[0].mxu0
    %2093 = vmatprep.mubr.f32.mxu0 0.0
    %2094 = vmatmul.mubr.f32.gmra.mrb[0].mxu0 %v2018
    %v2095 = vpop.f32.mrb[0].mxu0
    %v2096 = vadd.f32 0.0, %v2095
    %v2097 = vpop.f32.mrb[0].mxu0
    %2098 = vdwg.mxu0
    %v2099 = vmul.f32 %v2091, 0.25
    %v2100 = vmul.f32 %v2096, 0.25
    %v2101 = vadd.f32 %v2099, %v50
    %v2102 = vadd.f32 %v2100, %v51
    %v2103 = vsel %vm184, %v2101, -inf
    %2104 = vmax.xlane.f32.xlu0 %v2103
    %v2105 = vpop.xlane.xlu0 %2104
    %v2106 = vsel %vm184, %v2102, -inf
    %2107 = vmax.xlane.f32.xlu0 %v2106
    %v2108 = vpop.xlane.xlu0 %2107
    %v2109 = vsub.f32 %v2101, %v2105
    %v2110 = vsub.f32 %v2102, %v2108
    %v2111 = vmul.f32 %v2109, 1.442695
    %v2112 = vpow.pop %v2111
    %v2113 = vmul.f32 %v2110, 1.442695
    %v2114 = vpow.pop %v2113
    %v2115 = vsel %vm184, %v2112, 0.0
    %2116 = vadd.xlane.f32.xlu0 %v2115
    %v2117 = vpop.xlane.xlu0 %2116
    %v2118 = vsel %vm184, %v2114, 0.0
    %2119 = vadd.xlane.f32.xlu0 %v2118
    %v2120 = vpop.xlane.xlu0 %2119
    %v2121 = vmul.f32 %v2112, %v294
    %v2122 = vmul.f32 %v2114, %v294
    %v2123 = vsel %vm184, %v2121, 0.0
    %2124 = vadd.xlane.f32.xlu0 %v2123
    %v2125 = vpop.xlane.xlu0 %2124
    %v2126 = vsel %vm184, %v2122, 0.0
    %2127 = vadd.xlane.f32.xlu0 %v2126
    %v2128 = vpop.xlane.xlu0 %2127
    %v2129 = vmul.f32 %v2117, 1e-08
    %v2130 = vmul.f32 %v2120, 1e-08
    %v2131 = vadd.f32 %v2125, %v2129
    %v2132 = vadd.f32 %v2128, %v2130
    %v2133 = vrcp.pop %v2131
    %v2134 = vrcp.pop %v2132
    %v2135 = vmul.f32 %v2121, %v2133
    %v2136 = vmul.f32 %v2122, %v2134
    %2137 = vrot.lane.b32.xlu0 %v2002, 64
    %v2138 = vpop.permute.xlu0 %2137
    %2139 = vrot.lane.b32.xlu0 %v2007, 64
    %v2140 = vpop.permute.xlu0 %2139
    %v2144 = vsel %vm184, %v2135, 0
    %v2147 = vsel %vm184, %v2136, 0
    %2149 = vmatprep.subr.mxu0 0.0
    %2150 = vmatpush1.msra.mxu0 %v2138
    %2151 = vmatprep.subr.mxu0 0.0
    %2152 = vmatpush1.msra.mxu0 %v2140
    %2153 = vmatprep.subr.mxu0 0.0
    %2154 = vmatpush1.msra.mxu0 0.0
    %2155 = vmatprep.subr.mxu0 0.0
    %2156 = vmatpush1.msra.mxu0 0.0
    %2157 = vmatprep.subr.mxu0 0.0
    %2158 = vmatpush1.msra.mxu0 0.0
    %2159 = vmatprep.subr.mxu0 0.0
    %2160 = vmatpush1.msra.mxu0 0.0
    %2161 = vmatprep.subr.mxu0 0.0
    %2162 = vmatpush1.msra.mxu0 0.0
    %2163 = vmatprep.subr.mxu0 0.0
    %2164 = vmatpush1.msra.mxu0 0.0
    %2165 = vmatprep.subr.mxu0 0.0
    %2166 = vmatpush1.msra.mxu0 0.0
    %2167 = vmatprep.subr.mxu0 0.0
    %2168 = vmatpush1.msra.mxu0 0.0
    %2169 = vmatprep.subr.mxu0 0.0
    %2170 = vmatpush1.msra.mxu0 0.0
    %2171 = vmatprep.subr.mxu0 0.0
    %2172 = vmatpush1.msra.mxu0 0.0
    %2173 = vmatprep.subr.mxu0 0.0
    %2174 = vmatpush1.msra.mxu0 0.0
    %2175 = vmatprep.subr.mxu0 0.0
    %2176 = vmatpush1.msra.mxu0 0.0
    %2177 = vmatprep.subr.mxu0 0.0
    %2178 = vmatpush1.msra.mxu0 0.0
    %2179 = vmatprep.subr.mxu0 0.0
    %2180 = vmatpush1.msra.mxu0 0.0
    %2181 = vmatprep.subr.mxu0 0.0
    %2182 = vmatpush1.msra.mxu0 0.0
    %2183 = vmatprep.subr.mxu0 0.0
    %2184 = vmatpush1.msra.mxu0 0.0
    %2185 = vmatprep.subr.mxu0 0.0
    %2186 = vmatpush1.msra.mxu0 0.0
    %2187 = vmatprep.subr.mxu0 0.0
    %2188 = vmatpush1.msra.mxu0 0.0
    %2189 = vmatprep.subr.mxu0 0.0
    %2190 = vmatpush1.msra.mxu0 0.0
    %2191 = vmatprep.subr.mxu0 0.0
    %2192 = vmatpush1.msra.mxu0 0.0
    %2193 = vmatprep.subr.mxu0 0.0
    %2194 = vmatpush1.msra.mxu0 0.0
    %2195 = vmatprep.subr.mxu0 0.0
    %2196 = vmatpush1.msra.mxu0 0.0
    %2197 = vmatprep.subr.mxu0 0.0
    %2198 = vmatpush1.msra.mxu0 0.0
    %2199 = vmatprep.subr.mxu0 0.0
    %2200 = vmatpush1.msra.mxu0 0.0
    %2201 = vmatprep.subr.mxu0 0.0
    %2202 = vmatpush1.msra.mxu0 0.0
    %2203 = vmatprep.subr.mxu0 0.0
    %2204 = vmatpush1.msra.mxu0 0.0
    %2205 = vmatprep.subr.mxu0 0.0
    %2206 = vmatpush1.msra.mxu0 0.0
    %2207 = vmatprep.subr.mxu0 0.0
    %2208 = vmatpush1.msra.mxu0 0.0
    %2209 = vmatprep.subr.mxu0 0.0
    %2210 = vmatpush1.msra.mxu0 0.0
    %2211 = vmatprep.subr.mxu0 0.0
    %2212 = vmatpush1.msra.mxu0 0.0
    %2213 = vmatprep.mubr.f32.mxu0 0.0
    %2214 = vmatmul.mubr.f32.gmra.mrb[0].mxu0 %v2144
    %v2215 = vpop.f32.mrb[0].mxu0
    %v2216 = vadd.f32 0.0, %v2215
    %v2217 = vpop.f32.mrb[0].mxu0
    %2218 = vmatprep.mubr.f32.mxu0 0.0
    %2219 = vmatmul.mubr.f32.gmra.mrb[0].mxu0 %v2147
    %v2220 = vpop.f32.mrb[0].mxu0
    %v2221 = vadd.f32 0.0, %v2220
    %v2222 = vpop.f32.mrb[0].mxu0
    %2223 = vdwg.mxu0
    %2224 = vrot.lane.b32.xlu0 %v2002, 112
    %v2225 = vpop.permute.xlu0 %2224
    %2226 = vrot.lane.b32.xlu0 %v2007, 112
    %v2227 = vpop.permute.xlu0 %2226
    %2228 = vrot.lane.b32.xlu0 %v2002, 80
    %v2229 = vpop.permute.xlu0 %2228
    %2230 = vrot.lane.b32.xlu0 %v2007, 80
    %v2231 = vpop.permute.xlu0 %2230
    %v2232 = vsel %vm184, %v2225, 0
    %v2234 = vsel %vm184, %v2227, 0
    %v2236 = vsel %vm184, %v2229, 0
    %v2238 = vsel %vm184, %v2231, 0
    %2240 = vmatprep.subr.mxu0 0.0
    %2241 = vmatpush1.xpose.msra.mxu0 %v2236
    %2242 = vmatprep.subr.mxu0 0.0
    %2243 = vmatpush1.xpose.msra.mxu0 %v2238
    %2244 = vmatprep.subr.mxu0 0.0
    %2245 = vmatpush1.xpose.msra.mxu0 0.0
    %2246 = vmatprep.subr.mxu0 0.0
    %2247 = vmatpush1.xpose.msra.mxu0 0.0
    %2248 = vmatprep.subr.mxu0 0.0
    %2249 = vmatpush1.xpose.msra.mxu0 0.0
    %2250 = vmatprep.subr.mxu0 0.0
    %2251 = vmatpush1.xpose.msra.mxu0 0.0
    %2252 = vmatprep.subr.mxu0 0.0
    %2253 = vmatpush1.xpose.msra.mxu0 0.0
    %2254 = vmatprep.subr.mxu0 0.0
    %2255 = vmatpush1.xpose.msra.mxu0 0.0
    %2256 = vmatprep.subr.mxu0 0.0
    %2257 = vmatpush1.xpose.msra.mxu0 0.0
    %2258 = vmatprep.subr.mxu0 0.0
    %2259 = vmatpush1.xpose.msra.mxu0 0.0
    %2260 = vmatprep.subr.mxu0 0.0
    %2261 = vmatpush1.xpose.msra.mxu0 0.0
    %2262 = vmatprep.subr.mxu0 0.0
    %2263 = vmatpush1.xpose.msra.mxu0 0.0
    %2264 = vmatprep.subr.mxu0 0.0
    %2265 = vmatpush1.xpose.msra.mxu0 0.0
    %2266 = vmatprep.subr.mxu0 0.0
    %2267 = vmatpush1.xpose.msra.mxu0 0.0
    %2268 = vmatprep.subr.mxu0 0.0
    %2269 = vmatpush1.xpose.msra.mxu0 0.0
    %2270 = vmatprep.subr.mxu0 0.0
    %2271 = vmatpush1.xpose.msra.mxu0 0.0
    %2272 = vmatprep.subr.mxu0 0.0
    %2273 = vmatpush1.xpose.msra.mxu0 0.0
    %2274 = vmatprep.subr.mxu0 0.0
    %2275 = vmatpush1.xpose.msra.mxu0 0.0
    %2276 = vmatprep.subr.mxu0 0.0
    %2277 = vmatpush1.xpose.msra.mxu0 0.0
    %2278 = vmatprep.subr.mxu0 0.0
    %2279 = vmatpush1.xpose.msra.mxu0 0.0
    %2280 = vmatprep.subr.mxu0 0.0
    %2281 = vmatpush1.xpose.msra.mxu0 0.0
    %2282 = vmatprep.subr.mxu0 0.0
    %2283 = vmatpush1.xpose.msra.mxu0 0.0
    %2284 = vmatprep.subr.mxu0 0.0
    %2285 = vmatpush1.xpose.msra.mxu0 0.0
    %2286 = vmatprep.subr.mxu0 0.0
    %2287 = vmatpush1.xpose.msra.mxu0 0.0
    %2288 = vmatprep.subr.mxu0 0.0
    %2289 = vmatpush1.xpose.msra.mxu0 0.0
    %2290 = vmatprep.subr.mxu0 0.0
    %2291 = vmatpush1.xpose.msra.mxu0 0.0
    %2292 = vmatprep.subr.mxu0 0.0
    %2293 = vmatpush1.xpose.msra.mxu0 0.0
    %2294 = vmatprep.subr.mxu0 0.0
    %2295 = vmatpush1.xpose.msra.mxu0 0.0
    %2296 = vmatprep.subr.mxu0 0.0
    %2297 = vmatpush1.xpose.msra.mxu0 0.0
    %2298 = vmatprep.subr.mxu0 0.0
    %2299 = vmatpush1.xpose.msra.mxu0 0.0
    %2300 = vmatprep.subr.mxu0 0.0
    %2301 = vmatpush1.xpose.msra.mxu0 0.0
    %2302 = vmatprep.subr.mxu0 0.0
    %2303 = vmatpush1.xpose.msra.mxu0 0.0
    %2304 = vmatprep.mubr.f32.mxu0 0.0
    %2305 = vmatmul.mubr.f32.gmra.mrb[0].mxu0 %v2232
    %v2306 = vpop.f32.mrb[0].mxu0
    %v2307 = vadd.f32 0.0, %v2306
    %v2308 = vpop.f32.mrb[0].mxu0
    %2309 = vmatprep.mubr.f32.mxu0 0.0
    %2310 = vmatmul.mubr.f32.gmra.mrb[0].mxu0 %v2234
    %v2311 = vpop.f32.mrb[0].mxu0
    %v2312 = vadd.f32 0.0, %v2311
    %v2313 = vpop.f32.mrb[0].mxu0
    %2314 = vdwg.mxu0
    %v2315 = vmul.f32 %v2307, 0.25
    %v2316 = vmul.f32 %v2312, 0.25
    %v2317 = vadd.f32 %v2315, %v50
    %v2318 = vadd.f32 %v2316, %v51
    %v2319 = vsel %vm184, %v2317, -inf
    %2320 = vmax.xlane.f32.xlu0 %v2319
    %v2321 = vpop.xlane.xlu0 %2320
    %v2322 = vsel %vm184, %v2318, -inf
    %2323 = vmax.xlane.f32.xlu0 %v2322
    %v2324 = vpop.xlane.xlu0 %2323
    %v2325 = vsub.f32 %v2317, %v2321
    %v2326 = vsub.f32 %v2318, %v2324
    %v2327 = vmul.f32 %v2325, 1.442695
    %v2328 = vpow.pop %v2327
    %v2329 = vmul.f32 %v2326, 1.442695
    %v2330 = vpow.pop %v2329
    %v2331 = vsel %vm184, %v2328, 0.0
    %2332 = vadd.xlane.f32.xlu0 %v2331
    %v2333 = vpop.xlane.xlu0 %2332
    %v2334 = vsel %vm184, %v2330, 0.0
    %2335 = vadd.xlane.f32.xlu0 %v2334
    %v2336 = vpop.xlane.xlu0 %2335
    %v2337 = vmul.f32 %v2328, %v294
    %v2338 = vmul.f32 %v2330, %v294
    %v2339 = vsel %vm184, %v2337, 0.0
    %2340 = vadd.xlane.f32.xlu0 %v2339
    %v2341 = vpop.xlane.xlu0 %2340
    %v2342 = vsel %vm184, %v2338, 0.0
    %2343 = vadd.xlane.f32.xlu0 %v2342
    %v2344 = vpop.xlane.xlu0 %2343
    %v2345 = vmul.f32 %v2333, 1e-08
    %v2346 = vmul.f32 %v2336, 1e-08
    %v2347 = vadd.f32 %v2341, %v2345
    %v2348 = vadd.f32 %v2344, %v2346
    %v2349 = vrcp.pop %v2347
    %v2350 = vrcp.pop %v2348
    %v2351 = vmul.f32 %v2337, %v2349
    %v2352 = vmul.f32 %v2338, %v2350
    %2353 = vrot.lane.b32.xlu0 %v2002, 48
    %v2354 = vpop.permute.xlu0 %2353
    %2355 = vrot.lane.b32.xlu0 %v2007, 48
    %v2356 = vpop.permute.xlu0 %2355
    %v2360 = vsel %vm184, %v2351, 0
    %v2363 = vsel %vm184, %v2352, 0
    %2365 = vmatprep.subr.mxu0 0.0
    %2366 = vmatpush1.msra.mxu0 %v2354
    %2367 = vmatprep.subr.mxu0 0.0
    %2368 = vmatpush1.msra.mxu0 %v2356
    %2369 = vmatprep.subr.mxu0 0.0
    %2370 = vmatpush1.msra.mxu0 0.0
    %2371 = vmatprep.subr.mxu0 0.0
    %2372 = vmatpush1.msra.mxu0 0.0
    %2373 = vmatprep.subr.mxu0 0.0
    %2374 = vmatpush1.msra.mxu0 0.0
    %2375 = vmatprep.subr.mxu0 0.0
    %2376 = vmatpush1.msra.mxu0 0.0
    %2377 = vmatprep.subr.mxu0 0.0
    %2378 = vmatpush1.msra.mxu0 0.0
    %2379 = vmatprep.subr.mxu0 0.0
    %2380 = vmatpush1.msra.mxu0 0.0
    %2381 = vmatprep.subr.mxu0 0.0
    %2382 = vmatpush1.msra.mxu0 0.0
    %2383 = vmatprep.subr.mxu0 0.0
    %2384 = vmatpush1.msra.mxu0 0.0
    %2385 = vmatprep.subr.mxu0 0.0
    %2386 = vmatpush1.msra.mxu0 0.0
    %2387 = vmatprep.subr.mxu0 0.0
    %2388 = vmatpush1.msra.mxu0 0.0
    %2389 = vmatprep.subr.mxu0 0.0
    %2390 = vmatpush1.msra.mxu0 0.0
    %2391 = vmatprep.subr.mxu0 0.0
    %2392 = vmatpush1.msra.mxu0 0.0
    %2393 = vmatprep.subr.mxu0 0.0
    %2394 = vmatpush1.msra.mxu0 0.0
    %2395 = vmatprep.subr.mxu0 0.0
    %2396 = vmatpush1.msra.mxu0 0.0
    %2397 = vmatprep.subr.mxu0 0.0
    %2398 = vmatpush1.msra.mxu0 0.0
    %2399 = vmatprep.subr.mxu0 0.0
    %2400 = vmatpush1.msra.mxu0 0.0
    %2401 = vmatprep.subr.mxu0 0.0
    %2402 = vmatpush1.msra.mxu0 0.0
    %2403 = vmatprep.subr.mxu0 0.0
    %2404 = vmatpush1.msra.mxu0 0.0
    %2405 = vmatprep.subr.mxu0 0.0
    %2406 = vmatpush1.msra.mxu0 0.0
    %2407 = vmatprep.subr.mxu0 0.0
    %2408 = vmatpush1.msra.mxu0 0.0
    %2409 = vmatprep.subr.mxu0 0.0
    %2410 = vmatpush1.msra.mxu0 0.0
    %2411 = vmatprep.subr.mxu0 0.0
    %2412 = vmatpush1.msra.mxu0 0.0
    %2413 = vmatprep.subr.mxu0 0.0
    %2414 = vmatpush1.msra.mxu0 0.0
    %2415 = vmatprep.subr.mxu0 0.0
    %2416 = vmatpush1.msra.mxu0 0.0
    %2417 = vmatprep.subr.mxu0 0.0
    %2418 = vmatpush1.msra.mxu0 0.0
    %2419 = vmatprep.subr.mxu0 0.0
    %2420 = vmatpush1.msra.mxu0 0.0
    %2421 = vmatprep.subr.mxu0 0.0
    %2422 = vmatpush1.msra.mxu0 0.0
    %2423 = vmatprep.subr.mxu0 0.0
    %2424 = vmatpush1.msra.mxu0 0.0
    %2425 = vmatprep.subr.mxu0 0.0
    %2426 = vmatpush1.msra.mxu0 0.0
    %2427 = vmatprep.subr.mxu0 0.0
    %2428 = vmatpush1.msra.mxu0 0.0
    %2429 = vmatprep.mubr.f32.mxu0 0.0
    %2430 = vmatmul.mubr.f32.gmra.mrb[0].mxu0 %v2360
    %v2431 = vpop.f32.mrb[0].mxu0
    %v2432 = vadd.f32 0.0, %v2431
    %v2433 = vpop.f32.mrb[0].mxu0
    %2434 = vmatprep.mubr.f32.mxu0 0.0
    %2435 = vmatmul.mubr.f32.gmra.mrb[0].mxu0 %v2363
    %v2436 = vpop.f32.mrb[0].mxu0
    %v2437 = vadd.f32 0.0, %v2436
    %v2438 = vpop.f32.mrb[0].mxu0
    %2439 = vdwg.mxu0
    %v2441 = vsel %vm184, %v2432, 0
    %v2444 = vsel %vm184, %v2437, 0
    %2446 = vmatprep.subr.mxu0 0.0
    %2447 = vmatpush1.msra.mxu0 %v1912
    %2448 = vmatprep.subr.mxu0 0.0
    %2449 = vmatpush1.msra.mxu0 %v1913
    %2450 = vmatprep.subr.mxu0 0.0
    %2451 = vmatpush1.msra.mxu0 0.0
    %2452 = vmatprep.subr.mxu0 0.0
    %2453 = vmatpush1.msra.mxu0 0.0
    %2454 = vmatprep.subr.mxu0 0.0
    %2455 = vmatpush1.msra.mxu0 0.0
    %2456 = vmatprep.subr.mxu0 0.0
    %2457 = vmatpush1.msra.mxu0 0.0
    %2458 = vmatprep.subr.mxu0 0.0
    %2459 = vmatpush1.msra.mxu0 0.0
    %2460 = vmatprep.subr.mxu0 0.0
    %2461 = vmatpush1.msra.mxu0 0.0
    %2462 = vmatprep.subr.mxu0 0.0
    %2463 = vmatpush1.msra.mxu0 0.0
    %2464 = vmatprep.subr.mxu0 0.0
    %2465 = vmatpush1.msra.mxu0 0.0
    %2466 = vmatprep.subr.mxu0 0.0
    %2467 = vmatpush1.msra.mxu0 0.0
    %2468 = vmatprep.subr.mxu0 0.0
    %2469 = vmatpush1.msra.mxu0 0.0
    %2470 = vmatprep.subr.mxu0 0.0
    %2471 = vmatpush1.msra.mxu0 0.0
    %2472 = vmatprep.subr.mxu0 0.0
    %2473 = vmatpush1.msra.mxu0 0.0
    %2474 = vmatprep.subr.mxu0 0.0
    %2475 = vmatpush1.msra.mxu0 0.0
    %2476 = vmatprep.subr.mxu0 0.0
    %2477 = vmatpush1.msra.mxu0 0.0
    %2478 = vmatprep.subr.mxu0 0.0
    %2479 = vmatpush1.msra.mxu0 0.0
    %2480 = vmatprep.subr.mxu0 0.0
    %2481 = vmatpush1.msra.mxu0 0.0
    %2482 = vmatprep.subr.mxu0 0.0
    %2483 = vmatpush1.msra.mxu0 0.0
    %2484 = vmatprep.subr.mxu0 0.0
    %2485 = vmatpush1.msra.mxu0 0.0
    %2486 = vmatprep.subr.mxu0 0.0
    %2487 = vmatpush1.msra.mxu0 0.0
    %2488 = vmatprep.subr.mxu0 0.0
    %2489 = vmatpush1.msra.mxu0 0.0
    %2490 = vmatprep.subr.mxu0 0.0
    %2491 = vmatpush1.msra.mxu0 0.0
    %2492 = vmatprep.subr.mxu0 0.0
    %2493 = vmatpush1.msra.mxu0 0.0
    %2494 = vmatprep.subr.mxu0 0.0
    %2495 = vmatpush1.msra.mxu0 0.0
    %2496 = vmatprep.subr.mxu0 0.0
    %2497 = vmatpush1.msra.mxu0 0.0
    %2498 = vmatprep.subr.mxu0 0.0
    %2499 = vmatpush1.msra.mxu0 0.0
    %2500 = vmatprep.subr.mxu0 0.0
    %2501 = vmatpush1.msra.mxu0 0.0
    %2502 = vmatprep.subr.mxu0 0.0
    %2503 = vmatpush1.msra.mxu0 0.0
    %2504 = vmatprep.subr.mxu0 0.0
    %2505 = vmatpush1.msra.mxu0 0.0
    %2506 = vmatprep.subr.mxu0 0.0
    %2507 = vmatpush1.msra.mxu0 0.0
    %2508 = vmatprep.subr.mxu0 0.0
    %2509 = vmatpush1.msra.mxu0 0.0
    %2510 = vmatprep.mubr.f32.mxu0 0.0
    %2511 = vmatmul.mubr.f32.gmra.mrb[0].mxu0 %v2441
    %v2512 = vpop.f32.mrb[0].mxu0
    %v2513 = vadd.f32 0.0, %v2512
    %v2514 = vpop.f32.mrb[0].mxu0
    %2515 = vmatprep.mubr.f32.mxu0 0.0
    %2516 = vmatmul.mubr.f32.gmra.mrb[0].mxu0 %v2444
    %v2517 = vpop.f32.mrb[0].mxu0
    %v2518 = vadd.f32 0.0, %v2517
    %v2519 = vpop.f32.mrb[0].mxu0
    %2520 = vdwg.mxu0
    %v2522 = vsel %vm184, %v2216, 0
    %v2525 = vsel %vm184, %v2221, 0
    %2527 = vmatprep.subr.mxu0 0.0
    %2528 = vmatpush1.msra.mxu0 %v1910
    %2529 = vmatprep.subr.mxu0 0.0
    %2530 = vmatpush1.msra.mxu0 %v1911
    %2531 = vmatprep.subr.mxu0 0.0
    %2532 = vmatpush1.msra.mxu0 0.0
    %2533 = vmatprep.subr.mxu0 0.0
    %2534 = vmatpush1.msra.mxu0 0.0
    %2535 = vmatprep.subr.mxu0 0.0
    %2536 = vmatpush1.msra.mxu0 0.0
    %2537 = vmatprep.subr.mxu0 0.0
    %2538 = vmatpush1.msra.mxu0 0.0
    %2539 = vmatprep.subr.mxu0 0.0
    %2540 = vmatpush1.msra.mxu0 0.0
    %2541 = vmatprep.subr.mxu0 0.0
    %2542 = vmatpush1.msra.mxu0 0.0
    %2543 = vmatprep.subr.mxu0 0.0
    %2544 = vmatpush1.msra.mxu0 0.0
    %2545 = vmatprep.subr.mxu0 0.0
    %2546 = vmatpush1.msra.mxu0 0.0
    %2547 = vmatprep.subr.mxu0 0.0
    %2548 = vmatpush1.msra.mxu0 0.0
    %2549 = vmatprep.subr.mxu0 0.0
    %2550 = vmatpush1.msra.mxu0 0.0
    %2551 = vmatprep.subr.mxu0 0.0
    %2552 = vmatpush1.msra.mxu0 0.0
    %2553 = vmatprep.subr.mxu0 0.0
    %2554 = vmatpush1.msra.mxu0 0.0
    %2555 = vmatprep.subr.mxu0 0.0
    %2556 = vmatpush1.msra.mxu0 0.0
    %2557 = vmatprep.subr.mxu0 0.0
    %2558 = vmatpush1.msra.mxu0 0.0
    %2559 = vmatprep.subr.mxu0 0.0
    %2560 = vmatpush1.msra.mxu0 0.0
    %2561 = vmatprep.subr.mxu0 0.0
    %2562 = vmatpush1.msra.mxu0 0.0
    %2563 = vmatprep.subr.mxu0 0.0
    %2564 = vmatpush1.msra.mxu0 0.0
    %2565 = vmatprep.subr.mxu0 0.0
    %2566 = vmatpush1.msra.mxu0 0.0
    %2567 = vmatprep.subr.mxu0 0.0
    %2568 = vmatpush1.msra.mxu0 0.0
    %2569 = vmatprep.subr.mxu0 0.0
    %2570 = vmatpush1.msra.mxu0 0.0
    %2571 = vmatprep.subr.mxu0 0.0
    %2572 = vmatpush1.msra.mxu0 0.0
    %2573 = vmatprep.subr.mxu0 0.0
    %2574 = vmatpush1.msra.mxu0 0.0
    %2575 = vmatprep.subr.mxu0 0.0
    %2576 = vmatpush1.msra.mxu0 0.0
    %2577 = vmatprep.subr.mxu0 0.0
    %2578 = vmatpush1.msra.mxu0 0.0
    %2579 = vmatprep.subr.mxu0 0.0
    %2580 = vmatpush1.msra.mxu0 0.0
    %2581 = vmatprep.subr.mxu0 0.0
    %2582 = vmatpush1.msra.mxu0 0.0
    %2583 = vmatprep.subr.mxu0 0.0
    %2584 = vmatpush1.msra.mxu0 0.0
    %2585 = vmatprep.subr.mxu0 0.0
    %2586 = vmatpush1.msra.mxu0 0.0
    %2587 = vmatprep.subr.mxu0 0.0
    %2588 = vmatpush1.msra.mxu0 0.0
    %2589 = vmatprep.subr.mxu0 0.0
    %2590 = vmatpush1.msra.mxu0 0.0
    %2591 = vmatprep.mubr.f32.mxu0 0.0
    %2592 = vmatmul.mubr.f32.gmra.mrb[0].mxu0 %v2522
    %v2593 = vpop.f32.mrb[0].mxu0
    %v2594 = vadd.f32 %v2513, %v2593
    %v2595 = vpop.f32.mrb[0].mxu0
    %2596 = vmatprep.mubr.f32.mxu0 0.0
    %2597 = vmatmul.mubr.f32.gmra.mrb[0].mxu0 %v2525
    %v2598 = vpop.f32.mrb[0].mxu0
    %v2599 = vadd.f32 %v2518, %v2598
    %v2600 = vpop.f32.mrb[0].mxu0
    %2601 = vdwg.mxu0
    %v2602 = vlaneseq
    %v2603 = vshrl.u32 %v2602, 7
    %v2604 = vsub.s32 1, %v2603
    %v2605 = vrot.slane %v1924, %v2604
    %v2606 = vadd.f32 %v2594, %v2605
    %v2607 = vadd.f32 %v2599, %v2605
    %v2608 = vadd.f32 %v2606, %v1902
    %v2609 = vadd.f32 %v2607, %v1903
    %v2610 = vsel %vm96, %v2608, 0.0
    %2611 = vadd.xlane.f32.xlu0 %v2610
    %v2612 = vpop.xlane.xlu0 %2611
    %v2613 = vsel %vm96, %v2609, 0.0
    %2614 = vadd.xlane.f32.xlu0 %v2613
    %v2615 = vpop.xlane.xlu0 %2614
    %v2616 = vmul.f32 %v2612, %v791
    %v2617 = vmul.f32 %v2615, %v791
    %v2618 = vsub.f32 %v2608, %v2616
    %v2619 = vsub.f32 %v2609, %v2617
    %v2620 = vmul.f32 %v2618, %v2618
    %v2621 = vmul.f32 %v2619, %v2619
    %v2622 = vsel %vm96, %v2620, 0.0
    %2623 = vadd.xlane.f32.xlu0 %v2622
    %v2624 = vpop.xlane.xlu0 %2623
    %v2625 = vsel %vm96, %v2621, 0.0
    %2626 = vadd.xlane.f32.xlu0 %v2625
    %v2627 = vpop.xlane.xlu0 %2626
    %v2628 = vmul.f32 %v2624, %v791
    %v2629 = vmul.f32 %v2627, %v791
    %v2630 = vadd.f32 %v2628, 1e-05
    %v2631 = vadd.f32 %v2629, 1e-05
    %v2632 = vrsqrt.pop %v2630
    %v2633 = vrsqrt.pop %v2631
    %v2634 = vmul.f32 %v2618, %v2632
    %v2635 = vmul.f32 %v2619, %v2633
    %v2636 = vlaneseq
    %v2637 = vshrl.u32 %v2636, 7
    %v2638 = vsub.s32 2, %v2637
    %v2639 = vrot.slane %v1924, %v2638
    %v2640 = vmul.f32 %v2634, %v2639
    %v2641 = vmul.f32 %v2635, %v2639
    %v2642 = vlaneseq
    %v2643 = vshrl.u32 %v2642, 7
    %v2644 = vsub.s32 3, %v2643
    %v2645 = vrot.slane %v1924, %v2644
    %v2646 = vadd.f32 %v2640, %v2645
    %v2647 = vadd.f32 %v2641, %v2645
    %v2648 = vmul.f32 %v2646, %v827
    %v2649 = vmul.f32 %v2647, %v832
    %v2650 = vrot.slane %v2648, 4
    %v2651 = vrot.slane %v2649, 4
    %v2652 = vsel %vm840, %v2650, %v2651
    %v2653 = vsel %vm840, %v2651, %v2650
    %v2654 = vmul.f32 %v2653, %v846
    %v2655 = vmul.f32 %v2652, %v851
    %s2656 = scalar_lea.vmem [#allocation2], 288
    %v2657 = vld [vmem:[%s2656] sm:$0xff]
    %v2658 = vld [vmem:[%s2656 + $0x8] sm:$0xff]
    %v2659 = vld [vmem:[%s2656 + $0x10] sm:$0xff]
    %v2660 = vld [vmem:[%s2656 + $0x18] sm:$0xff]
    %v2661 = vrot.slane %v2648, 5
    %v2662 = vrot.slane %v2649, 5
    %v2663 = vsel %vm861, %v2661, %v2662
    %v2664 = vsel %vm861, %v2662, %v2661
    %v2665 = vmul.f32 %v2664, %v867
    %v2666 = vmul.f32 %v2663, %v872
    %s2667 = scalar_lea.vmem [#allocation2], 320
    %v2668 = vld [vmem:[%s2667] sm:$0xff]
    %v2669 = vld [vmem:[%s2667 + $0x8] sm:$0xff]
    %v2670 = vld [vmem:[%s2667 + $0x10] sm:$0xff]
    %v2671 = vld [vmem:[%s2667 + $0x18] sm:$0xff]
    %v2673 = vsel %vm96, %v2665, 0
    %v2676 = vsel %vm96, %v2666, 0
    %2678 = vmatprep.subr.mxu0 0.0
    %2679 = vmatpush1.msra.mxu0 %v2668
    %2680 = vmatprep.subr.mxu0 0.0
    %2681 = vmatpush1.msra.mxu0 %v2669
    %2682 = vmatprep.subr.mxu0 0.0
    %2683 = vmatpush1.msra.mxu0 %v2670
    %2684 = vmatprep.subr.mxu0 0.0
    %2685 = vmatpush1.msra.mxu0 %v2671
    %2686 = vmatprep.subr.mxu0 0.0
    %2687 = vmatpush1.msra.mxu0 0.0
    %2688 = vmatprep.subr.mxu0 0.0
    %2689 = vmatpush1.msra.mxu0 0.0
    %2690 = vmatprep.subr.mxu0 0.0
    %2691 = vmatpush1.msra.mxu0 0.0
    %2692 = vmatprep.subr.mxu0 0.0
    %2693 = vmatpush1.msra.mxu0 0.0
    %2694 = vmatprep.subr.mxu0 0.0
    %2695 = vmatpush1.msra.mxu0 0.0
    %2696 = vmatprep.subr.mxu0 0.0
    %2697 = vmatpush1.msra.mxu0 0.0
    %2698 = vmatprep.subr.mxu0 0.0
    %2699 = vmatpush1.msra.mxu0 0.0
    %2700 = vmatprep.subr.mxu0 0.0
    %2701 = vmatpush1.msra.mxu0 0.0
    %2702 = vmatprep.subr.mxu0 0.0
    %2703 = vmatpush1.msra.mxu0 0.0
    %2704 = vmatprep.subr.mxu0 0.0
    %2705 = vmatpush1.msra.mxu0 0.0
    %2706 = vmatprep.subr.mxu0 0.0
    %2707 = vmatpush1.msra.mxu0 0.0
    %2708 = vmatprep.subr.mxu0 0.0
    %2709 = vmatpush1.msra.mxu0 0.0
    %2710 = vmatprep.subr.mxu0 0.0
    %2711 = vmatpush1.msra.mxu0 0.0
    %2712 = vmatprep.subr.mxu0 0.0
    %2713 = vmatpush1.msra.mxu0 0.0
    %2714 = vmatprep.subr.mxu0 0.0
    %2715 = vmatpush1.msra.mxu0 0.0
    %2716 = vmatprep.subr.mxu0 0.0
    %2717 = vmatpush1.msra.mxu0 0.0
    %2718 = vmatprep.subr.mxu0 0.0
    %2719 = vmatpush1.msra.mxu0 0.0
    %2720 = vmatprep.subr.mxu0 0.0
    %2721 = vmatpush1.msra.mxu0 0.0
    %2722 = vmatprep.subr.mxu0 0.0
    %2723 = vmatpush1.msra.mxu0 0.0
    %2724 = vmatprep.subr.mxu0 0.0
    %2725 = vmatpush1.msra.mxu0 0.0
    %2726 = vmatprep.subr.mxu0 0.0
    %2727 = vmatpush1.msra.mxu0 0.0
    %2728 = vmatprep.subr.mxu0 0.0
    %2729 = vmatpush1.msra.mxu0 0.0
    %2730 = vmatprep.subr.mxu0 0.0
    %2731 = vmatpush1.msra.mxu0 0.0
    %2732 = vmatprep.subr.mxu0 0.0
    %2733 = vmatpush1.msra.mxu0 0.0
    %2734 = vmatprep.subr.mxu0 0.0
    %2735 = vmatpush1.msra.mxu0 0.0
    %2736 = vmatprep.subr.mxu0 0.0
    %2737 = vmatpush1.msra.mxu0 0.0
    %2738 = vmatprep.subr.mxu0 0.0
    %2739 = vmatpush1.msra.mxu0 0.0
    %2740 = vmatprep.subr.mxu0 0.0
    %2741 = vmatpush1.msra.mxu0 0.0
    %2742 = vmatprep.mubr.f32.mxu0 0.0
    %2743 = vmatmul.mubr.f32.gmra.mrb[0].mxu0 %v2673
    %v2744 = vpop.f32.mrb[0].mxu0
    %v2745 = vadd.f32 0.0, %v2744
    %v2746 = vpop.f32.mrb[0].mxu0
    %2747 = vmatprep.mubr.f32.mxu0 0.0
    %2748 = vmatmul.mubr.f32.gmra.mrb[0].mxu0 %v2676
    %v2749 = vpop.f32.mrb[0].mxu0
    %v2750 = vadd.f32 0.0, %v2749
    %v2751 = vpop.f32.mrb[0].mxu0
    %2752 = vdwg.mxu0
    %v2754 = vsel %vm96, %v2654, 0
    %v2757 = vsel %vm96, %v2655, 0
    %2759 = vmatprep.subr.mxu0 0.0
    %2760 = vmatpush1.msra.mxu0 %v2657
    %2761 = vmatprep.subr.mxu0 0.0
    %2762 = vmatpush1.msra.mxu0 %v2658
    %2763 = vmatprep.subr.mxu0 0.0
    %2764 = vmatpush1.msra.mxu0 %v2659
    %2765 = vmatprep.subr.mxu0 0.0
    %2766 = vmatpush1.msra.mxu0 %v2660
    %2767 = vmatprep.subr.mxu0 0.0
    %2768 = vmatpush1.msra.mxu0 0.0
    %2769 = vmatprep.subr.mxu0 0.0
    %2770 = vmatpush1.msra.mxu0 0.0
    %2771 = vmatprep.subr.mxu0 0.0
    %2772 = vmatpush1.msra.mxu0 0.0
    %2773 = vmatprep.subr.mxu0 0.0
    %2774 = vmatpush1.msra.mxu0 0.0
    %2775 = vmatprep.subr.mxu0 0.0
    %2776 = vmatpush1.msra.mxu0 0.0
    %2777 = vmatprep.subr.mxu0 0.0
    %2778 = vmatpush1.msra.mxu0 0.0
    %2779 = vmatprep.subr.mxu0 0.0
    %2780 = vmatpush1.msra.mxu0 0.0
    %2781 = vmatprep.subr.mxu0 0.0
    %2782 = vmatpush1.msra.mxu0 0.0
    %2783 = vmatprep.subr.mxu0 0.0
    %2784 = vmatpush1.msra.mxu0 0.0
    %2785 = vmatprep.subr.mxu0 0.0
    %2786 = vmatpush1.msra.mxu0 0.0
    %2787 = vmatprep.subr.mxu0 0.0
    %2788 = vmatpush1.msra.mxu0 0.0
    %2789 = vmatprep.subr.mxu0 0.0
    %2790 = vmatpush1.msra.mxu0 0.0
    %2791 = vmatprep.subr.mxu0 0.0
    %2792 = vmatpush1.msra.mxu0 0.0
    %2793 = vmatprep.subr.mxu0 0.0
    %2794 = vmatpush1.msra.mxu0 0.0
    %2795 = vmatprep.subr.mxu0 0.0
    %2796 = vmatpush1.msra.mxu0 0.0
    %2797 = vmatprep.subr.mxu0 0.0
    %2798 = vmatpush1.msra.mxu0 0.0
    %2799 = vmatprep.subr.mxu0 0.0
    %2800 = vmatpush1.msra.mxu0 0.0
    %2801 = vmatprep.subr.mxu0 0.0
    %2802 = vmatpush1.msra.mxu0 0.0
    %2803 = vmatprep.subr.mxu0 0.0
    %2804 = vmatpush1.msra.mxu0 0.0
    %2805 = vmatprep.subr.mxu0 0.0
    %2806 = vmatpush1.msra.mxu0 0.0
    %2807 = vmatprep.subr.mxu0 0.0
    %2808 = vmatpush1.msra.mxu0 0.0
    %2809 = vmatprep.subr.mxu0 0.0
    %2810 = vmatpush1.msra.mxu0 0.0
    %2811 = vmatprep.subr.mxu0 0.0
    %2812 = vmatpush1.msra.mxu0 0.0
    %2813 = vmatprep.subr.mxu0 0.0
    %2814 = vmatpush1.msra.mxu0 0.0
    %2815 = vmatprep.subr.mxu0 0.0
    %2816 = vmatpush1.msra.mxu0 0.0
    %2817 = vmatprep.subr.mxu0 0.0
    %2818 = vmatpush1.msra.mxu0 0.0
    %2819 = vmatprep.subr.mxu0 0.0
    %2820 = vmatpush1.msra.mxu0 0.0
    %2821 = vmatprep.subr.mxu0 0.0
    %2822 = vmatpush1.msra.mxu0 0.0
    %2823 = vmatprep.mubr.f32.mxu0 0.0
    %2824 = vmatmul.mubr.f32.gmra.mrb[0].mxu0 %v2754
    %v2825 = vpop.f32.mrb[0].mxu0
    %v2826 = vadd.f32 %v2745, %v2825
    %v2827 = vpop.f32.mrb[0].mxu0
    %2828 = vmatprep.mubr.f32.mxu0 0.0
    %2829 = vmatmul.mubr.f32.gmra.mrb[0].mxu0 %v2757
    %v2830 = vpop.f32.mrb[0].mxu0
    %v2831 = vadd.f32 %v2750, %v2830
    %v2832 = vpop.f32.mrb[0].mxu0
    %2833 = vdwg.mxu0
    %v2834 = vrot.slane %v2648, 6
    %v2835 = vrot.slane %v2649, 6
    %v2836 = vsel %vm1045, %v2834, %v2835
    %v2837 = vsel %vm1045, %v2835, %v2834
    %v2838 = vmul.f32 %v2837, %v1051
    %v2839 = vmul.f32 %v2836, %v1056
    %s2840 = scalar_lea.vmem [#allocation2], 352
    %v2841 = vld [vmem:[%s2840] sm:$0xff]
    %v2842 = vld [vmem:[%s2840 + $0x8] sm:$0xff]
    %v2843 = vld [vmem:[%s2840 + $0x10] sm:$0xff]
    %v2844 = vld [vmem:[%s2840 + $0x18] sm:$0xff]
    %v2846 = vsel %vm96, %v2838, 0
    %v2849 = vsel %vm96, %v2839, 0
    %2851 = vmatprep.subr.mxu0 0.0
    %2852 = vmatpush1.msra.mxu0 %v2841
    %2853 = vmatprep.subr.mxu0 0.0
    %2854 = vmatpush1.msra.mxu0 %v2842
    %2855 = vmatprep.subr.mxu0 0.0
    %2856 = vmatpush1.msra.mxu0 %v2843
    %2857 = vmatprep.subr.mxu0 0.0
    %2858 = vmatpush1.msra.mxu0 %v2844
    %2859 = vmatprep.subr.mxu0 0.0
    %2860 = vmatpush1.msra.mxu0 0.0
    %2861 = vmatprep.subr.mxu0 0.0
    %2862 = vmatpush1.msra.mxu0 0.0
    %2863 = vmatprep.subr.mxu0 0.0
    %2864 = vmatpush1.msra.mxu0 0.0
    %2865 = vmatprep.subr.mxu0 0.0
    %2866 = vmatpush1.msra.mxu0 0.0
    %2867 = vmatprep.subr.mxu0 0.0
    %2868 = vmatpush1.msra.mxu0 0.0
    %2869 = vmatprep.subr.mxu0 0.0
    %2870 = vmatpush1.msra.mxu0 0.0
    %2871 = vmatprep.subr.mxu0 0.0
    %2872 = vmatpush1.msra.mxu0 0.0
    %2873 = vmatprep.subr.mxu0 0.0
    %2874 = vmatpush1.msra.mxu0 0.0
    %2875 = vmatprep.subr.mxu0 0.0
    %2876 = vmatpush1.msra.mxu0 0.0
    %2877 = vmatprep.subr.mxu0 0.0
    %2878 = vmatpush1.msra.mxu0 0.0
    %2879 = vmatprep.subr.mxu0 0.0
    %2880 = vmatpush1.msra.mxu0 0.0
    %2881 = vmatprep.subr.mxu0 0.0
    %2882 = vmatpush1.msra.mxu0 0.0
    %2883 = vmatprep.subr.mxu0 0.0
    %2884 = vmatpush1.msra.mxu0 0.0
    %2885 = vmatprep.subr.mxu0 0.0
    %2886 = vmatpush1.msra.mxu0 0.0
    %2887 = vmatprep.subr.mxu0 0.0
    %2888 = vmatpush1.msra.mxu0 0.0
    %2889 = vmatprep.subr.mxu0 0.0
    %2890 = vmatpush1.msra.mxu0 0.0
    %2891 = vmatprep.subr.mxu0 0.0
    %2892 = vmatpush1.msra.mxu0 0.0
    %2893 = vmatprep.subr.mxu0 0.0
    %2894 = vmatpush1.msra.mxu0 0.0
    %2895 = vmatprep.subr.mxu0 0.0
    %2896 = vmatpush1.msra.mxu0 0.0
    %2897 = vmatprep.subr.mxu0 0.0
    %2898 = vmatpush1.msra.mxu0 0.0
    %2899 = vmatprep.subr.mxu0 0.0
    %2900 = vmatpush1.msra.mxu0 0.0
    %2901 = vmatprep.subr.mxu0 0.0
    %2902 = vmatpush1.msra.mxu0 0.0
    %2903 = vmatprep.subr.mxu0 0.0
    %2904 = vmatpush1.msra.mxu0 0.0
    %2905 = vmatprep.subr.mxu0 0.0
    %2906 = vmatpush1.msra.mxu0 0.0
    %2907 = vmatprep.subr.mxu0 0.0
    %2908 = vmatpush1.msra.mxu0 0.0
    %2909 = vmatprep.subr.mxu0 0.0
    %2910 = vmatpush1.msra.mxu0 0.0
    %2911 = vmatprep.subr.mxu0 0.0
    %2912 = vmatpush1.msra.mxu0 0.0
    %2913 = vmatprep.subr.mxu0 0.0
    %2914 = vmatpush1.msra.mxu0 0.0
    %2915 = vmatprep.mubr.f32.mxu0 0.0
    %2916 = vmatmul.mubr.f32.gmra.mrb[0].mxu0 %v2846
    %v2917 = vpop.f32.mrb[0].mxu0
    %v2918 = vadd.f32 0.0, %v2917
    %v2919 = vpop.f32.mrb[0].mxu0
    %2920 = vmatprep.mubr.f32.mxu0 0.0
    %2921 = vmatmul.mubr.f32.gmra.mrb[0].mxu0 %v2849
    %v2922 = vpop.f32.mrb[0].mxu0
    %v2923 = vadd.f32 0.0, %v2922
    %v2924 = vpop.f32.mrb[0].mxu0
    %2925 = vdwg.mxu0
    %v2926 = vadd.f32 %v2826, %v2918
    %v2927 = vadd.f32 %v2831, %v2923
    %v2928 = vrot.slane %v2648, 7
    %v2929 = vrot.slane %v2649, 7
    %v2930 = vsel %vm1150, %v2928, %v2929
    %v2931 = vsel %vm1150, %v2929, %v2928
    %v2932 = vmul.f32 %v2931, %v1156
    %v2933 = vmul.f32 %v2930, %v1161
    %s2934 = scalar_lea.vmem [#allocation2], 384
    %v2935 = vld [vmem:[%s2934] sm:$0xff]
    %v2936 = vld [vmem:[%s2934 + $0x8] sm:$0xff]
    %v2937 = vld [vmem:[%s2934 + $0x10] sm:$0xff]
    %v2938 = vld [vmem:[%s2934 + $0x18] sm:$0xff]
    %v2940 = vsel %vm96, %v2932, 0
    %v2943 = vsel %vm96, %v2933, 0
    %2945 = vmatprep.subr.mxu0 0.0
    %2946 = vmatpush1.msra.mxu0 %v2935
    %2947 = vmatprep.subr.mxu0 0.0
    %2948 = vmatpush1.msra.mxu0 %v2936
    %2949 = vmatprep.subr.mxu0 0.0
    %2950 = vmatpush1.msra.mxu0 %v2937
    %2951 = vmatprep.subr.mxu0 0.0
    %2952 = vmatpush1.msra.mxu0 %v2938
    %2953 = vmatprep.subr.mxu0 0.0
    %2954 = vmatpush1.msra.mxu0 0.0
    %2955 = vmatprep.subr.mxu0 0.0
    %2956 = vmatpush1.msra.mxu0 0.0
    %2957 = vmatprep.subr.mxu0 0.0
    %2958 = vmatpush1.msra.mxu0 0.0
    %2959 = vmatprep.subr.mxu0 0.0
    %2960 = vmatpush1.msra.mxu0 0.0
    %2961 = vmatprep.subr.mxu0 0.0
    %2962 = vmatpush1.msra.mxu0 0.0
    %2963 = vmatprep.subr.mxu0 0.0
    %2964 = vmatpush1.msra.mxu0 0.0
    %2965 = vmatprep.subr.mxu0 0.0
    %2966 = vmatpush1.msra.mxu0 0.0
    %2967 = vmatprep.subr.mxu0 0.0
    %2968 = vmatpush1.msra.mxu0 0.0
    %2969 = vmatprep.subr.mxu0 0.0
    %2970 = vmatpush1.msra.mxu0 0.0
    %2971 = vmatprep.subr.mxu0 0.0
    %2972 = vmatpush1.msra.mxu0 0.0
    %2973 = vmatprep.subr.mxu0 0.0
    %2974 = vmatpush1.msra.mxu0 0.0
    %2975 = vmatprep.subr.mxu0 0.0
    %2976 = vmatpush1.msra.mxu0 0.0
    %2977 = vmatprep.subr.mxu0 0.0
    %2978 = vmatpush1.msra.mxu0 0.0
    %2979 = vmatprep.subr.mxu0 0.0
    %2980 = vmatpush1.msra.mxu0 0.0
    %2981 = vmatprep.subr.mxu0 0.0
    %2982 = vmatpush1.msra.mxu0 0.0
    %2983 = vmatprep.subr.mxu0 0.0
    %2984 = vmatpush1.msra.mxu0 0.0
    %2985 = vmatprep.subr.mxu0 0.0
    %2986 = vmatpush1.msra.mxu0 0.0
    %2987 = vmatprep.subr.mxu0 0.0
    %2988 = vmatpush1.msra.mxu0 0.0
    %2989 = vmatprep.subr.mxu0 0.0
    %2990 = vmatpush1.msra.mxu0 0.0
    %2991 = vmatprep.subr.mxu0 0.0
    %2992 = vmatpush1.msra.mxu0 0.0
    %2993 = vmatprep.subr.mxu0 0.0
    %2994 = vmatpush1.msra.mxu0 0.0
    %2995 = vmatprep.subr.mxu0 0.0
    %2996 = vmatpush1.msra.mxu0 0.0
    %2997 = vmatprep.subr.mxu0 0.0
    %2998 = vmatpush1.msra.mxu0 0.0
    %2999 = vmatprep.subr.mxu0 0.0
    %3000 = vmatpush1.msra.mxu0 0.0
    %3001 = vmatprep.subr.mxu0 0.0
    %3002 = vmatpush1.msra.mxu0 0.0
    %3003 = vmatprep.subr.mxu0 0.0
    %3004 = vmatpush1.msra.mxu0 0.0
    %3005 = vmatprep.subr.mxu0 0.0
    %3006 = vmatpush1.msra.mxu0 0.0
    %3007 = vmatprep.subr.mxu0 0.0
    %3008 = vmatpush1.msra.mxu0 0.0
    %3009 = vmatprep.mubr.f32.mxu0 0.0
    %3010 = vmatmul.mubr.f32.gmra.mrb[0].mxu0 %v2940
    %v3011 = vpop.f32.mrb[0].mxu0
    %v3012 = vadd.f32 0.0, %v3011
    %v3013 = vpop.f32.mrb[0].mxu0
    %3014 = vmatprep.mubr.f32.mxu0 0.0
    %3015 = vmatmul.mubr.f32.gmra.mrb[0].mxu0 %v2943
    %v3016 = vpop.f32.mrb[0].mxu0
    %v3017 = vadd.f32 0.0, %v3016
    %v3018 = vpop.f32.mrb[0].mxu0
    %3019 = vdwg.mxu0
    %v3020 = vadd.f32 %v2926, %v3012
    %v3021 = vadd.f32 %v2927, %v3017
    %v3022 = vmul.f32 %v2648, %v1256
    %v3023 = vmul.f32 %v2649, %v1261
    %s3024 = scalar_lea.vmem [#allocation2], 416
    %v3025 = vld [vmem:[%s3024] sm:$0xff]
    %v3026 = vld [vmem:[%s3024 + $0x8] sm:$0xff]
    %v3027 = vld [vmem:[%s3024 + $0x10] sm:$0xff]
    %v3028 = vld [vmem:[%s3024 + $0x18] sm:$0xff]
    %v3030 = vsel %vm96, %v3022, 0
    %v3033 = vsel %vm96, %v3023, 0
    %3035 = vmatprep.subr.mxu0 0.0
    %3036 = vmatpush1.msra.mxu0 %v3025
    %3037 = vmatprep.subr.mxu0 0.0
    %3038 = vmatpush1.msra.mxu0 %v3026
    %3039 = vmatprep.subr.mxu0 0.0
    %3040 = vmatpush1.msra.mxu0 %v3027
    %3041 = vmatprep.subr.mxu0 0.0
    %3042 = vmatpush1.msra.mxu0 %v3028
    %3043 = vmatprep.subr.mxu0 0.0
    %3044 = vmatpush1.msra.mxu0 0.0
    %3045 = vmatprep.subr.mxu0 0.0
    %3046 = vmatpush1.msra.mxu0 0.0
    %3047 = vmatprep.subr.mxu0 0.0
    %3048 = vmatpush1.msra.mxu0 0.0
    %3049 = vmatprep.subr.mxu0 0.0
    %3050 = vmatpush1.msra.mxu0 0.0
    %3051 = vmatprep.subr.mxu0 0.0
    %3052 = vmatpush1.msra.mxu0 0.0
    %3053 = vmatprep.subr.mxu0 0.0
    %3054 = vmatpush1.msra.mxu0 0.0
    %3055 = vmatprep.subr.mxu0 0.0
    %3056 = vmatpush1.msra.mxu0 0.0
    %3057 = vmatprep.subr.mxu0 0.0
    %3058 = vmatpush1.msra.mxu0 0.0
    %3059 = vmatprep.subr.mxu0 0.0
    %3060 = vmatpush1.msra.mxu0 0.0
    %3061 = vmatprep.subr.mxu0 0.0
    %3062 = vmatpush1.msra.mxu0 0.0
    %3063 = vmatprep.subr.mxu0 0.0
    %3064 = vmatpush1.msra.mxu0 0.0
    %3065 = vmatprep.subr.mxu0 0.0
    %3066 = vmatpush1.msra.mxu0 0.0
    %3067 = vmatprep.subr.mxu0 0.0
    %3068 = vmatpush1.msra.mxu0 0.0
    %3069 = vmatprep.subr.mxu0 0.0
    %3070 = vmatpush1.msra.mxu0 0.0
    %3071 = vmatprep.subr.mxu0 0.0
    %3072 = vmatpush1.msra.mxu0 0.0
    %3073 = vmatprep.subr.mxu0 0.0
    %3074 = vmatpush1.msra.mxu0 0.0
    %3075 = vmatprep.subr.mxu0 0.0
    %3076 = vmatpush1.msra.mxu0 0.0
    %3077 = vmatprep.subr.mxu0 0.0
    %3078 = vmatpush1.msra.mxu0 0.0
    %3079 = vmatprep.subr.mxu0 0.0
    %3080 = vmatpush1.msra.mxu0 0.0
    %3081 = vmatprep.subr.mxu0 0.0
    %3082 = vmatpush1.msra.mxu0 0.0
    %3083 = vmatprep.subr.mxu0 0.0
    %3084 = vmatpush1.msra.mxu0 0.0
    %3085 = vmatprep.subr.mxu0 0.0
    %3086 = vmatpush1.msra.mxu0 0.0
    %3087 = vmatprep.subr.mxu0 0.0
    %3088 = vmatpush1.msra.mxu0 0.0
    %3089 = vmatprep.subr.mxu0 0.0
    %3090 = vmatpush1.msra.mxu0 0.0
    %3091 = vmatprep.subr.mxu0 0.0
    %3092 = vmatpush1.msra.mxu0 0.0
    %3093 = vmatprep.subr.mxu0 0.0
    %3094 = vmatpush1.msra.mxu0 0.0
    %3095 = vmatprep.subr.mxu0 0.0
    %3096 = vmatpush1.msra.mxu0 0.0
    %3097 = vmatprep.subr.mxu0 0.0
    %3098 = vmatpush1.msra.mxu0 0.0
    %3099 = vmatprep.mubr.f32.mxu0 0.0
    %3100 = vmatmul.mubr.f32.gmra.mrb[0].mxu0 %v3030
    %v3101 = vpop.f32.mrb[0].mxu0
    %v3102 = vadd.f32 0.0, %v3101
    %v3103 = vpop.f32.mrb[0].mxu0
    %3104 = vmatprep.mubr.f32.mxu0 0.0
    %3105 = vmatmul.mubr.f32.gmra.mrb[0].mxu0 %v3033
    %v3106 = vpop.f32.mrb[0].mxu0
    %v3107 = vadd.f32 0.0, %v3106
    %v3108 = vpop.f32.mrb[0].mxu0
    %3109 = vdwg.mxu0
    %v3110 = vadd.f32 %v3020, %v3102
    %v3111 = vadd.f32 %v3021, %v3107
    %v3112 = vrot.slane %v2648, 1
    %v3113 = vrot.slane %v2649, 1
    %v3114 = vsel %vm1355, %v3112, %v3113
    %v3115 = vsel %vm1355, %v3113, %v3112
    %v3116 = vmul.f32 %v3114, %v1361
    %v3117 = vmul.f32 %v3115, %v1366
    %s3118 = scalar_lea.vmem [#allocation2], 448
    %v3119 = vld [vmem:[%s3118] sm:$0xff]
    %v3120 = vld [vmem:[%s3118 + $0x8] sm:$0xff]
    %v3121 = vld [vmem:[%s3118 + $0x10] sm:$0xff]
    %v3122 = vld [vmem:[%s3118 + $0x18] sm:$0xff]
    %v3124 = vsel %vm96, %v3116, 0
    %v3127 = vsel %vm96, %v3117, 0
    %3129 = vmatprep.subr.mxu0 0.0
    %3130 = vmatpush1.msra.mxu0 %v3119
    %3131 = vmatprep.subr.mxu0 0.0
    %3132 = vmatpush1.msra.mxu0 %v3120
    %3133 = vmatprep.subr.mxu0 0.0
    %3134 = vmatpush1.msra.mxu0 %v3121
    %3135 = vmatprep.subr.mxu0 0.0
    %3136 = vmatpush1.msra.mxu0 %v3122
    %3137 = vmatprep.subr.mxu0 0.0
    %3138 = vmatpush1.msra.mxu0 0.0
    %3139 = vmatprep.subr.mxu0 0.0
    %3140 = vmatpush1.msra.mxu0 0.0
    %3141 = vmatprep.subr.mxu0 0.0
    %3142 = vmatpush1.msra.mxu0 0.0
    %3143 = vmatprep.subr.mxu0 0.0
    %3144 = vmatpush1.msra.mxu0 0.0
    %3145 = vmatprep.subr.mxu0 0.0
    %3146 = vmatpush1.msra.mxu0 0.0
    %3147 = vmatprep.subr.mxu0 0.0
    %3148 = vmatpush1.msra.mxu0 0.0
    %3149 = vmatprep.subr.mxu0 0.0
    %3150 = vmatpush1.msra.mxu0 0.0
    %3151 = vmatprep.subr.mxu0 0.0
    %3152 = vmatpush1.msra.mxu0 0.0
    %3153 = vmatprep.subr.mxu0 0.0
    %3154 = vmatpush1.msra.mxu0 0.0
    %3155 = vmatprep.subr.mxu0 0.0
    %3156 = vmatpush1.msra.mxu0 0.0
    %3157 = vmatprep.subr.mxu0 0.0
    %3158 = vmatpush1.msra.mxu0 0.0
    %3159 = vmatprep.subr.mxu0 0.0
    %3160 = vmatpush1.msra.mxu0 0.0
    %3161 = vmatprep.subr.mxu0 0.0
    %3162 = vmatpush1.msra.mxu0 0.0
    %3163 = vmatprep.subr.mxu0 0.0
    %3164 = vmatpush1.msra.mxu0 0.0
    %3165 = vmatprep.subr.mxu0 0.0
    %3166 = vmatpush1.msra.mxu0 0.0
    %3167 = vmatprep.subr.mxu0 0.0
    %3168 = vmatpush1.msra.mxu0 0.0
    %3169 = vmatprep.subr.mxu0 0.0
    %3170 = vmatpush1.msra.mxu0 0.0
    %3171 = vmatprep.subr.mxu0 0.0
    %3172 = vmatpush1.msra.mxu0 0.0
    %3173 = vmatprep.subr.mxu0 0.0
    %3174 = vmatpush1.msra.mxu0 0.0
    %3175 = vmatprep.subr.mxu0 0.0
    %3176 = vmatpush1.msra.mxu0 0.0
    %3177 = vmatprep.subr.mxu0 0.0
    %3178 = vmatpush1.msra.mxu0 0.0
    %3179 = vmatprep.subr.mxu0 0.0
    %3180 = vmatpush1.msra.mxu0 0.0
    %3181 = vmatprep.subr.mxu0 0.0
    %3182 = vmatpush1.msra.mxu0 0.0
    %3183 = vmatprep.subr.mxu0 0.0
    %3184 = vmatpush1.msra.mxu0 0.0
    %3185 = vmatprep.subr.mxu0 0.0
    %3186 = vmatpush1.msra.mxu0 0.0
    %3187 = vmatprep.subr.mxu0 0.0
    %3188 = vmatpush1.msra.mxu0 0.0
    %3189 = vmatprep.subr.mxu0 0.0
    %3190 = vmatpush1.msra.mxu0 0.0
    %3191 = vmatprep.subr.mxu0 0.0
    %3192 = vmatpush1.msra.mxu0 0.0
    %3193 = vmatprep.mubr.f32.mxu0 0.0
    %3194 = vmatmul.mubr.f32.gmra.mrb[0].mxu0 %v3124
    %v3195 = vpop.f32.mrb[0].mxu0
    %v3196 = vadd.f32 0.0, %v3195
    %v3197 = vpop.f32.mrb[0].mxu0
    %3198 = vmatprep.mubr.f32.mxu0 0.0
    %3199 = vmatmul.mubr.f32.gmra.mrb[0].mxu0 %v3127
    %v3200 = vpop.f32.mrb[0].mxu0
    %v3201 = vadd.f32 0.0, %v3200
    %v3202 = vpop.f32.mrb[0].mxu0
    %3203 = vdwg.mxu0
    %v3204 = vadd.f32 %v3110, %v3196
    %v3205 = vadd.f32 %v3111, %v3201
    %v3206 = vrot.slane %v2648, 2
    %v3207 = vrot.slane %v2649, 2
    %v3208 = vsel %vm1460, %v3206, %v3207
    %v3209 = vsel %vm1460, %v3207, %v3206
    %v3210 = vmul.f32 %v3208, %v1466
    %v3211 = vmul.f32 %v3209, %v1471
    %s3212 = scalar_lea.vmem [#allocation2], 480
    %v3213 = vld [vmem:[%s3212] sm:$0xff]
    %v3214 = vld [vmem:[%s3212 + $0x8] sm:$0xff]
    %v3215 = vld [vmem:[%s3212 + $0x10] sm:$0xff]
    %v3216 = vld [vmem:[%s3212 + $0x18] sm:$0xff]
    %v3218 = vsel %vm96, %v3210, 0
    %v3221 = vsel %vm96, %v3211, 0
    %3223 = vmatprep.subr.mxu0 0.0
    %3224 = vmatpush1.msra.mxu0 %v3213
    %3225 = vmatprep.subr.mxu0 0.0
    %3226 = vmatpush1.msra.mxu0 %v3214
    %3227 = vmatprep.subr.mxu0 0.0
    %3228 = vmatpush1.msra.mxu0 %v3215
    %3229 = vmatprep.subr.mxu0 0.0
    %3230 = vmatpush1.msra.mxu0 %v3216
    %3231 = vmatprep.subr.mxu0 0.0
    %3232 = vmatpush1.msra.mxu0 0.0
    %3233 = vmatprep.subr.mxu0 0.0
    %3234 = vmatpush1.msra.mxu0 0.0
    %3235 = vmatprep.subr.mxu0 0.0
    %3236 = vmatpush1.msra.mxu0 0.0
    %3237 = vmatprep.subr.mxu0 0.0
    %3238 = vmatpush1.msra.mxu0 0.0
    %3239 = vmatprep.subr.mxu0 0.0
    %3240 = vmatpush1.msra.mxu0 0.0
    %3241 = vmatprep.subr.mxu0 0.0
    %3242 = vmatpush1.msra.mxu0 0.0
    %3243 = vmatprep.subr.mxu0 0.0
    %3244 = vmatpush1.msra.mxu0 0.0
    %3245 = vmatprep.subr.mxu0 0.0
    %3246 = vmatpush1.msra.mxu0 0.0
    %3247 = vmatprep.subr.mxu0 0.0
    %3248 = vmatpush1.msra.mxu0 0.0
    %3249 = vmatprep.subr.mxu0 0.0
    %3250 = vmatpush1.msra.mxu0 0.0
    %3251 = vmatprep.subr.mxu0 0.0
    %3252 = vmatpush1.msra.mxu0 0.0
    %3253 = vmatprep.subr.mxu0 0.0
    %3254 = vmatpush1.msra.mxu0 0.0
    %3255 = vmatprep.subr.mxu0 0.0
    %3256 = vmatpush1.msra.mxu0 0.0
    %3257 = vmatprep.subr.mxu0 0.0
    %3258 = vmatpush1.msra.mxu0 0.0
    %3259 = vmatprep.subr.mxu0 0.0
    %3260 = vmatpush1.msra.mxu0 0.0
    %3261 = vmatprep.subr.mxu0 0.0
    %3262 = vmatpush1.msra.mxu0 0.0
    %3263 = vmatprep.subr.mxu0 0.0
    %3264 = vmatpush1.msra.mxu0 0.0
    %3265 = vmatprep.subr.mxu0 0.0
    %3266 = vmatpush1.msra.mxu0 0.0
    %3267 = vmatprep.subr.mxu0 0.0
    %3268 = vmatpush1.msra.mxu0 0.0
    %3269 = vmatprep.subr.mxu0 0.0
    %3270 = vmatpush1.msra.mxu0 0.0
    %3271 = vmatprep.subr.mxu0 0.0
    %3272 = vmatpush1.msra.mxu0 0.0
    %3273 = vmatprep.subr.mxu0 0.0
    %3274 = vmatpush1.msra.mxu0 0.0
    %3275 = vmatprep.subr.mxu0 0.0
    %3276 = vmatpush1.msra.mxu0 0.0
    %3277 = vmatprep.subr.mxu0 0.0
    %3278 = vmatpush1.msra.mxu0 0.0
    %3279 = vmatprep.subr.mxu0 0.0
    %3280 = vmatpush1.msra.mxu0 0.0
    %3281 = vmatprep.subr.mxu0 0.0
    %3282 = vmatpush1.msra.mxu0 0.0
    %3283 = vmatprep.subr.mxu0 0.0
    %3284 = vmatpush1.msra.mxu0 0.0
    %3285 = vmatprep.subr.mxu0 0.0
    %3286 = vmatpush1.msra.mxu0 0.0
    %3287 = vmatprep.mubr.f32.mxu0 0.0
    %3288 = vmatmul.mubr.f32.gmra.mrb[0].mxu0 %v3218
    %v3289 = vpop.f32.mrb[0].mxu0
    %v3290 = vadd.f32 0.0, %v3289
    %v3291 = vpop.f32.mrb[0].mxu0
    %3292 = vmatprep.mubr.f32.mxu0 0.0
    %3293 = vmatmul.mubr.f32.gmra.mrb[0].mxu0 %v3221
    %v3294 = vpop.f32.mrb[0].mxu0
    %v3295 = vadd.f32 0.0, %v3294
    %v3296 = vpop.f32.mrb[0].mxu0
    %3297 = vdwg.mxu0
    %v3298 = vadd.f32 %v3204, %v3290
    %v3299 = vadd.f32 %v3205, %v3295
    %v3300 = vrot.slane %v2648, 3
    %v3301 = vrot.slane %v2649, 3
    %v3302 = vsel %vm1565, %v3300, %v3301
    %v3303 = vsel %vm1565, %v3301, %v3300
    %v3304 = vmul.f32 %v3302, %v1571
    %v3305 = vmul.f32 %v3303, %v1576
    %s3306 = scalar_lea.vmem [#allocation2], 512
    %v3307 = vld [vmem:[%s3306] sm:$0xff]
    %v3308 = vld [vmem:[%s3306 + $0x8] sm:$0xff]
    %v3309 = vld [vmem:[%s3306 + $0x10] sm:$0xff]
    %v3310 = vld [vmem:[%s3306 + $0x18] sm:$0xff]
    %v3312 = vsel %vm96, %v3304, 0
    %v3315 = vsel %vm96, %v3305, 0
    %3317 = vmatprep.subr.mxu0 0.0
    %3318 = vmatpush1.msra.mxu0 %v3307
    %3319 = vmatprep.subr.mxu0 0.0
    %3320 = vmatpush1.msra.mxu0 %v3308
    %3321 = vmatprep.subr.mxu0 0.0
    %3322 = vmatpush1.msra.mxu0 %v3309
    %3323 = vmatprep.subr.mxu0 0.0
    %3324 = vmatpush1.msra.mxu0 %v3310
    %3325 = vmatprep.subr.mxu0 0.0
    %3326 = vmatpush1.msra.mxu0 0.0
    %3327 = vmatprep.subr.mxu0 0.0
    %3328 = vmatpush1.msra.mxu0 0.0
    %3329 = vmatprep.subr.mxu0 0.0
    %3330 = vmatpush1.msra.mxu0 0.0
    %3331 = vmatprep.subr.mxu0 0.0
    %3332 = vmatpush1.msra.mxu0 0.0
    %3333 = vmatprep.subr.mxu0 0.0
    %3334 = vmatpush1.msra.mxu0 0.0
    %3335 = vmatprep.subr.mxu0 0.0
    %3336 = vmatpush1.msra.mxu0 0.0
    %3337 = vmatprep.subr.mxu0 0.0
    %3338 = vmatpush1.msra.mxu0 0.0
    %3339 = vmatprep.subr.mxu0 0.0
    %3340 = vmatpush1.msra.mxu0 0.0
    %3341 = vmatprep.subr.mxu0 0.0
    %3342 = vmatpush1.msra.mxu0 0.0
    %3343 = vmatprep.subr.mxu0 0.0
    %3344 = vmatpush1.msra.mxu0 0.0
    %3345 = vmatprep.subr.mxu0 0.0
    %3346 = vmatpush1.msra.mxu0 0.0
    %3347 = vmatprep.subr.mxu0 0.0
    %3348 = vmatpush1.msra.mxu0 0.0
    %3349 = vmatprep.subr.mxu0 0.0
    %3350 = vmatpush1.msra.mxu0 0.0
    %3351 = vmatprep.subr.mxu0 0.0
    %3352 = vmatpush1.msra.mxu0 0.0
    %3353 = vmatprep.subr.mxu0 0.0
    %3354 = vmatpush1.msra.mxu0 0.0
    %3355 = vmatprep.subr.mxu0 0.0
    %3356 = vmatpush1.msra.mxu0 0.0
    %3357 = vmatprep.subr.mxu0 0.0
    %3358 = vmatpush1.msra.mxu0 0.0
    %3359 = vmatprep.subr.mxu0 0.0
    %3360 = vmatpush1.msra.mxu0 0.0
    %3361 = vmatprep.subr.mxu0 0.0
    %3362 = vmatpush1.msra.mxu0 0.0
    %3363 = vmatprep.subr.mxu0 0.0
    %3364 = vmatpush1.msra.mxu0 0.0
    %3365 = vmatprep.subr.mxu0 0.0
    %3366 = vmatpush1.msra.mxu0 0.0
    %3367 = vmatprep.subr.mxu0 0.0
    %3368 = vmatpush1.msra.mxu0 0.0
    %3369 = vmatprep.subr.mxu0 0.0
    %3370 = vmatpush1.msra.mxu0 0.0
    %3371 = vmatprep.subr.mxu0 0.0
    %3372 = vmatpush1.msra.mxu0 0.0
    %3373 = vmatprep.subr.mxu0 0.0
    %3374 = vmatpush1.msra.mxu0 0.0
    %3375 = vmatprep.subr.mxu0 0.0
    %3376 = vmatpush1.msra.mxu0 0.0
    %3377 = vmatprep.subr.mxu0 0.0
    %3378 = vmatpush1.msra.mxu0 0.0
    %3379 = vmatprep.subr.mxu0 0.0
    %3380 = vmatpush1.msra.mxu0 0.0
    %3381 = vmatprep.mubr.f32.mxu0 0.0
    %3382 = vmatmul.mubr.f32.gmra.mrb[0].mxu0 %v3312
    %v3383 = vpop.f32.mrb[0].mxu0
    %v3384 = vadd.f32 0.0, %v3383
    %v3385 = vpop.f32.mrb[0].mxu0
    %3386 = vmatprep.mubr.f32.mxu0 0.0
    %3387 = vmatmul.mubr.f32.gmra.mrb[0].mxu0 %v3315
    %v3388 = vpop.f32.mrb[0].mxu0
    %v3389 = vadd.f32 0.0, %v3388
    %v3390 = vpop.f32.mrb[0].mxu0
    %3391 = vdwg.mxu0
    %v3392 = vadd.f32 %v3298, %v3384
    %v3393 = vadd.f32 %v3299, %v3389
    %v3394 = vmul.f32 %v2652, %v1671
    %v3395 = vmul.f32 %v2653, %v1676
    %s3396 = scalar_lea.vmem [#allocation2], 544
    %v3397 = vld [vmem:[%s3396] sm:$0xff]
    %v3398 = vld [vmem:[%s3396 + $0x8] sm:$0xff]
    %v3399 = vld [vmem:[%s3396 + $0x10] sm:$0xff]
    %v3400 = vld [vmem:[%s3396 + $0x18] sm:$0xff]
    %v3402 = vsel %vm96, %v3394, 0
    %v3405 = vsel %vm96, %v3395, 0
    %3407 = vmatprep.subr.mxu0 0.0
    %3408 = vmatpush1.msra.mxu0 %v3397
    %3409 = vmatprep.subr.mxu0 0.0
    %3410 = vmatpush1.msra.mxu0 %v3398
    %3411 = vmatprep.subr.mxu0 0.0
    %3412 = vmatpush1.msra.mxu0 %v3399
    %3413 = vmatprep.subr.mxu0 0.0
    %3414 = vmatpush1.msra.mxu0 %v3400
    %3415 = vmatprep.subr.mxu0 0.0
    %3416 = vmatpush1.msra.mxu0 0.0
    %3417 = vmatprep.subr.mxu0 0.0
    %3418 = vmatpush1.msra.mxu0 0.0
    %3419 = vmatprep.subr.mxu0 0.0
    %3420 = vmatpush1.msra.mxu0 0.0
    %3421 = vmatprep.subr.mxu0 0.0
    %3422 = vmatpush1.msra.mxu0 0.0
    %3423 = vmatprep.subr.mxu0 0.0
    %3424 = vmatpush1.msra.mxu0 0.0
    %3425 = vmatprep.subr.mxu0 0.0
    %3426 = vmatpush1.msra.mxu0 0.0
    %3427 = vmatprep.subr.mxu0 0.0
    %3428 = vmatpush1.msra.mxu0 0.0
    %3429 = vmatprep.subr.mxu0 0.0
    %3430 = vmatpush1.msra.mxu0 0.0
    %3431 = vmatprep.subr.mxu0 0.0
    %3432 = vmatpush1.msra.mxu0 0.0
    %3433 = vmatprep.subr.mxu0 0.0
    %3434 = vmatpush1.msra.mxu0 0.0
    %3435 = vmatprep.subr.mxu0 0.0
    %3436 = vmatpush1.msra.mxu0 0.0
    %3437 = vmatprep.subr.mxu0 0.0
    %3438 = vmatpush1.msra.mxu0 0.0
    %3439 = vmatprep.subr.mxu0 0.0
    %3440 = vmatpush1.msra.mxu0 0.0
    %3441 = vmatprep.subr.mxu0 0.0
    %3442 = vmatpush1.msra.mxu0 0.0
    %3443 = vmatprep.subr.mxu0 0.0
    %3444 = vmatpush1.msra.mxu0 0.0
    %3445 = vmatprep.subr.mxu0 0.0
    %3446 = vmatpush1.msra.mxu0 0.0
    %3447 = vmatprep.subr.mxu0 0.0
    %3448 = vmatpush1.msra.mxu0 0.0
    %3449 = vmatprep.subr.mxu0 0.0
    %3450 = vmatpush1.msra.mxu0 0.0
    %3451 = vmatprep.subr.mxu0 0.0
    %3452 = vmatpush1.msra.mxu0 0.0
    %3453 = vmatprep.subr.mxu0 0.0
    %3454 = vmatpush1.msra.mxu0 0.0
    %3455 = vmatprep.subr.mxu0 0.0
    %3456 = vmatpush1.msra.mxu0 0.0
    %3457 = vmatprep.subr.mxu0 0.0
    %3458 = vmatpush1.msra.mxu0 0.0
    %3459 = vmatprep.subr.mxu0 0.0
    %3460 = vmatpush1.msra.mxu0 0.0
    %3461 = vmatprep.subr.mxu0 0.0
    %3462 = vmatpush1.msra.mxu0 0.0
    %3463 = vmatprep.subr.mxu0 0.0
    %3464 = vmatpush1.msra.mxu0 0.0
    %3465 = vmatprep.subr.mxu0 0.0
    %3466 = vmatpush1.msra.mxu0 0.0
    %3467 = vmatprep.subr.mxu0 0.0
    %3468 = vmatpush1.msra.mxu0 0.0
    %3469 = vmatprep.subr.mxu0 0.0
    %3470 = vmatpush1.msra.mxu0 0.0
    %3471 = vmatprep.mubr.f32.mxu0 0.0
    %3472 = vmatmul.mubr.f32.gmra.mrb[0].mxu0 %v3402
    %v3473 = vpop.f32.mrb[0].mxu0
    %v3474 = vadd.f32 0.0, %v3473
    %v3475 = vpop.f32.mrb[0].mxu0
    %3476 = vmatprep.mubr.f32.mxu0 0.0
    %3477 = vmatmul.mubr.f32.gmra.mrb[0].mxu0 %v3405
    %v3478 = vpop.f32.mrb[0].mxu0
    %v3479 = vadd.f32 0.0, %v3478
    %v3480 = vpop.f32.mrb[0].mxu0
    %3481 = vdwg.mxu0
    %v3482 = vadd.f32 %v3392, %v3474
    %v3483 = vadd.f32 %v3393, %v3479
    %v3484 = vlaneseq
    %v3485 = vshrl.u32 %v3484, 7
    %v3486 = vsub.s32 4, %v3485
    %v3487 = vrot.slane %v1924, %v3486
    %v3488 = vadd.f32 %v3482, %v3487
    %v3489 = vadd.f32 %v3483, %v3487
    %v3490 = vmax.f32 %v3488, 0.0
    %v3491 = vmax.f32 %v3489, 0.0
    %v3492 = vlaneseq
    %v3493 = vshrl.u32 %v3492, 7
    %v3494 = vsub.s32 5, %v3493
    %v3495 = vrot.slane %v1924, %v3494
    %v3497 = vsel %vm1780, %v3490, 0
    %v3500 = vsel %vm1780, %v3491, 0
    %3502 = vmatprep.subr.mxu0 0.0
    %3503 = vmatpush1.msra.mxu0 %v1915
    %3504 = vmatprep.subr.mxu0 0.0
    %3505 = vmatpush1.msra.mxu0 %v1916
    %3506 = vmatprep.subr.mxu0 0.0
    %3507 = vmatpush1.msra.mxu0 %v1917
    %3508 = vmatprep.subr.mxu0 0.0
    %3509 = vmatpush1.msra.mxu0 %v1918
    %3510 = vmatprep.subr.mxu0 0.0
    %3511 = vmatpush1.msra.mxu0 %v1919
    %3512 = vmatprep.subr.mxu0 0.0
    %3513 = vmatpush1.msra.mxu0 %v1920
    %3514 = vmatprep.subr.mxu0 0.0
    %3515 = vmatpush1.msra.mxu0 %v1921
    %3516 = vmatprep.subr.mxu0 0.0
    %3517 = vmatpush1.msra.mxu0 %v1922
    %3518 = vmatprep.subr.mxu0 0.0
    %3519 = vmatpush1.msra.mxu0 0.0
    %3520 = vmatprep.subr.mxu0 0.0
    %3521 = vmatpush1.msra.mxu0 0.0
    %3522 = vmatprep.subr.mxu0 0.0
    %3523 = vmatpush1.msra.mxu0 0.0
    %3524 = vmatprep.subr.mxu0 0.0
    %3525 = vmatpush1.msra.mxu0 0.0
    %3526 = vmatprep.subr.mxu0 0.0
    %3527 = vmatpush1.msra.mxu0 0.0
    %3528 = vmatprep.subr.mxu0 0.0
    %3529 = vmatpush1.msra.mxu0 0.0
    %3530 = vmatprep.subr.mxu0 0.0
    %3531 = vmatpush1.msra.mxu0 0.0
    %3532 = vmatprep.subr.mxu0 0.0
    %3533 = vmatpush1.msra.mxu0 0.0
    %3534 = vmatprep.subr.mxu0 0.0
    %3535 = vmatpush1.msra.mxu0 0.0
    %3536 = vmatprep.subr.mxu0 0.0
    %3537 = vmatpush1.msra.mxu0 0.0
    %3538 = vmatprep.subr.mxu0 0.0
    %3539 = vmatpush1.msra.mxu0 0.0
    %3540 = vmatprep.subr.mxu0 0.0
    %3541 = vmatpush1.msra.mxu0 0.0
    %3542 = vmatprep.subr.mxu0 0.0
    %3543 = vmatpush1.msra.mxu0 0.0
    %3544 = vmatprep.subr.mxu0 0.0
    %3545 = vmatpush1.msra.mxu0 0.0
    %3546 = vmatprep.subr.mxu0 0.0
    %3547 = vmatpush1.msra.mxu0 0.0
    %3548 = vmatprep.subr.mxu0 0.0
    %3549 = vmatpush1.msra.mxu0 0.0
    %3550 = vmatprep.subr.mxu0 0.0
    %3551 = vmatpush1.msra.mxu0 0.0
    %3552 = vmatprep.subr.mxu0 0.0
    %3553 = vmatpush1.msra.mxu0 0.0
    %3554 = vmatprep.subr.mxu0 0.0
    %3555 = vmatpush1.msra.mxu0 0.0
    %3556 = vmatprep.subr.mxu0 0.0
    %3557 = vmatpush1.msra.mxu0 0.0
    %3558 = vmatprep.subr.mxu0 0.0
    %3559 = vmatpush1.msra.mxu0 0.0
    %3560 = vmatprep.subr.mxu0 0.0
    %3561 = vmatpush1.msra.mxu0 0.0
    %3562 = vmatprep.subr.mxu0 0.0
    %3563 = vmatpush1.msra.mxu0 0.0
    %3564 = vmatprep.subr.mxu0 0.0
    %3565 = vmatpush1.msra.mxu0 0.0
    %3566 = vmatprep.mubr.f32.mxu0 0.0
    %3567 = vmatmul.mubr.f32.gmra.mrb[0].mxu0 %v3497
    %v3568 = vpop.f32.mrb[0].mxu0
    %v3569 = vadd.f32 %v3495, %v3568
    %v3570 = vpop.f32.mrb[0].mxu0
    %3571 = vmatprep.mubr.f32.mxu0 0.0
    %3572 = vmatmul.mubr.f32.gmra.mrb[0].mxu0 %v3500
    %v3573 = vpop.f32.mrb[0].mxu0
    %v3574 = vadd.f32 %v3495, %v3573
    %v3575 = vpop.f32.mrb[0].mxu0
    %3576 = vdwg.mxu0
    %v3577 = vadd.f32 %v3569, %v2648
    %v3578 = vadd.f32 %v3574, %v2649
    %v3579 = vsel %vm96, %v3577, 0.0
    %3580 = vadd.xlane.f32.xlu0 %v3579
    %v3581 = vpop.xlane.xlu0 %3580
    %v3582 = vsel %vm96, %v3578, 0.0
    %3583 = vadd.xlane.f32.xlu0 %v3582
    %v3584 = vpop.xlane.xlu0 %3583
    %v3585 = vmul.f32 %v3581, %v791
    %v3586 = vmul.f32 %v3584, %v791
    %v3587 = vsub.f32 %v3577, %v3585
    %v3588 = vsub.f32 %v3578, %v3586
    %v3589 = vmul.f32 %v3587, %v3587
    %v3590 = vmul.f32 %v3588, %v3588
    %v3591 = vsel %vm96, %v3589, 0.0
    %3592 = vadd.xlane.f32.xlu0 %v3591
    %v3593 = vpop.xlane.xlu0 %3592
    %v3594 = vsel %vm96, %v3590, 0.0
    %3595 = vadd.xlane.f32.xlu0 %v3594
    %v3596 = vpop.xlane.xlu0 %3595
    %v3597 = vmul.f32 %v3593, %v791
    %v3598 = vmul.f32 %v3596, %v791
    %v3599 = vadd.f32 %v3597, 1e-05
    %v3600 = vadd.f32 %v3598, 1e-05
    %v3601 = vrsqrt.pop %v3599
    %v3602 = vrsqrt.pop %v3600
    %v3603 = vmul.f32 %v3587, %v3601
    %v3604 = vmul.f32 %v3588, %v3602
    %v3605 = vlaneseq
    %v3606 = vshrl.u32 %v3605, 7
    %v3607 = vsub.s32 6, %v3606
    %v3608 = vrot.slane %v1924, %v3607
    %v3609 = vmul.f32 %v3603, %v3608
    %v3610 = vmul.f32 %v3604, %v3608
    %v3611 = vlaneseq
    %v3612 = vshrl.u32 %v3611, 7
    %v3613 = vsub.s32 7, %v3612
    %v3614 = vrot.slane %v1924, %v3613
    %v3615 = vadd.f32 %v3609, %v3614
    %v3616 = vadd.f32 %v3610, %v3614
    %v3617 = vmul.f32 %v3615, %v827
    %v3618 = vmul.f32 %v3616, %v832
    %3619 = vst.msk [vmem:[#allocation5] sm:$0xff] %vm96, %v3617
    %3620 = vst.msk [vmem:[#allocation5 + $0x8] sm:$0xff] %vm96, %v3618
    // Predicated region
    $region46: #{tpu_custom_call.1} parent=1 // pred_check
      _
    $region47: #{tpu_custom_call.1} parent=1 // pred_check_branch
      %3622 = sbr.rel (0) target = $region49
    $region48: #{tpu_custom_call.1} parent=1 // pred_region
      %s3624 = ssub.s32 256, 256
      %3625 = vsyncadd [#allocation4], %s3624
      %s3626 = sshll.u32 [#allocation5], 4
      %s3627 = int_to_ptr.vmem [resolvable:$true] %s3626
      %3632 = dma.vmem_to_hbm [thread:$0]  %s3627, 256, %s10, [#allocation4], 128, 128, 8
    $region49: #{tpu_custom_call.1} parent=1 // pred_fallthru
      _
    // Predicated region
    $region50: #{tpu_custom_call.1} parent=1 // pred_check
      _
    $region51: #{tpu_custom_call.1} parent=1 // pred_check_branch
      %3634 = sbr.rel (0) target = $region53
    $region52: #{tpu_custom_call.1} parent=1 // pred_region
      %3635 = dma.done [#allocation4], 256
    $region53: #{tpu_custom_call.1} parent=1 // pred_fallthru
      _
    %3636 = vsyncpa [#allocation3], 1
    %3637 = vsyncpa [#allocation4], 1

</llo_original>
